<compile_context>
chip_gen: v5e
topology: v5e:2x2
jax: 0.10.0
libtpu: 0.0.40
codegen_flags: <defaults>
</compile_context>

<pallas_src>
import functools

import jax
import jax.numpy as jnp
from jax.experimental import pallas as pl
from jax.experimental.pallas import tpu as pltpu


def _gnn_kernel(a_in_ref, a_out_ref, h_ref, w9_ref, consts_ref, out_ref,
                *, step, bt, n, hidden_size, compute_dtype):
    H = hidden_size
    R = bt * n
    cd = compute_dtype

    # Block-diagonal adjacency halves for this batch tile, kept in f32.
    A_in = a_in_ref[0]     # (R, R)
    A_out = a_out_ref[0]   # (R, R)

    # Step-invariant gate constants, hoisted out of the recurrence:
    #   C = rowsum(A_in)*(b_ein@Wtop) + rowsum(A_out)*(b_eout@Wbot)
    #       + b_iah@Wtop + b_oah@Wbot + b_ih
    kc = consts_ref[...]               # (4, 3H) f32: [k_in, k_out, d, b_hh]
    rs_in = jnp.sum(A_in, axis=-1, keepdims=True)     # (R, 1)
    rs_out = jnp.sum(A_out, axis=-1, keepdims=True)
    C = rs_in * kc[0:1] + rs_out * kc[1:2] + kc[2:3]  # (R, 3H)
    b_hh = kc[3:4]                                    # (1, 3H)

    W9 = w9_ref[...]                   # (H, 9H) = [M_in | M_out | w_hh^T]

    def cell(h):
        # h: (R, H) f32.  One wide MXU push: (R, H) @ (H, 9H) -> (R, 9H) f32.
        proj = jnp.dot(h.astype(cd), W9, preferred_element_type=jnp.float32)
        t_in = proj[:, :3 * H]           # in-edge projections, all 3 gates
        t_out = proj[:, 3 * H:6 * H]     # out-edge projections, all 3 gates
        gh = proj[:, 6 * H:] + b_hh      # hidden-path pre-activations

        # Block-diag adjacency contraction, full-width (R, R) @ (R, 3H), f32.
        gi = (jnp.dot(A_in, t_in, preferred_element_type=jnp.float32)
              + jnp.dot(A_out, t_out, preferred_element_type=jnp.float32)
              + C)

        # Fused gate math: one sigmoid over 2H lanes, one tanh over H lanes.
        rz = jax.nn.sigmoid(gi[:, :2 * H] + gh[:, :2 * H])   # (R, 2H)
        r = rz[:, :H]
        z = rz[:, H:]
        ng = jnp.tanh(gi[:, 2 * H:] + r * gh[:, 2 * H:])
        return ng + z * (h - ng)

    # (bt, n, H) -> (R, H) is a free reshape (leading dims merge, lanes unchanged).
    h = h_ref[...].reshape(R, H).astype(jnp.float32)
    if step <= 4:
        for _ in range(step):            # small trip count: static unroll
            h = cell(h)
    else:
        h = jax.lax.fori_loop(0, step, lambda _, hh: cell(hh), h, unroll=2)
    out_ref[...] = h.reshape(bt, n, H).astype(out_ref.dtype)


def _prep_weights(params, H, compute_dtype):
    """Pre-transpose, fold edge projections, fuse all gates into one (H, 9H)."""
    w_ih_t = params["w_ih"].T                      # (2H, 3H)
    Wtop, Wbot = w_ih_t[:H], w_ih_t[H:]            # (H, 3H) each
    M_in = params["w_edge_in"].T @ Wtop            # fold linear_edge_in
    M_out = params["w_edge_out"].T @ Wbot          # fold linear_edge_out
    w_hh_t = params["w_hh"].T                      # (H, 3H)
    W9 = jnp.concatenate([M_in, M_out, w_hh_t], axis=1).astype(compute_dtype)

    k_in = params["b_edge_in"] @ Wtop              # (3H,)
    k_out = params["b_edge_out"] @ Wbot            # (3H,)
    d = params["b_iah"] @ Wtop + params["b_oah"] @ Wbot + params["b_ih"]
    consts = jnp.stack([k_in, k_out, d, params["b_hh"]]).astype(jnp.float32)
    return W9, consts                              # (H, 9H), (4, 3H)


def gnn_forward(A, hidden, params, *, step=1, compute_dtype=jnp.float32,
                batch_tile=None):
    """Pallas implementation of GNN.forward(A, hidden)."""
    B, N, twoN = A.shape
    _, _, H = hidden.shape
    assert twoN == 2 * N

    # Adjacency halves stay f32 (cheap contraction dim; avoids double rounding).
    A_in = A[:, :, :N].astype(jnp.float32)
    A_out = A[:, :, N:].astype(jnp.float32)

    # Batch tile: target ~256 MXU rows (Bt*N) per grid step, balanced across
    # tiles so the grid stays >= 2 when B allows (v7x megacore) and padding
    # waste stays small.
    if batch_tile is None:
        bt_max = max(1, 256 // max(N, 1))
        num_tiles = pl.cdiv(B, bt_max)
        bt = pl.cdiv(B, num_tiles)
    else:
        bt = batch_tile
    grid = pl.cdiv(B, bt)
    B_pad = grid * bt
    if B_pad != B:
        pad = ((0, B_pad - B), (0, 0), (0, 0))
        A_in = jnp.pad(A_in, pad)
        A_out = jnp.pad(A_out, pad)
        hidden_in = jnp.pad(hidden, pad)
    else:
        hidden_in = hidden

    # Block-diagonal adjacency per batch tile: (grid, Bt*N, Bt*N).  Memory is
    # grid*(Bt*N)^2*4 bytes -- a few hundred KB / MB at the target tile sizes.
    R = bt * N
    eye = jnp.eye(bt, dtype=jnp.float32)

    def block_diag(a):
        a = a.reshape(grid, bt, N, N)
        bd = eye[None, :, None, :, None] * a[:, :, :, None, :]
        return bd.reshape(grid, R, R)

    A_in_bd = block_diag(A_in)
    A_out_bd = block_diag(A_out)

    W9, consts = _prep_weights(params, H, compute_dtype)

    kernel = functools.partial(_gnn_kernel, step=step, bt=bt, n=N,
                               hidden_size=H, compute_dtype=compute_dtype)

    flops = step * grid * (2 * R * H * 9 * H + 2 * 2 * R * R * 3 * H)
    transcendentals = step * grid * R * 3 * H
    bytes_accessed = (4 * grid * 2 * R * R                # block-diag A in/out
                      + 2 * B_pad * N * H * hidden.dtype.itemsize
                      + 9 * H * H * jnp.dtype(compute_dtype).itemsize
                      + 4 * 4 * 3 * H)

    out = pl.pallas_call(
        kernel,
        out_shape=jax.ShapeDtypeStruct((B_pad, N, H), hidden.dtype),
        grid_spec=pltpu.PrefetchScalarGridSpec(
            num_scalar_prefetch=0,
            grid=(grid,),
            in_specs=[
                pl.BlockSpec((1, R, R), lambda b: (b, 0, 0)),   # A_in block-diag
                pl.BlockSpec((1, R, R), lambda b: (b, 0, 0)),   # A_out block-diag
                pl.BlockSpec((bt, N, H), lambda b: (b, 0, 0)),  # hidden
                pl.BlockSpec((H, 9 * H), lambda b: (0, 0)),     # fused gate weights
                pl.BlockSpec((4, 3 * H), lambda b: (0, 0)),     # bias constants
            ],
            out_specs=pl.BlockSpec((bt, N, H), lambda b: (b, 0, 0)),
        ),
        compiler_params=pltpu.CompilerParams(
            dimension_semantics=("parallel",)),
        cost_estimate=pl.CostEstimate(
            flops=int(flops),
            transcendentals=int(transcendentals),
            bytes_accessed=int(bytes_accessed)),
    )(A_in_bd, A_out_bd, hidden_in, W9, consts)
    return out[:B]


def gnn_reference(A, hidden, params, *, step=1):
    """Plain-JAX reference matching the PyTorch module semantics (unfolded)."""
    N = A.shape[1]
    h = hidden
    for _ in range(step):
        edge_in = h @ params["w_edge_in"].T + params["b_edge_in"]
        edge_out = h @ params["w_edge_out"].T + params["b_edge_out"]
        input_in = jnp.matmul(A[:, :, :N], edge_in) + params["b_iah"]
        input_out = jnp.matmul(A[:, :, N:2 * N], edge_out) + params["b_oah"]
        inputs = jnp.concatenate([input_in, input_out], axis=2)
        gi = inputs @ params["w_ih"].T + params["b_ih"]
        gh = h @ params["w_hh"].T + params["b_hh"]
        i_r, i_i, i_n = jnp.split(gi, 3, axis=2)
        h_r, h_i, h_n = jnp.split(gh, 3, axis=2)
        resetgate = jax.nn.sigmoid(i_r + h_r)
        inputgate = jax.nn.sigmoid(i_i + h_i)
        newgate = jnp.tanh(i_n + resetgate * h_n)
        h = newgate + inputgate * (h - newgate)
    return h


def init_params(key, hidden_size):
    H = hidden_size
    ks = jax.random.split(key, 10)
    scale = 1.0 / jnp.sqrt(H)
    u = lambda k, shape: jax.random.uniform(k, shape, jnp.float32, -scale, scale)
    return {
        "w_ih": u(ks[0], (3 * H, 2 * H)),
        "w_hh": u(ks[1], (3 * H, H)),
        "b_ih": u(ks[2], (3 * H,)),
        "b_hh": u(ks[3], (3 * H,)),
        "b_iah": u(ks[4], (H,)),
        "b_oah": u(ks[5], (H,)),
        "w_edge_in": u(ks[6], (H, H)),
        "b_edge_in": u(ks[7], (H,)),
        "w_edge_out": u(ks[8], (H, H)),
        "b_edge_out": u(ks[9], (H,)),
    }
    # TODO(synk): linear_edge_f exists in the PyTorch module but is unused in
    # forward(), so it has no counterpart here.


if __name__ == "__main__":
    key = jax.random.PRNGKey(0)
    # B=41 exercises a 2-step grid (both TCs on v7x) plus batch padding.
    B, N, H, STEP = 41, 8, 32, 2

    k_a, k_h, k_p = jax.random.split(key, 3)
    A = jax.random.uniform(k_a, (B, N, 2 * N), jnp.float32)
    hidden = jax.random.normal(k_h, (B, N, H), jnp.float32)
    params = init_params(k_p, H)

    ref = gnn_reference(A, hidden, params, step=STEP)

    # f32 path (tight check against the PyTorch-equivalent reference).
    out = jax.block_until_ready(gnn_forward(A, hidden, params, step=STEP))
    assert out.shape == ref.shape == (B, N, H)
    err = float(jnp.max(jnp.abs(out - ref)))
    assert jnp.allclose(out, ref, atol=2e-4, rtol=2e-4), err

    # bf16 MXU-operand path for the dense h@W9 matmul (adjacency + gate math
    # stay f32); loosened tolerance for the bf16 operand rounding.
    out_bf16 = jax.block_until_ready(
        gnn_forward(A, hidden, params, step=STEP, compute_dtype=jnp.bfloat16))
    err_bf16 = float(jnp.max(jnp.abs(out_bf16 - ref)))
    assert jnp.allclose(out_bf16, ref, atol=1e-1, rtol=1e-1), err_bf16

    print("KERNEL_OK")
</pallas_src>

<mosaic_0001>
module attributes {stable_mosaic.version = 11 : i64} {
  func.func @_gnn_kernel(%arg0: i32, %arg1: memref<1x168x168xf32, #tpu.memory_space<vmem>>, %arg2: memref<1x168x168xf32, #tpu.memory_space<vmem>>, %arg3: memref<21x8x32xf32, #tpu.memory_space<vmem>>, %arg4: memref<32x288xf32, #tpu.memory_space<vmem>>, %arg5: memref<4x96xf32, #tpu.memory_space<vmem>>, %arg6: memref<21x8x32xf32, #tpu.memory_space<vmem>>) attributes {dimension_semantics = [#tpu.dimension_semantics<parallel>], iteration_bounds = array<i64: 2>, scalar_prefetch = 0 : i64, scratch_operands = 0 : i64, tpu.core_type = #tpu.core_type<tc>, window_params = [{transform_indices = @transform_0, window_bounds = array<i64: 1, 168, 168>}, {transform_indices = @transform_1, window_bounds = array<i64: 1, 168, 168>}, {transform_indices = @transform_2, window_bounds = array<i64: 21, 8, 32>}, {pipeline_mode = #tpu.pipeline_mode<synchronous>, transform_indices = @transform_3, window_bounds = array<i64: 32, 288>}, {pipeline_mode = #tpu.pipeline_mode<synchronous>, transform_indices = @transform_4, window_bounds = array<i64: 4, 96>}, {transform_indices = @transform_5, window_bounds = array<i64: 21, 8, 32>}]} {
    %c0 = arith.constant 0 : index
    %c0_0 = arith.constant 0 : index
    %c0_1 = arith.constant 0 : index
    %0 = vector.load %arg1[%c0, %c0_0, %c0_1] : memref<1x168x168xf32, #tpu.memory_space<vmem>>, vector<1x168x168xf32>
    %1 = vector.shape_cast %0 : vector<1x168x168xf32> to vector<168x168xf32>
    %c0_2 = arith.constant 0 : index
    %c0_3 = arith.constant 0 : index
    %c0_4 = arith.constant 0 : index
    %2 = vector.load %arg2[%c0_2, %c0_3, %c0_4] : memref<1x168x168xf32, #tpu.memory_space<vmem>>, vector<1x168x168xf32>
    %3 = vector.shape_cast %2 : vector<1x168x168xf32> to vector<168x168xf32>
    %c0_5 = arith.constant 0 : index
    %c0_6 = arith.constant 0 : index
    %4 = vector.load %arg5[%c0_5, %c0_6] : memref<4x96xf32, #tpu.memory_space<vmem>>, vector<4x96xf32>
    %cst = arith.constant dense<0.000000e+00> : vector<168xf32>
    %5 = vector.multi_reduction <add>, %1, %cst [1] : vector<168x168xf32> to vector<168xf32>
    %6 = vector.shape_cast %5 : vector<168xf32> to vector<168x1xf32>
    %cst_7 = arith.constant dense<0.000000e+00> : vector<168xf32>
    %7 = vector.multi_reduction <add>, %3, %cst_7 [1] : vector<168x168xf32> to vector<168xf32>
    %8 = vector.shape_cast %7 : vector<168xf32> to vector<168x1xf32>
    %9 = vector.extract_strided_slice %4 {offsets = [0, 0], sizes = [1, 96], strides = [1, 1]} : vector<4x96xf32> to vector<1x96xf32>
    %10 = vector.broadcast %6 : vector<168x1xf32> to vector<168x96xf32>
    %11 = vector.broadcast %9 : vector<1x96xf32> to vector<168x96xf32>
    %12 = arith.mulf %10, %11 : vector<168x96xf32>
    %13 = vector.extract_strided_slice %4 {offsets = [1, 0], sizes = [1, 96], strides = [1, 1]} : vector<4x96xf32> to vector<1x96xf32>
    %14 = vector.broadcast %8 : vector<168x1xf32> to vector<168x96xf32>
    %15 = vector.broadcast %13 : vector<1x96xf32> to vector<168x96xf32>
    %16 = arith.mulf %14, %15 : vector<168x96xf32>
    %17 = arith.addf %12, %16 : vector<168x96xf32>
    %18 = vector.extract_strided_slice %4 {offsets = [2, 0], sizes = [1, 96], strides = [1, 1]} : vector<4x96xf32> to vector<1x96xf32>
    %19 = vector.broadcast %18 : vector<1x96xf32> to vector<168x96xf32>
    %20 = arith.addf %17, %19 : vector<168x96xf32>
    %21 = vector.extract_strided_slice %4 {offsets = [3, 0], sizes = [1, 96], strides = [1, 1]} : vector<4x96xf32> to vector<1x96xf32>
    %c0_8 = arith.constant 0 : index
    %c0_9 = arith.constant 0 : index
    %22 = vector.load %arg4[%c0_8, %c0_9] : memref<32x288xf32, #tpu.memory_space<vmem>>, vector<32x288xf32>
    %c0_10 = arith.constant 0 : index
    %c0_11 = arith.constant 0 : index
    %c0_12 = arith.constant 0 : index
    %23 = vector.load %arg3[%c0_10, %c0_11, %c0_12] : memref<21x8x32xf32, #tpu.memory_space<vmem>>, vector<21x8x32xf32>
    %24 = vector.shape_cast %23 : vector<21x8x32xf32> to vector<168x32xf32>
    %cst_13 = arith.constant dense<0.000000e+00> : vector<168x288xf32>
    %25 = tpu.matmul %24, %22, %cst_13 {dimension_numbers = #tpu.dot_dimension_numbers<[1], [0], [0], [1], [0, 0, 1, 1], [], []>} : vector<168x32xf32>, vector<32x288xf32>, vector<168x288xf32> -> vector<168x288xf32>
    %26 = vector.extract_strided_slice %25 {offsets = [0, 0], sizes = [168, 96], strides = [1, 1]} : vector<168x288xf32> to vector<168x96xf32>
    %27 = vector.extract_strided_slice %25 {offsets = [0, 96], sizes = [168, 96], strides = [1, 1]} : vector<168x288xf32> to vector<168x96xf32>
    %28 = vector.extract_strided_slice %25 {offsets = [0, 192], sizes = [168, 96], strides = [1, 1]} : vector<168x288xf32> to vector<168x96xf32>
    %29 = vector.broadcast %21 : vector<1x96xf32> to vector<168x96xf32>
    %30 = arith.addf %28, %29 : vector<168x96xf32>
    %cst_14 = arith.constant dense<0.000000e+00> : vector<168x96xf32>
    %31 = tpu.matmul %1, %26, %cst_14 {dimension_numbers = #tpu.dot_dimension_numbers<[1], [0], [0], [1], [0, 0, 1, 1], [], []>} : vector<168x168xf32>, vector<168x96xf32>, vector<168x96xf32> -> vector<168x96xf32>
    %cst_15 = arith.constant dense<0.000000e+00> : vector<168x96xf32>
    %32 = tpu.matmul %3, %27, %cst_15 {dimension_numbers = #tpu.dot_dimension_numbers<[1], [0], [0], [1], [0, 0, 1, 1], [], []>} : vector<168x168xf32>, vector<168x96xf32>, vector<168x96xf32> -> vector<168x96xf32>
    %33 = arith.addf %31, %32 : vector<168x96xf32>
    %34 = arith.addf %33, %20 : vector<168x96xf32>
    %35 = vector.extract_strided_slice %34 {offsets = [0, 0], sizes = [168, 64], strides = [1, 1]} : vector<168x96xf32> to vector<168x64xf32>
    %36 = vector.extract_strided_slice %30 {offsets = [0, 0], sizes = [168, 64], strides = [1, 1]} : vector<168x96xf32> to vector<168x64xf32>
    %37 = arith.addf %35, %36 : vector<168x64xf32>
    %38 = arith.negf %37 : vector<168x64xf32>
    %39 = math.exp %38 : vector<168x64xf32>
    %cst_16 = arith.constant 1.000000e+00 : f32
    %40 = vector.broadcast %cst_16 : f32 to vector<168x64xf32>
    %41 = arith.addf %40, %39 : vector<168x64xf32>
    %42 = arith.divf %40, %41 : vector<168x64xf32>
    %43 = vector.extract_strided_slice %42 {offsets = [0, 0], sizes = [168, 32], strides = [1, 1]} : vector<168x64xf32> to vector<168x32xf32>
    %44 = vector.extract_strided_slice %42 {offsets = [0, 32], sizes = [168, 32], strides = [1, 1]} : vector<168x64xf32> to vector<168x32xf32>
    %45 = vector.extract_strided_slice %34 {offsets = [0, 64], sizes = [168, 32], strides = [1, 1]} : vector<168x96xf32> to vector<168x32xf32>
    %46 = vector.extract_strided_slice %30 {offsets = [0, 64], sizes = [168, 32], strides = [1, 1]} : vector<168x96xf32> to vector<168x32xf32>
    %47 = arith.mulf %43, %46 : vector<168x32xf32>
    %48 = arith.addf %45, %47 : vector<168x32xf32>
    %49 = math.tanh %48 : vector<168x32xf32>
    %50 = arith.subf %24, %49 : vector<168x32xf32>
    %51 = arith.mulf %44, %50 : vector<168x32xf32>
    %52 = arith.addf %49, %51 : vector<168x32xf32>
    %cst_17 = arith.constant dense<0.000000e+00> : vector<168x288xf32>
    %53 = tpu.matmul %52, %22, %cst_17 {dimension_numbers = #tpu.dot_dimension_numbers<[1], [0], [0], [1], [0, 0, 1, 1], [], []>} : vector<168x32xf32>, vector<32x288xf32>, vector<168x288xf32> -> vector<168x288xf32>
    %54 = vector.extract_strided_slice %53 {offsets = [0, 0], sizes = [168, 96], strides = [1, 1]} : vector<168x288xf32> to vector<168x96xf32>
    %55 = vector.extract_strided_slice %53 {offsets = [0, 96], sizes = [168, 96], strides = [1, 1]} : vector<168x288xf32> to vector<168x96xf32>
    %56 = vector.extract_strided_slice %53 {offsets = [0, 192], sizes = [168, 96], strides = [1, 1]} : vector<168x288xf32> to vector<168x96xf32>
    %57 = vector.broadcast %21 : vector<1x96xf32> to vector<168x96xf32>
    %58 = arith.addf %56, %57 : vector<168x96xf32>
    %cst_18 = arith.constant dense<0.000000e+00> : vector<168x96xf32>
    %59 = tpu.matmul %1, %54, %cst_18 {dimension_numbers = #tpu.dot_dimension_numbers<[1], [0], [0], [1], [0, 0, 1, 1], [], []>} : vector<168x168xf32>, vector<168x96xf32>, vector<168x96xf32> -> vector<168x96xf32>
    %cst_19 = arith.constant dense<0.000000e+00> : vector<168x96xf32>
    %60 = tpu.matmul %3, %55, %cst_19 {dimension_numbers = #tpu.dot_dimension_numbers<[1], [0], [0], [1], [0, 0, 1, 1], [], []>} : vector<168x168xf32>, vector<168x96xf32>, vector<168x96xf32> -> vector<168x96xf32>
    %61 = arith.addf %59, %60 : vector<168x96xf32>
    %62 = arith.addf %61, %20 : vector<168x96xf32>
    %63 = vector.extract_strided_slice %62 {offsets = [0, 0], sizes = [168, 64], strides = [1, 1]} : vector<168x96xf32> to vector<168x64xf32>
    %64 = vector.extract_strided_slice %58 {offsets = [0, 0], sizes = [168, 64], strides = [1, 1]} : vector<168x96xf32> to vector<168x64xf32>
    %65 = arith.addf %63, %64 : vector<168x64xf32>
    %66 = arith.negf %65 : vector<168x64xf32>
    %67 = math.exp %66 : vector<168x64xf32>
    %cst_20 = arith.constant 1.000000e+00 : f32
    %68 = vector.broadcast %cst_20 : f32 to vector<168x64xf32>
    %69 = arith.addf %68, %67 : vector<168x64xf32>
    %70 = arith.divf %68, %69 : vector<168x64xf32>
    %71 = vector.extract_strided_slice %70 {offsets = [0, 0], sizes = [168, 32], strides = [1, 1]} : vector<168x64xf32> to vector<168x32xf32>
    %72 = vector.extract_strided_slice %70 {offsets = [0, 32], sizes = [168, 32], strides = [1, 1]} : vector<168x64xf32> to vector<168x32xf32>
    %73 = vector.extract_strided_slice %62 {offsets = [0, 64], sizes = [168, 32], strides = [1, 1]} : vector<168x96xf32> to vector<168x32xf32>
    %74 = vector.extract_strided_slice %58 {offsets = [0, 64], sizes = [168, 32], strides = [1, 1]} : vector<168x96xf32> to vector<168x32xf32>
    %75 = arith.mulf %71, %74 : vector<168x32xf32>
    %76 = arith.addf %73, %75 : vector<168x32xf32>
    %77 = math.tanh %76 : vector<168x32xf32>
    %78 = arith.subf %52, %77 : vector<168x32xf32>
    %79 = arith.mulf %72, %78 : vector<168x32xf32>
    %80 = arith.addf %77, %79 : vector<168x32xf32>
    %81 = vector.shape_cast %80 : vector<168x32xf32> to vector<21x8x32xf32>
    %c0_21 = arith.constant 0 : index
    %c0_22 = arith.constant 0 : index
    %c0_23 = arith.constant 0 : index
    %82 = vector.load %arg6[%c0_21, %c0_22, %c0_23] : memref<21x8x32xf32, #tpu.memory_space<vmem>>, vector<21x8x32xf32>
    tpu.vector_store %arg6[%c0_21, %c0_22, %c0_23], %81 {strides = array<i32>} : memref<21x8x32xf32, #tpu.memory_space<vmem>>, vector<21x8x32xf32>,
    return
  }
  func.func @transform_0(%arg0: i32) -> (i32, i32, i32) {
    %c0_i32 = arith.constant 0 : i32
    %c0_i32_0 = arith.constant 0 : i32
    %c0_i32_1 = arith.constant 0 : i32
    return %arg0, %c0_i32, %c0_i32_0 : i32, i32, i32
  }
  func.func @transform_1(%arg0: i32) -> (i32, i32, i32) {
    %c0_i32 = arith.constant 0 : i32
    %c0_i32_0 = arith.constant 0 : i32
    %c0_i32_1 = arith.constant 0 : i32
    return %arg0, %c0_i32, %c0_i32_0 : i32, i32, i32
  }
  func.func @transform_2(%arg0: i32) -> (i32, i32, i32) {
    %c0_i32 = arith.constant 0 : i32
    %c0_i32_0 = arith.constant 0 : i32
    %c0_i32_1 = arith.constant 0 : i32
    return %arg0, %c0_i32, %c0_i32_0 : i32, i32, i32
  }
  func.func @transform_3(%arg0: i32) -> (i32, i32) {
    %c0_i32 = arith.constant 0 : i32
    %c0_i32_0 = arith.constant 0 : i32
    %c0_i32_1 = arith.constant 0 : i32
    return %c0_i32, %c0_i32_0 : i32, i32
  }
  func.func @transform_4(%arg0: i32) -> (i32, i32) {
    %c0_i32 = arith.constant 0 : i32
    %c0_i32_0 = arith.constant 0 : i32
    %c0_i32_1 = arith.constant 0 : i32
    return %c0_i32, %c0_i32_0 : i32, i32
  }
  func.func @transform_5(%arg0: i32) -> (i32, i32, i32) {
    %c0_i32 = arith.constant 0 : i32
    %c0_i32_0 = arith.constant 0 : i32
    %c0_i32_1 = arith.constant 0 : i32
    return %arg0, %c0_i32, %c0_i32_0 : i32, i32, i32
  }
}

</mosaic_0001>

<llo_original>
// kernel: tpu_custom_call.1
$region0: #{tpu_custom_call.1}
  #allocation0 [shape = 'u32[]', space=smem, size = 0x4, offset = 0x4, fixed_abs, tag = 'smem constant byte address 0x4 - core index']
  #allocation1 [shape = 'u32[72,128]{1,0:T(1,128)}', space=vmem, size = 0x9000, scoped, tag = 'internal scratch']
  %s0 = inlined_call_operand.hbm [shape: f32[2,168,168], index: 0, kind: input, shape index: {}]
  %s1 = inlined_call_operand.hbm [shape: f32[2,168,168], index: 1, kind: input, shape index: {}]
  %s2 = inlined_call_operand.vmem [shape: f32[42,8,32], index: 2, kind: input, shape index: {}]
  %s3 = inlined_call_operand.vmem [shape: f32[32,288], index: 3, kind: input, shape index: {}]
  %s4 = inlined_call_operand.vmem [shape: f32[4,96], index: 4, kind: input, shape index: {}]
  %s5 = inlined_call_operand.vmem [shape: f32[42,8,32], index: 5, kind: output, shape index: {}]
  %s6 = sld [smem:[#allocation0]]
  $region61: #{tpu_custom_call.1} parent=0
    _
  %s8 = ssub.s32 1, %s6
  %s9 = scalar_select 0, %s8, %s6
  $region1: #{tpu_custom_call.1} parent=0
    #allocation2 [shape = 'u8[344064]{0}', space=vmem, size = 0x54000, scoped, tag = 'input window, operand 0']
    #allocation3 [shape = 's32[2]{0}', space=sflag, size = 0x8, scoped, tag = 'scoped memory for tpu_custom_call.1']
    #allocation4 [shape = 'u8[344064]{0}', space=vmem, size = 0x54000, scoped, tag = 'input window, operand 1']
    #allocation5 [shape = 's32[2]{0}', space=sflag, size = 0x8, scoped, tag = 'scoped memory for tpu_custom_call.1']
    %10 = vsyncpa [#allocation3], 0
    %s11 = scalar_lea.sflag [#allocation3], 1
    %12 = vsyncpa %s11, 0
    %13 = vsyncpa [#allocation5], 0
    %s14 = scalar_lea.sflag [#allocation5], 1
    %15 = vsyncpa %s14, 0
    loop: start=0, step=1, limit=4
    $region2: #{tpu_custom_call.1} parent=1 // loop_pre_header
      _
    $region3: #{tpu_custom_call.1} parent=1 // loop_header
      %s17 = sphi 0, %s21
      %p18 = scmp.ge.s32.totalorder %s17, 4
      %s27 = sphi 0, %s29
      %s30 = sphi 0, %s27
      %s31 = sphi 0, %s30
      %s47 = sphi 0, %s31
      %s53 = sphi 0, %s55
      %s56 = sphi 0, %s53
      %s57 = sphi 0, %s56
      %s73 = sphi 0, %s57
      %s79 = sphi 0, %s81
      %s82 = sphi 0, %s79
      %s83 = sphi 0, %s82
      %s99 = sphi 0, %s83
      %s103 = sphi 0, %s103
      %s105 = sphi 0, %s103
      %s106 = sphi 0, %s105
      %s120 = sphi 0, %s106
      %s124 = sphi 0, %s124
      %s126 = sphi 0, %s124
      %s127 = sphi 0, %s126
      %s141 = sphi 0, %s127
      %s147 = sphi 0, %s149
      %s150 = sphi 0, %s147
      %s151 = sphi 0, %s150
      %s167 = sphi 0, %s151
    $region4: #{tpu_custom_call.1} parent=1 // loop_header_branch
      %20 = sbr.rel (%p18) target = $region8
    $region5: #{tpu_custom_call.1} parent=1 // loop_body
      %s22 = ssub.s32 %s17, 1
      %s23 = ssub.s32 %s17, 2
      %s24 = sadd.s32 %s17, 1
      %s25 = ssub.s32 %s17, %s24
      %p26 = scmp.eq.s32.totalorder %s25, 0
      %s28 = sadd.s32 %s27, 1
      %s29 = scalar_select %p26, %s27, %s28
      %p32 = pneg %p26
      %p33 = scmp.eq.s32.totalorder %s17, 1
      %p34 = por %p32, %p33
      %p35 = scmp.ne.s32.totalorder %s27, %s30
      %p36 = scmp.eq.s32.totalorder %s17, 0
      %p37 = por %p35, %p36
      %p38 = scmp.ne.s32.totalorder %s27, %s30
      %p39 = scmp.eq.s32.totalorder %s22, 1
      %p40 = por %p38, %p39
      %p41 = scmp.ne.s32.totalorder %s30, %s31
      %p42 = scmp.eq.s32.totalorder %s22, 0
      %p43 = por %p41, %p42
      %p44 = scmp.ne.s32.totalorder %s30, %s31
      %p45 = scmp.eq.s32.totalorder %s23, 1
      %p46 = por %p44, %p45
      %p48 = scmp.ne.s32.totalorder %s31, %s47
      %p49 = scmp.eq.s32.totalorder %s23, 0
      %p50 = por %p48, %p49
      %s51 = ssub.s32 %s17, %s24
      %p52 = scmp.eq.s32.totalorder %s51, 0
      %s54 = sadd.s32 %s53, 1
      %s55 = scalar_select %p52, %s53, %s54
      %p58 = pneg %p52
      %p59 = scmp.eq.s32.totalorder %s17, 1
      %p60 = por %p58, %p59
      %p61 = scmp.ne.s32.totalorder %s53, %s56
      %p62 = scmp.eq.s32.totalorder %s17, 0
      %p63 = por %p61, %p62
      %p64 = scmp.ne.s32.totalorder %s53, %s56
      %p65 = scmp.eq.s32.totalorder %s22, 1
      %p66 = por %p64, %p65
      %p67 = scmp.ne.s32.totalorder %s56, %s57
      %p68 = scmp.eq.s32.totalorder %s22, 0
      %p69 = por %p67, %p68
      %p70 = scmp.ne.s32.totalorder %s56, %s57
      %p71 = scmp.eq.s32.totalorder %s23, 1
      %p72 = por %p70, %p71
      %p74 = scmp.ne.s32.totalorder %s57, %s73
      %p75 = scmp.eq.s32.totalorder %s23, 0
      %p76 = por %p74, %p75
      %s77 = ssub.s32 %s17, %s24
      %p78 = scmp.eq.s32.totalorder %s77, 0
      %s80 = sadd.s32 %s79, 1
      %s81 = scalar_select %p78, %s79, %s80
      %p84 = pneg %p78
      %p85 = scmp.eq.s32.totalorder %s17, 1
      %p86 = por %p84, %p85
      %p87 = scmp.ne.s32.totalorder %s79, %s82
      %p88 = scmp.eq.s32.totalorder %s17, 0
      %p89 = por %p87, %p88
      %p90 = scmp.ne.s32.totalorder %s79, %s82
      %p91 = scmp.eq.s32.totalorder %s22, 1
      %p92 = por %p90, %p91
      %p93 = scmp.ne.s32.totalorder %s82, %s83
      %p94 = scmp.eq.s32.totalorder %s22, 0
      %p95 = por %p93, %p94
      %p96 = scmp.ne.s32.totalorder %s82, %s83
      %p97 = scmp.eq.s32.totalorder %s23, 1
      %p98 = por %p96, %p97
      %p100 = scmp.ne.s32.totalorder %s83, %s99
      %p101 = scmp.eq.s32.totalorder %s23, 0
      %p102 = por %p100, %p101
      %s104 = sadd.s32 %s103, 1
      %p107 = scmp.eq.s32.totalorder %s17, 1
      %p108 = scmp.ne.s32.totalorder %s103, %s105
      %p109 = scmp.eq.s32.totalorder %s17, 0
      %p110 = por %p108, %p109
      %p111 = scmp.ne.s32.totalorder %s103, %s105
      %p112 = scmp.eq.s32.totalorder %s22, 1
      %p113 = por %p111, %p112
      %p114 = scmp.ne.s32.totalorder %s105, %s106
      %p115 = scmp.eq.s32.totalorder %s22, 0
      %p116 = por %p114, %p115
      %p117 = scmp.ne.s32.totalorder %s105, %s106
      %p118 = scmp.eq.s32.totalorder %s23, 1
      %p119 = por %p117, %p118
      %p121 = scmp.ne.s32.totalorder %s106, %s120
      %p122 = scmp.eq.s32.totalorder %s23, 0
      %p123 = por %p121, %p122
      %s125 = sadd.s32 %s124, 1
      %p128 = scmp.eq.s32.totalorder %s17, 1
      %p129 = scmp.ne.s32.totalorder %s124, %s126
      %p130 = scmp.eq.s32.totalorder %s17, 0
      %p131 = por %p129, %p130
      %p132 = scmp.ne.s32.totalorder %s124, %s126
      %p133 = scmp.eq.s32.totalorder %s22, 1
      %p134 = por %p132, %p133
      %p135 = scmp.ne.s32.totalorder %s126, %s127
      %p136 = scmp.eq.s32.totalorder %s22, 0
      %p137 = por %p135, %p136
      %p138 = scmp.ne.s32.totalorder %s126, %s127
      %p139 = scmp.eq.s32.totalorder %s23, 1
      %p140 = por %p138, %p139
      %p142 = scmp.ne.s32.totalorder %s127, %s141
      %p143 = scmp.eq.s32.totalorder %s23, 0
      %p144 = por %p142, %p143
      %s145 = ssub.s32 %s17, %s24
      %p146 = scmp.eq.s32.totalorder %s145, 0
      %s148 = sadd.s32 %s147, 1
      %s149 = scalar_select %p146, %s147, %s148
      %p152 = pneg %p146
      %p153 = scmp.eq.s32.totalorder %s17, 1
      %p154 = por %p152, %p153
      %p155 = scmp.ne.s32.totalorder %s147, %s150
      %p156 = scmp.eq.s32.totalorder %s17, 0
      %p157 = por %p155, %p156
      %p158 = scmp.ne.s32.totalorder %s147, %s150
      %p159 = scmp.eq.s32.totalorder %s22, 1
      %p160 = por %p158, %p159
      %p161 = scmp.ne.s32.totalorder %s150, %s151
      %p162 = scmp.eq.s32.totalorder %s22, 0
      %p163 = por %p161, %p162
      %p164 = scmp.ne.s32.totalorder %s150, %s151
      %p165 = scmp.eq.s32.totalorder %s23, 1
      %p166 = por %p164, %p165
      %p168 = scmp.ne.s32.totalorder %s151, %s167
      %p169 = scmp.eq.s32.totalorder %s23, 0
      %p170 = por %p168, %p169
      %p171 = scmp.le.s32.totalorder 1, %s17
      %p172 = scmp.lt.s32.totalorder %s17, 3
      %p173 = pnand %p171, %p172
      %p174 = pneg %p173
      // Predicated region
      $region9: #{tpu_custom_call.1} parent=5 // pred_check
        _
      $region10: #{tpu_custom_call.1} parent=5 // pred_check_branch
        %176 = sbr.rel (%p173) target = $region12
      $region11: #{tpu_custom_call.1} parent=5 // pred_region
        %s177 = ssub.s32 %s17, 1
        // Predicated region
        $region13: #{tpu_custom_call.1} parent=11 // pred_check
          %p178 = pneg %p116
        $region14: #{tpu_custom_call.1} parent=11 // pred_check_branch
          %180 = sbr.rel (%p178) target = $region16
        $region15: #{tpu_custom_call.1} parent=11 // pred_region
          _
        $region16: #{tpu_custom_call.1} parent=11 // pred_fallthru
          _
        // Predicated region
        $region17: #{tpu_custom_call.1} parent=11 // pred_check
          %p181 = pneg %p137
        $region18: #{tpu_custom_call.1} parent=11 // pred_check_branch
          %183 = sbr.rel (%p181) target = $region20
        $region19: #{tpu_custom_call.1} parent=11 // pred_region
          _
        $region20: #{tpu_custom_call.1} parent=11 // pred_fallthru
          _
      $region12: #{tpu_custom_call.1} parent=5 // pred_fallthru
        _
      %p184 = scmp.lt.s32.totalorder %s17, 2
      // Predicated region
      $region21: #{tpu_custom_call.1} parent=5 // pred_check
        %p185 = pneg %p184
      $region22: #{tpu_custom_call.1} parent=5 // pred_check_branch
        %187 = sbr.rel (%p185) target = $region24
      $region23: #{tpu_custom_call.1} parent=5 // pred_region
        // Predicated region
        $region25: #{tpu_custom_call.1} parent=23 // pred_check
          %p188 = pneg %p37
        $region26: #{tpu_custom_call.1} parent=23 // pred_check_branch
          %190 = sbr.rel (%p188) target = $region28
        $region27: #{tpu_custom_call.1} parent=23 // pred_region
          %s191 = sand.u32 %s27, 1
          %s192 = scalar_lea.sflag [#allocation3], %s191
          %s193 = sand.u32 %s27, 1
          %s194 = smul.addr %s193, 336
          %s195 = scalar_lea.vmem [#allocation2], %s194
          %197 = vsyncadd %s192, 0
          %s198 = smul.addr %s17, 42
          %s199 = smul.addr %s198, 8
          %s200 = scalar_lea.hbm %s0, %s199
          %s201 = sshll.u32 %s200, 4
          %s202 = int_to_ptr.hbm [resolvable:$true] %s201
          %s203 = sshll.u32 %s195, 4
          %s204 = int_to_ptr.vmem [resolvable:$true] %s203
          %209 = dma.hbm_to_vmem [thread:$0]  %s202, 5376, %s204, %s192, 256, 256, 16
        $region28: #{tpu_custom_call.1} parent=23 // pred_fallthru
          _
        // Predicated region
        $region29: #{tpu_custom_call.1} parent=23 // pred_check
          %p210 = pneg %p63
        $region30: #{tpu_custom_call.1} parent=23 // pred_check_branch
          %212 = sbr.rel (%p210) target = $region32
        $region31: #{tpu_custom_call.1} parent=23 // pred_region
          %s213 = sand.u32 %s53, 1
          %s214 = scalar_lea.sflag [#allocation5], %s213
          %s215 = sand.u32 %s53, 1
          %s216 = smul.addr %s215, 336
          %s217 = scalar_lea.vmem [#allocation4], %s216
          %219 = vsyncadd %s214, 0
          %s220 = smul.addr %s17, 42
          %s221 = smul.addr %s220, 8
          %s222 = scalar_lea.hbm %s1, %s221
          %s223 = sshll.u32 %s222, 4
          %s224 = int_to_ptr.hbm [resolvable:$true] %s223
          %s225 = sshll.u32 %s217, 4
          %s226 = int_to_ptr.vmem [resolvable:$true] %s225
          %231 = dma.hbm_to_vmem [thread:$0]  %s224, 5376, %s226, %s214, 256, 256, 16
        $region32: #{tpu_custom_call.1} parent=23 // pred_fallthru
          _
        // Predicated region
        $region33: #{tpu_custom_call.1} parent=23 // pred_check
          %p232 = pneg %p89
        $region34: #{tpu_custom_call.1} parent=23 // pred_check_branch
          %234 = sbr.rel (%p232) target = $region36
        $region35: #{tpu_custom_call.1} parent=23 // pred_region
          %s235 = smul.u32 21, %s17
          %p236 = scmp.lt.s32.totalorder %s235, 41
          %s237 = scalar_select %p236, %s235, 41
          %s238 = smul.addr %s237, 8
          %s239 = scalar_lea.vmem %s2, %s238
          %s240 = smul.u32 21, %s17
        $region36: #{tpu_custom_call.1} parent=23 // pred_fallthru
          _
      $region24: #{tpu_custom_call.1} parent=5 // pred_fallthru
        _
      %p241 = scmp.le.s32.totalorder 1, %s17
      %p242 = scmp.lt.s32.totalorder %s17, 3
      %p243 = pnand %p241, %p242
      %p244 = pneg %p243
      // Predicated region
      $region37: #{tpu_custom_call.1} parent=5 // pred_check
        _
      $region38: #{tpu_custom_call.1} parent=5 // pred_check_branch
        %246 = sbr.rel (%p243) target = $region40
      $region39: #{tpu_custom_call.1} parent=5 // pred_region
        %s247 = ssub.s32 %s17, 1
        %s248 = sand.u32 %s30, 1
        %s249 = scalar_lea.sflag [#allocation3], %s248
        %s250 = sand.u32 %s30, 1
        %s251 = smul.addr %s250, 336
        %s252 = scalar_lea.vmem [#allocation2], %s251
        // Predicated region
        $region41: #{tpu_custom_call.1} parent=39 // pred_check
          %p253 = pneg %p43
        $region42: #{tpu_custom_call.1} parent=39 // pred_check_branch
          %255 = sbr.rel (%p253) target = $region44
        $region43: #{tpu_custom_call.1} parent=39 // pred_region
          %257 = dma.done %s249, 5376
        $region44: #{tpu_custom_call.1} parent=39 // pred_fallthru
          _
        %s258 = sand.u32 %s56, 1
        %s259 = scalar_lea.sflag [#allocation5], %s258
        %s260 = sand.u32 %s56, 1
        %s261 = smul.addr %s260, 336
        %s262 = scalar_lea.vmem [#allocation4], %s261
        // Predicated region
        $region45: #{tpu_custom_call.1} parent=39 // pred_check
          %p263 = pneg %p69
        $region46: #{tpu_custom_call.1} parent=39 // pred_check_branch
          %265 = sbr.rel (%p263) target = $region48
        $region47: #{tpu_custom_call.1} parent=39 // pred_region
          %267 = dma.done %s259, 5376
        $region48: #{tpu_custom_call.1} parent=39 // pred_fallthru
          _
        %s268 = sand.u32 %s30, 1
        %s269 = scalar_lea.sflag [#allocation3], %s268
        %s270 = sand.u32 %s30, 1
        %s271 = smul.addr %s270, 336
        %s272 = scalar_lea.vmem [#allocation2], %s271
        %p273 = pneg %p43
        %p274 = pneg %p40
        %s275 = sand.u32 %s56, 1
        %s276 = scalar_lea.sflag [#allocation5], %s275
        %s277 = sand.u32 %s56, 1
        %s278 = smul.addr %s277, 336
        %s279 = scalar_lea.vmem [#allocation4], %s278
        %p280 = pneg %p69
        %p281 = pneg %p66
        %s282 = smul.u32 21, %s22
        %p283 = scmp.lt.s32.totalorder %s282, 41
        %s284 = scalar_select %p283, %s282, 41
        %s285 = smul.addr %s284, 8
        %s286 = scalar_lea.vmem %s2, %s285
        %p287 = pneg %p95
        %p288 = pneg %p92
        %p289 = pneg %p116
        %p290 = pneg %p113
        %p291 = pneg %p137
        %p292 = pneg %p134
        %p293 = pneg %p163
        %p294 = pneg %p160
        %s295 = smul.u32 21, %s22
        %p296 = scmp.lt.s32.totalorder %s295, 41
        %s297 = scalar_select %p296, %s295, 41
        %s298 = smul.addr %s297, 8
        %s299 = scalar_lea.vmem %s5, %s298
        %s300 = smul.u32 21, %s22
        %p301 = scmp.lt.s32.totalorder %s300, 41
        %s302 = scalar_select %p301, %s300, 41
        %s303 = smul.addr %s302, 8
        %s304 = scalar_lea.vmem %s2, %s303
        %s305 = smul.u32 21, %s22
        %s306 = smul.u32 21, %s22
        %p307 = scmp.lt.s32.totalorder %s306, 41
        %s308 = scalar_select %p307, %s306, 41
        %s309 = smul.addr %s308, 8
        %s310 = scalar_lea.vmem %s5, %s309
        %s311 = smul.u32 21, %s22
        %v312 = vld [vmem:[%s252] sm:$0xff]
        %v313 = vld [vmem:[%s252 + $0x8] sm:$0xff]
        %v314 = vld [vmem:[%s252 + $0x10] sm:$0xff]
        %v315 = vld [vmem:[%s252 + $0x18] sm:$0xff]
        %v316 = vld [vmem:[%s252 + $0x20] sm:$0xff]
        %v317 = vld [vmem:[%s252 + $0x28] sm:$0xff]
        %v318 = vld [vmem:[%s252 + $0x30] sm:$0xff]
        %v319 = vld [vmem:[%s252 + $0x38] sm:$0xff]
        %v320 = vld [vmem:[%s252 + $0x40] sm:$0xff]
        %v321 = vld [vmem:[%s252 + $0x48] sm:$0xff]
        %v322 = vld [vmem:[%s252 + $0x50] sm:$0xff]
        %v323 = vld [vmem:[%s252 + $0x58] sm:$0xff]
        %v324 = vld [vmem:[%s252 + $0x60] sm:$0xff]
        %v325 = vld [vmem:[%s252 + $0x68] sm:$0xff]
        %v326 = vld [vmem:[%s252 + $0x70] sm:$0xff]
        %v327 = vld [vmem:[%s252 + $0x78] sm:$0xff]
        %v328 = vld [vmem:[%s252 + $0x80] sm:$0xff]
        %v329 = vld [vmem:[%s252 + $0x88] sm:$0xff]
        %v330 = vld [vmem:[%s252 + $0x90] sm:$0xff]
        %v331 = vld [vmem:[%s252 + $0x98] sm:$0xff]
        %v332 = vld [vmem:[%s252 + $0xa0] sm:$0xff]
        %v333 = vld [vmem:[%s252 + $0xa8] sm:$0xff]
        %v334 = vld [vmem:[%s252 + $0xb0] sm:$0xff]
        %v335 = vld [vmem:[%s252 + $0xb8] sm:$0xff]
        %v336 = vld [vmem:[%s252 + $0xc0] sm:$0xff]
        %v337 = vld [vmem:[%s252 + $0xc8] sm:$0xff]
        %v338 = vld [vmem:[%s252 + $0xd0] sm:$0xff]
        %v339 = vld [vmem:[%s252 + $0xd8] sm:$0xff]
        %v340 = vld [vmem:[%s252 + $0xe0] sm:$0xff]
        %v341 = vld [vmem:[%s252 + $0xe8] sm:$0xff]
        %v342 = vld [vmem:[%s252 + $0xf0] sm:$0xff]
        %v343 = vld [vmem:[%s252 + $0xf8] sm:$0xff]
        %v344 = vld [vmem:[%s252 + $0x100] sm:$0xff]
        %v345 = vld [vmem:[%s252 + $0x108] sm:$0xff]
        %v346 = vld [vmem:[%s252 + $0x110] sm:$0xff]
        %v347 = vld [vmem:[%s252 + $0x118] sm:$0xff]
        %v348 = vld [vmem:[%s252 + $0x120] sm:$0xff]
        %v349 = vld [vmem:[%s252 + $0x128] sm:$0xff]
        %v350 = vld [vmem:[%s252 + $0x130] sm:$0xff]
        %v351 = vld [vmem:[%s252 + $0x138] sm:$0xff]
        %v352 = vld [vmem:[%s252 + $0x140] sm:$0xff]
        %v353 = vld [vmem:[%s252 + $0x148] sm:$0xff]
        %v354 = vld [vmem:[%s262] sm:$0xff]
        %v355 = vld [vmem:[%s262 + $0x8] sm:$0xff]
        %v356 = vld [vmem:[%s262 + $0x10] sm:$0xff]
        %v357 = vld [vmem:[%s262 + $0x18] sm:$0xff]
        %v358 = vld [vmem:[%s262 + $0x20] sm:$0xff]
        %v359 = vld [vmem:[%s262 + $0x28] sm:$0xff]
        %v360 = vld [vmem:[%s262 + $0x30] sm:$0xff]
        %v361 = vld [vmem:[%s262 + $0x38] sm:$0xff]
        %v362 = vld [vmem:[%s262 + $0x40] sm:$0xff]
        %v363 = vld [vmem:[%s262 + $0x48] sm:$0xff]
        %v364 = vld [vmem:[%s262 + $0x50] sm:$0xff]
        %v365 = vld [vmem:[%s262 + $0x58] sm:$0xff]
        %v366 = vld [vmem:[%s262 + $0x60] sm:$0xff]
        %v367 = vld [vmem:[%s262 + $0x68] sm:$0xff]
        %v368 = vld [vmem:[%s262 + $0x70] sm:$0xff]
        %v369 = vld [vmem:[%s262 + $0x78] sm:$0xff]
        %v370 = vld [vmem:[%s262 + $0x80] sm:$0xff]
        %v371 = vld [vmem:[%s262 + $0x88] sm:$0xff]
        %v372 = vld [vmem:[%s262 + $0x90] sm:$0xff]
        %v373 = vld [vmem:[%s262 + $0x98] sm:$0xff]
        %v374 = vld [vmem:[%s262 + $0xa0] sm:$0xff]
        %v375 = vld [vmem:[%s262 + $0xa8] sm:$0xff]
        %v376 = vld [vmem:[%s262 + $0xb0] sm:$0xff]
        %v377 = vld [vmem:[%s262 + $0xb8] sm:$0xff]
        %v378 = vld [vmem:[%s262 + $0xc0] sm:$0xff]
        %v379 = vld [vmem:[%s262 + $0xc8] sm:$0xff]
        %v380 = vld [vmem:[%s262 + $0xd0] sm:$0xff]
        %v381 = vld [vmem:[%s262 + $0xd8] sm:$0xff]
        %v382 = vld [vmem:[%s262 + $0xe0] sm:$0xff]
        %v383 = vld [vmem:[%s262 + $0xe8] sm:$0xff]
        %v384 = vld [vmem:[%s262 + $0xf0] sm:$0xff]
        %v385 = vld [vmem:[%s262 + $0xf8] sm:$0xff]
        %v386 = vld [vmem:[%s262 + $0x100] sm:$0xff]
        %v387 = vld [vmem:[%s262 + $0x108] sm:$0xff]
        %v388 = vld [vmem:[%s262 + $0x110] sm:$0xff]
        %v389 = vld [vmem:[%s262 + $0x118] sm:$0xff]
        %v390 = vld [vmem:[%s262 + $0x120] sm:$0xff]
        %v391 = vld [vmem:[%s262 + $0x128] sm:$0xff]
        %v392 = vld [vmem:[%s262 + $0x130] sm:$0xff]
        %v393 = vld [vmem:[%s262 + $0x138] sm:$0xff]
        %v394 = vld [vmem:[%s262 + $0x140] sm:$0xff]
        %v395 = vld [vmem:[%s262 + $0x148] sm:$0xff]
        %v396 = vld [vmem:[%s4] sm:$0xf]
        %vm397 = vcmask 326656
        %v398 = vsel %vm397, %v313, 0.0
        %v399 = vadd.f32 %v312, %v398
        %400 = vadd.xlane.f32.xlu0 %v399
        %v401 = vpop.xlane.xlu0 %400
        %v402 = vsel %vm397, %v315, 0.0
        %v403 = vadd.f32 %v314, %v402
        %404 = vadd.xlane.f32.xlu0 %v403
        %v405 = vpop.xlane.xlu0 %404
        %v406 = vsel %vm397, %v317, 0.0
        %v407 = vadd.f32 %v316, %v406
        %408 = vadd.xlane.f32.xlu0 %v407
        %v409 = vpop.xlane.xlu0 %408
        %v410 = vsel %vm397, %v319, 0.0
        %v411 = vadd.f32 %v318, %v410
        %412 = vadd.xlane.f32.xlu0 %v411
        %v413 = vpop.xlane.xlu0 %412
        %v414 = vsel %vm397, %v321, 0.0
        %v415 = vadd.f32 %v320, %v414
        %416 = vadd.xlane.f32.xlu0 %v415
        %v417 = vpop.xlane.xlu0 %416
        %v418 = vsel %vm397, %v323, 0.0
        %v419 = vadd.f32 %v322, %v418
        %420 = vadd.xlane.f32.xlu0 %v419
        %v421 = vpop.xlane.xlu0 %420
        %v422 = vsel %vm397, %v325, 0.0
        %v423 = vadd.f32 %v324, %v422
        %424 = vadd.xlane.f32.xlu0 %v423
        %v425 = vpop.xlane.xlu0 %424
        %v426 = vsel %vm397, %v327, 0.0
        %v427 = vadd.f32 %v326, %v426
        %428 = vadd.xlane.f32.xlu0 %v427
        %v429 = vpop.xlane.xlu0 %428
        %v430 = vsel %vm397, %v329, 0.0
        %v431 = vadd.f32 %v328, %v430
        %432 = vadd.xlane.f32.xlu0 %v431
        %v433 = vpop.xlane.xlu0 %432
        %v434 = vsel %vm397, %v331, 0.0
        %v435 = vadd.f32 %v330, %v434
        %436 = vadd.xlane.f32.xlu0 %v435
        %v437 = vpop.xlane.xlu0 %436
        %v438 = vsel %vm397, %v333, 0.0
        %v439 = vadd.f32 %v332, %v438
        %440 = vadd.xlane.f32.xlu0 %v439
        %v441 = vpop.xlane.xlu0 %440
        %v442 = vsel %vm397, %v335, 0.0
        %v443 = vadd.f32 %v334, %v442
        %444 = vadd.xlane.f32.xlu0 %v443
        %v445 = vpop.xlane.xlu0 %444
        %v446 = vsel %vm397, %v337, 0.0
        %v447 = vadd.f32 %v336, %v446
        %448 = vadd.xlane.f32.xlu0 %v447
        %v449 = vpop.xlane.xlu0 %448
        %v450 = vsel %vm397, %v339, 0.0
        %v451 = vadd.f32 %v338, %v450
        %452 = vadd.xlane.f32.xlu0 %v451
        %v453 = vpop.xlane.xlu0 %452
        %v454 = vsel %vm397, %v341, 0.0
        %v455 = vadd.f32 %v340, %v454
        %456 = vadd.xlane.f32.xlu0 %v455
        %v457 = vpop.xlane.xlu0 %456
        %v458 = vsel %vm397, %v343, 0.0
        %v459 = vadd.f32 %v342, %v458
        %460 = vadd.xlane.f32.xlu0 %v459
        %v461 = vpop.xlane.xlu0 %460
        %v462 = vsel %vm397, %v345, 0.0
        %v463 = vadd.f32 %v344, %v462
        %464 = vadd.xlane.f32.xlu0 %v463
        %v465 = vpop.xlane.xlu0 %464
        %v466 = vsel %vm397, %v347, 0.0
        %v467 = vadd.f32 %v346, %v466
        %468 = vadd.xlane.f32.xlu0 %v467
        %v469 = vpop.xlane.xlu0 %468
        %v470 = vsel %vm397, %v349, 0.0
        %v471 = vadd.f32 %v348, %v470
        %472 = vadd.xlane.f32.xlu0 %v471
        %v473 = vpop.xlane.xlu0 %472
        %v474 = vsel %vm397, %v351, 0.0
        %v475 = vadd.f32 %v350, %v474
        %476 = vadd.xlane.f32.xlu0 %v475
        %v477 = vpop.xlane.xlu0 %476
        %v478 = vsel %vm397, %v353, 0.0
        %v479 = vadd.f32 %v352, %v478
        %480 = vadd.xlane.f32.xlu0 %v479
        %v481 = vpop.xlane.xlu0 %480
        %v482 = vsel %vm397, %v355, 0.0
        %v483 = vadd.f32 %v354, %v482
        %484 = vadd.xlane.f32.xlu0 %v483
        %v485 = vpop.xlane.xlu0 %484
        %v486 = vsel %vm397, %v357, 0.0
        %v487 = vadd.f32 %v356, %v486
        %488 = vadd.xlane.f32.xlu0 %v487
        %v489 = vpop.xlane.xlu0 %488
        %v490 = vsel %vm397, %v359, 0.0
        %v491 = vadd.f32 %v358, %v490
        %492 = vadd.xlane.f32.xlu0 %v491
        %v493 = vpop.xlane.xlu0 %492
        %v494 = vsel %vm397, %v361, 0.0
        %v495 = vadd.f32 %v360, %v494
        %496 = vadd.xlane.f32.xlu0 %v495
        %v497 = vpop.xlane.xlu0 %496
        %v498 = vsel %vm397, %v363, 0.0
        %v499 = vadd.f32 %v362, %v498
        %500 = vadd.xlane.f32.xlu0 %v499
        %v501 = vpop.xlane.xlu0 %500
        %v502 = vsel %vm397, %v365, 0.0
        %v503 = vadd.f32 %v364, %v502
        %504 = vadd.xlane.f32.xlu0 %v503
        %v505 = vpop.xlane.xlu0 %504
        %v506 = vsel %vm397, %v367, 0.0
        %v507 = vadd.f32 %v366, %v506
        %508 = vadd.xlane.f32.xlu0 %v507
        %v509 = vpop.xlane.xlu0 %508
        %v510 = vsel %vm397, %v369, 0.0
        %v511 = vadd.f32 %v368, %v510
        %512 = vadd.xlane.f32.xlu0 %v511
        %v513 = vpop.xlane.xlu0 %512
        %v514 = vsel %vm397, %v371, 0.0
        %v515 = vadd.f32 %v370, %v514
        %516 = vadd.xlane.f32.xlu0 %v515
        %v517 = vpop.xlane.xlu0 %516
        %v518 = vsel %vm397, %v373, 0.0
        %v519 = vadd.f32 %v372, %v518
        %520 = vadd.xlane.f32.xlu0 %v519
        %v521 = vpop.xlane.xlu0 %520
        %v522 = vsel %vm397, %v375, 0.0
        %v523 = vadd.f32 %v374, %v522
        %524 = vadd.xlane.f32.xlu0 %v523
        %v525 = vpop.xlane.xlu0 %524
        %v526 = vsel %vm397, %v377, 0.0
        %v527 = vadd.f32 %v376, %v526
        %528 = vadd.xlane.f32.xlu0 %v527
        %v529 = vpop.xlane.xlu0 %528
        %v530 = vsel %vm397, %v379, 0.0
        %v531 = vadd.f32 %v378, %v530
        %532 = vadd.xlane.f32.xlu0 %v531
        %v533 = vpop.xlane.xlu0 %532
        %v534 = vsel %vm397, %v381, 0.0
        %v535 = vadd.f32 %v380, %v534
        %536 = vadd.xlane.f32.xlu0 %v535
        %v537 = vpop.xlane.xlu0 %536
        %v538 = vsel %vm397, %v383, 0.0
        %v539 = vadd.f32 %v382, %v538
        %540 = vadd.xlane.f32.xlu0 %v539
        %v541 = vpop.xlane.xlu0 %540
        %v542 = vsel %vm397, %v385, 0.0
        %v543 = vadd.f32 %v384, %v542
        %544 = vadd.xlane.f32.xlu0 %v543
        %v545 = vpop.xlane.xlu0 %544
        %v546 = vsel %vm397, %v387, 0.0
        %v547 = vadd.f32 %v386, %v546
        %548 = vadd.xlane.f32.xlu0 %v547
        %v549 = vpop.xlane.xlu0 %548
        %v550 = vsel %vm397, %v389, 0.0
        %v551 = vadd.f32 %v388, %v550
        %552 = vadd.xlane.f32.xlu0 %v551
        %v553 = vpop.xlane.xlu0 %552
        %v554 = vsel %vm397, %v391, 0.0
        %v555 = vadd.f32 %v390, %v554
        %556 = vadd.xlane.f32.xlu0 %v555
        %v557 = vpop.xlane.xlu0 %556
        %v558 = vsel %vm397, %v393, 0.0
        %v559 = vadd.f32 %v392, %v558
        %560 = vadd.xlane.f32.xlu0 %v559
        %v561 = vpop.xlane.xlu0 %560
        %v562 = vsel %vm397, %v395, 0.0
        %v563 = vadd.f32 %v394, %v562
        %564 = vadd.xlane.f32.xlu0 %v563
        %v565 = vpop.xlane.xlu0 %564
        %v566 = vperm.slane %v396, 0
        %v567 = vmul.f32 %v401, %v566
        %v568 = vmul.f32 %v405, %v566
        %v569 = vmul.f32 %v409, %v566
        %v570 = vmul.f32 %v413, %v566
        %v571 = vmul.f32 %v417, %v566
        %v572 = vmul.f32 %v421, %v566
        %v573 = vmul.f32 %v425, %v566
        %v574 = vmul.f32 %v429, %v566
        %v575 = vmul.f32 %v433, %v566
        %v576 = vmul.f32 %v437, %v566
        %v577 = vmul.f32 %v441, %v566
        %v578 = vmul.f32 %v445, %v566
        %v579 = vmul.f32 %v449, %v566
        %v580 = vmul.f32 %v453, %v566
        %v581 = vmul.f32 %v457, %v566
        %v582 = vmul.f32 %v461, %v566
        %v583 = vmul.f32 %v465, %v566
        %v584 = vmul.f32 %v469, %v566
        %v585 = vmul.f32 %v473, %v566
        %v586 = vmul.f32 %v477, %v566
        %v587 = vmul.f32 %v481, %v566
        %v588 = vperm.slane %v396, 1
        %v589 = vmul.f32 %v485, %v588
        %v590 = vmul.f32 %v489, %v588
        %v591 = vmul.f32 %v493, %v588
        %v592 = vmul.f32 %v497, %v588
        %v593 = vmul.f32 %v501, %v588
        %v594 = vmul.f32 %v505, %v588
        %v595 = vmul.f32 %v509, %v588
        %v596 = vmul.f32 %v513, %v588
        %v597 = vmul.f32 %v517, %v588
        %v598 = vmul.f32 %v521, %v588
        %v599 = vmul.f32 %v525, %v588
        %v600 = vmul.f32 %v529, %v588
        %v601 = vmul.f32 %v533, %v588
        %v602 = vmul.f32 %v537, %v588
        %v603 = vmul.f32 %v541, %v588
        %v604 = vmul.f32 %v545, %v588
        %v605 = vmul.f32 %v549, %v588
        %v606 = vmul.f32 %v553, %v588
        %v607 = vmul.f32 %v557, %v588
        %v608 = vmul.f32 %v561, %v588
        %v609 = vmul.f32 %v565, %v588
        %v610 = vadd.f32 %v567, %v589
        %v611 = vadd.f32 %v568, %v590
        %v612 = vadd.f32 %v569, %v591
        %v613 = vadd.f32 %v570, %v592
        %v614 = vadd.f32 %v571, %v593
        %v615 = vadd.f32 %v572, %v594
        %v616 = vadd.f32 %v573, %v595
        %v617 = vadd.f32 %v574, %v596
        %v618 = vadd.f32 %v575, %v597
        %v619 = vadd.f32 %v576, %v598
        %v620 = vadd.f32 %v577, %v599
        %v621 = vadd.f32 %v578, %v600
        %v622 = vadd.f32 %v579, %v601
        %v623 = vadd.f32 %v580, %v602
        %v624 = vadd.f32 %v581, %v603
        %v625 = vadd.f32 %v582, %v604
        %v626 = vadd.f32 %v583, %v605
        %v627 = vadd.f32 %v584, %v606
        %v628 = vadd.f32 %v585, %v607
        %v629 = vadd.f32 %v586, %v608
        %v630 = vadd.f32 %v587, %v609
        %v631 = vperm.slane %v396, 2
        %v632 = vadd.f32 %v610, %v631
        %v633 = vadd.f32 %v611, %v631
        %v634 = vadd.f32 %v612, %v631
        %v635 = vadd.f32 %v613, %v631
        %v636 = vadd.f32 %v614, %v631
        %v637 = vadd.f32 %v615, %v631
        %v638 = vadd.f32 %v616, %v631
        %v639 = vadd.f32 %v617, %v631
        %v640 = vadd.f32 %v618, %v631
        %v641 = vadd.f32 %v619, %v631
        %v642 = vadd.f32 %v620, %v631
        %v643 = vadd.f32 %v621, %v631
        %v644 = vadd.f32 %v622, %v631
        %v645 = vadd.f32 %v623, %v631
        %v646 = vadd.f32 %v624, %v631
        %v647 = vadd.f32 %v625, %v631
        %v648 = vadd.f32 %v626, %v631
        %v649 = vadd.f32 %v627, %v631
        %v650 = vadd.f32 %v628, %v631
        %v651 = vadd.f32 %v629, %v631
        %v652 = vadd.f32 %v630, %v631
        %v653 = vld [vmem:[%s3] sm:$0xff]
        %v654 = vld [vmem:[%s3 + $0x8] sm:$0xff]
        %v655 = vld [vmem:[%s3 + $0x10] sm:$0xff]
        %v656 = vld [vmem:[%s3 + $0x18] sm:$0xff]
        %v657 = vld [vmem:[%s3 + $0x20] sm:$0xff]
        %v658 = vld [vmem:[%s3 + $0x28] sm:$0xff]
        %v659 = vld [vmem:[%s3 + $0x30] sm:$0xff]
        %v660 = vld [vmem:[%s3 + $0x38] sm:$0xff]
        %v661 = vld [vmem:[%s3 + $0x40] sm:$0xff]
        %v662 = vld [vmem:[%s3 + $0x48] sm:$0xff]
        %v663 = vld [vmem:[%s3 + $0x50] sm:$0xff]
        %v664 = vld [vmem:[%s3 + $0x58] sm:$0xff]
        %v665 = vld [vmem:[%s304] sm:$0xff]
        %v666 = vld [vmem:[%s304 + $0x8] sm:$0xff]
        %v667 = vld [vmem:[%s304 + $0x10] sm:$0xff]
        %v668 = vld [vmem:[%s304 + $0x18] sm:$0xff]
        %v669 = vld [vmem:[%s304 + $0x20] sm:$0xff]
        %v670 = vld [vmem:[%s304 + $0x28] sm:$0xff]
        %v671 = vld [vmem:[%s304 + $0x30] sm:$0xff]
        %v672 = vld [vmem:[%s304 + $0x38] sm:$0xff]
        %v673 = vld [vmem:[%s304 + $0x40] sm:$0xff]
        %v674 = vld [vmem:[%s304 + $0x48] sm:$0xff]
        %v675 = vld [vmem:[%s304 + $0x50] sm:$0xff]
        %v676 = vld [vmem:[%s304 + $0x58] sm:$0xff]
        %v677 = vld [vmem:[%s304 + $0x60] sm:$0xff]
        %v678 = vld [vmem:[%s304 + $0x68] sm:$0xff]
        %v679 = vld [vmem:[%s304 + $0x70] sm:$0xff]
        %v680 = vld [vmem:[%s304 + $0x78] sm:$0xff]
        %v681 = vld [vmem:[%s304 + $0x80] sm:$0xff]
        %v682 = vld [vmem:[%s304 + $0x88] sm:$0xff]
        %v683 = vld [vmem:[%s304 + $0x90] sm:$0xff]
        %v684 = vld [vmem:[%s304 + $0x98] sm:$0xff]
        %v685 = vld [vmem:[%s304 + $0xa0] sm:$0xff]
        %vm686 = vcmask 261120
        %v688 = vsel %vm686, %v665, 0
        %v691 = vsel %vm686, %v666, 0
        %v694 = vsel %vm686, %v667, 0
        %v697 = vsel %vm686, %v668, 0
        %v700 = vsel %vm686, %v669, 0
        %v703 = vsel %vm686, %v670, 0
        %v706 = vsel %vm686, %v671, 0
        %v709 = vsel %vm686, %v672, 0
        %v712 = vsel %vm686, %v673, 0
        %v715 = vsel %vm686, %v674, 0
        %v718 = vsel %vm686, %v675, 0
        %v721 = vsel %vm686, %v676, 0
        %v724 = vsel %vm686, %v677, 0
        %v727 = vsel %vm686, %v678, 0
        %v730 = vsel %vm686, %v679, 0
        %v733 = vsel %vm686, %v680, 0
        %v736 = vsel %vm686, %v681, 0
        %v739 = vsel %vm686, %v682, 0
        %v742 = vsel %vm686, %v683, 0
        %v745 = vsel %vm686, %v684, 0
        %v748 = vsel %vm686, %v685, 0
        %750 = vmatpush.msra.mxu0 0.0
        %751 = vmatpush.msra.mxu0 0.0
        %752 = vmatpush.msra.mxu0 0.0
        %753 = vmatpush.msra.mxu0 0.0
        %754 = vmatpush.msra.mxu0 0.0
        %755 = vmatpush.msra.mxu0 0.0
        %756 = vmatpush.msra.mxu0 0.0
        %757 = vmatpush.msra.mxu0 0.0
        %758 = vmatpush.msra.mxu0 0.0
        %759 = vmatpush.msra.mxu0 0.0
        %760 = vmatpush.msra.mxu0 0.0
        %761 = vmatpush.msra.mxu0 0.0
        %762 = vmatpush.msra.mxu0 %v662
        %763 = vmatpush.msra.mxu0 %v659
        %764 = vmatpush.msra.mxu0 %v656
        %765 = vmatpush.msra.mxu0 %v653
        %766 = vmatmul.f32.gmra.mxu0 %v688
        %v767 = vpop.f32.mrf.mxu0
        %v768 = vadd.f32 0.0, %v767
        %769 = vmatmul.f32.gmra.mxu0 %v691
        %v770 = vpop.f32.mrf.mxu0
        %v771 = vadd.f32 0.0, %v770
        %772 = vmatmul.f32.gmra.mxu0 %v694
        %v773 = vpop.f32.mrf.mxu0
        %v774 = vadd.f32 0.0, %v773
        %775 = vmatmul.f32.gmra.mxu0 %v697
        %v776 = vpop.f32.mrf.mxu0
        %v777 = vadd.f32 0.0, %v776
        %778 = vmatmul.f32.gmra.mxu0 %v700
        %v779 = vpop.f32.mrf.mxu0
        %v780 = vadd.f32 0.0, %v779
        %781 = vmatmul.f32.gmra.mxu0 %v703
        %v782 = vpop.f32.mrf.mxu0
        %v783 = vadd.f32 0.0, %v782
        %784 = vmatmul.f32.gmra.mxu0 %v706
        %v785 = vpop.f32.mrf.mxu0
        %v786 = vadd.f32 0.0, %v785
        %787 = vmatmul.f32.gmra.mxu0 %v709
        %v788 = vpop.f32.mrf.mxu0
        %v789 = vadd.f32 0.0, %v788
        %790 = vmatmul.f32.gmra.mxu0 %v712
        %v791 = vpop.f32.mrf.mxu0
        %v792 = vadd.f32 0.0, %v791
        %793 = vmatmul.f32.gmra.mxu0 %v715
        %v794 = vpop.f32.mrf.mxu0
        %v795 = vadd.f32 0.0, %v794
        %796 = vmatmul.f32.gmra.mxu0 %v718
        %v797 = vpop.f32.mrf.mxu0
        %v798 = vadd.f32 0.0, %v797
        %799 = vmatmul.f32.gmra.mxu0 %v721
        %v800 = vpop.f32.mrf.mxu0
        %v801 = vadd.f32 0.0, %v800
        %802 = vmatmul.f32.gmra.mxu0 %v724
        %v803 = vpop.f32.mrf.mxu0
        %v804 = vadd.f32 0.0, %v803
        %805 = vmatmul.f32.gmra.mxu0 %v727
        %v806 = vpop.f32.mrf.mxu0
        %v807 = vadd.f32 0.0, %v806
        %808 = vmatmul.f32.gmra.mxu0 %v730
        %v809 = vpop.f32.mrf.mxu0
        %v810 = vadd.f32 0.0, %v809
        %811 = vmatmul.f32.gmra.mxu0 %v733
        %v812 = vpop.f32.mrf.mxu0
        %v813 = vadd.f32 0.0, %v812
        %814 = vmatmul.f32.gmra.mxu0 %v736
        %v815 = vpop.f32.mrf.mxu0
        %v816 = vadd.f32 0.0, %v815
        %817 = vmatmul.f32.gmra.mxu0 %v739
        %v818 = vpop.f32.mrf.mxu0
        %v819 = vadd.f32 0.0, %v818
        %820 = vmatmul.f32.gmra.mxu0 %v742
        %v821 = vpop.f32.mrf.mxu0
        %v822 = vadd.f32 0.0, %v821
        %823 = vmatmul.f32.gmra.mxu0 %v745
        %v824 = vpop.f32.mrf.mxu0
        %v825 = vadd.f32 0.0, %v824
        %826 = vmatmul.f32.gmra.mxu0 %v748
        %v827 = vpop.f32.mrf.mxu0
        %v828 = vadd.f32 0.0, %v827
        %829 = vdwg.mxu0
        %830 = vmatpush.msra.mxu0 0.0
        %831 = vmatpush.msra.mxu0 0.0
        %832 = vmatpush.msra.mxu0 0.0
        %833 = vmatpush.msra.mxu0 0.0
        %834 = vmatpush.msra.mxu0 0.0
        %835 = vmatpush.msra.mxu0 0.0
        %836 = vmatpush.msra.mxu0 0.0
        %837 = vmatpush.msra.mxu0 0.0
        %838 = vmatpush.msra.mxu0 0.0
        %839 = vmatpush.msra.mxu0 0.0
        %840 = vmatpush.msra.mxu0 0.0
        %841 = vmatpush.msra.mxu0 0.0
        %842 = vmatpush.msra.mxu0 %v663
        %843 = vmatpush.msra.mxu0 %v660
        %844 = vmatpush.msra.mxu0 %v657
        %845 = vmatpush.msra.mxu0 %v654
        %846 = vmatmul.f32.gmra.mxu0 %v688
        %v847 = vpop.f32.mrf.mxu0
        %v848 = vadd.f32 0.0, %v847
        %849 = vmatmul.f32.gmra.mxu0 %v691
        %v850 = vpop.f32.mrf.mxu0
        %v851 = vadd.f32 0.0, %v850
        %852 = vmatmul.f32.gmra.mxu0 %v694
        %v853 = vpop.f32.mrf.mxu0
        %v854 = vadd.f32 0.0, %v853
        %855 = vmatmul.f32.gmra.mxu0 %v697
        %v856 = vpop.f32.mrf.mxu0
        %v857 = vadd.f32 0.0, %v856
        %858 = vmatmul.f32.gmra.mxu0 %v700
        %v859 = vpop.f32.mrf.mxu0
        %v860 = vadd.f32 0.0, %v859
        %861 = vmatmul.f32.gmra.mxu0 %v703
        %v862 = vpop.f32.mrf.mxu0
        %v863 = vadd.f32 0.0, %v862
        %864 = vmatmul.f32.gmra.mxu0 %v706
        %v865 = vpop.f32.mrf.mxu0
        %v866 = vadd.f32 0.0, %v865
        %867 = vmatmul.f32.gmra.mxu0 %v709
        %v868 = vpop.f32.mrf.mxu0
        %v869 = vadd.f32 0.0, %v868
        %870 = vmatmul.f32.gmra.mxu0 %v712
        %v871 = vpop.f32.mrf.mxu0
        %v872 = vadd.f32 0.0, %v871
        %873 = vmatmul.f32.gmra.mxu0 %v715
        %v874 = vpop.f32.mrf.mxu0
        %v875 = vadd.f32 0.0, %v874
        %876 = vmatmul.f32.gmra.mxu0 %v718
        %v877 = vpop.f32.mrf.mxu0
        %v878 = vadd.f32 0.0, %v877
        %879 = vmatmul.f32.gmra.mxu0 %v721
        %v880 = vpop.f32.mrf.mxu0
        %v881 = vadd.f32 0.0, %v880
        %882 = vmatmul.f32.gmra.mxu0 %v724
        %v883 = vpop.f32.mrf.mxu0
        %v884 = vadd.f32 0.0, %v883
        %885 = vmatmul.f32.gmra.mxu0 %v727
        %v886 = vpop.f32.mrf.mxu0
        %v887 = vadd.f32 0.0, %v886
        %888 = vmatmul.f32.gmra.mxu0 %v730
        %v889 = vpop.f32.mrf.mxu0
        %v890 = vadd.f32 0.0, %v889
        %891 = vmatmul.f32.gmra.mxu0 %v733
        %v892 = vpop.f32.mrf.mxu0
        %v893 = vadd.f32 0.0, %v892
        %894 = vmatmul.f32.gmra.mxu0 %v736
        %v895 = vpop.f32.mrf.mxu0
        %v896 = vadd.f32 0.0, %v895
        %897 = vmatmul.f32.gmra.mxu0 %v739
        %v898 = vpop.f32.mrf.mxu0
        %v899 = vadd.f32 0.0, %v898
        %900 = vmatmul.f32.gmra.mxu0 %v742
        %v901 = vpop.f32.mrf.mxu0
        %v902 = vadd.f32 0.0, %v901
        %903 = vmatmul.f32.gmra.mxu0 %v745
        %v904 = vpop.f32.mrf.mxu0
        %v905 = vadd.f32 0.0, %v904
        %906 = vmatmul.f32.gmra.mxu0 %v748
        %v907 = vpop.f32.mrf.mxu0
        %v908 = vadd.f32 0.0, %v907
        %909 = vdwg.mxu0
        %910 = vmatpush.msra.mxu0 0.0
        %911 = vmatpush.msra.mxu0 0.0
        %912 = vmatpush.msra.mxu0 0.0
        %913 = vmatpush.msra.mxu0 0.0
        %914 = vmatpush.msra.mxu0 0.0
        %915 = vmatpush.msra.mxu0 0.0
        %916 = vmatpush.msra.mxu0 0.0
        %917 = vmatpush.msra.mxu0 0.0
        %918 = vmatpush.msra.mxu0 0.0
        %919 = vmatpush.msra.mxu0 0.0
        %920 = vmatpush.msra.mxu0 0.0
        %921 = vmatpush.msra.mxu0 0.0
        %922 = vmatpush.msra.mxu0 %v664
        %923 = vmatpush.msra.mxu0 %v661
        %924 = vmatpush.msra.mxu0 %v658
        %925 = vmatpush.msra.mxu0 %v655
        %926 = vmatmul.f32.gmra.mxu0 %v688
        %v927 = vpop.f32.mrf.mxu0
        %v928 = vadd.f32 0.0, %v927
        %929 = vmatmul.f32.gmra.mxu0 %v691
        %v930 = vpop.f32.mrf.mxu0
        %v931 = vadd.f32 0.0, %v930
        %932 = vmatmul.f32.gmra.mxu0 %v694
        %v933 = vpop.f32.mrf.mxu0
        %v934 = vadd.f32 0.0, %v933
        %935 = vmatmul.f32.gmra.mxu0 %v697
        %v936 = vpop.f32.mrf.mxu0
        %v937 = vadd.f32 0.0, %v936
        %938 = vmatmul.f32.gmra.mxu0 %v700
        %v939 = vpop.f32.mrf.mxu0
        %v940 = vadd.f32 0.0, %v939
        %941 = vmatmul.f32.gmra.mxu0 %v703
        %v942 = vpop.f32.mrf.mxu0
        %v943 = vadd.f32 0.0, %v942
        %944 = vmatmul.f32.gmra.mxu0 %v706
        %v945 = vpop.f32.mrf.mxu0
        %v946 = vadd.f32 0.0, %v945
        %947 = vmatmul.f32.gmra.mxu0 %v709
        %v948 = vpop.f32.mrf.mxu0
        %v949 = vadd.f32 0.0, %v948
        %950 = vmatmul.f32.gmra.mxu0 %v712
        %v951 = vpop.f32.mrf.mxu0
        %v952 = vadd.f32 0.0, %v951
        %953 = vmatmul.f32.gmra.mxu0 %v715
        %v954 = vpop.f32.mrf.mxu0
        %v955 = vadd.f32 0.0, %v954
        %956 = vmatmul.f32.gmra.mxu0 %v718
        %v957 = vpop.f32.mrf.mxu0
        %v958 = vadd.f32 0.0, %v957
        %959 = vmatmul.f32.gmra.mxu0 %v721
        %v960 = vpop.f32.mrf.mxu0
        %v961 = vadd.f32 0.0, %v960
        %962 = vmatmul.f32.gmra.mxu0 %v724
        %v963 = vpop.f32.mrf.mxu0
        %v964 = vadd.f32 0.0, %v963
        %965 = vmatmul.f32.gmra.mxu0 %v727
        %v966 = vpop.f32.mrf.mxu0
        %v967 = vadd.f32 0.0, %v966
        %968 = vmatmul.f32.gmra.mxu0 %v730
        %v969 = vpop.f32.mrf.mxu0
        %v970 = vadd.f32 0.0, %v969
        %971 = vmatmul.f32.gmra.mxu0 %v733
        %v972 = vpop.f32.mrf.mxu0
        %v973 = vadd.f32 0.0, %v972
        %974 = vmatmul.f32.gmra.mxu0 %v736
        %v975 = vpop.f32.mrf.mxu0
        %v976 = vadd.f32 0.0, %v975
        %977 = vmatmul.f32.gmra.mxu0 %v739
        %v978 = vpop.f32.mrf.mxu0
        %v979 = vadd.f32 0.0, %v978
        %980 = vmatmul.f32.gmra.mxu0 %v742
        %v981 = vpop.f32.mrf.mxu0
        %v982 = vadd.f32 0.0, %v981
        %983 = vmatmul.f32.gmra.mxu0 %v745
        %v984 = vpop.f32.mrf.mxu0
        %v985 = vadd.f32 0.0, %v984
        %986 = vmatmul.f32.gmra.mxu0 %v748
        %v987 = vpop.f32.mrf.mxu0
        %v988 = vadd.f32 0.0, %v987
        %989 = vdwg.mxu0
        %v990 = vperm.slane %v396, 3
        %992 = vrot.lane.b32.xlu0 %v990, 64
        %v993 = vpop.permute.xlu0 %992
        %v995 = vadd.f32 %v848, %v993
        %v996 = vadd.f32 %v928, %v993
        %v997 = vadd.f32 %v851, %v993
        %v998 = vadd.f32 %v931, %v993
        %v999 = vadd.f32 %v854, %v993
        %v1000 = vadd.f32 %v934, %v993
        %v1001 = vadd.f32 %v857, %v993
        %v1002 = vadd.f32 %v937, %v993
        %v1003 = vadd.f32 %v860, %v993
        %v1004 = vadd.f32 %v940, %v993
        %v1005 = vadd.f32 %v863, %v993
        %v1006 = vadd.f32 %v943, %v993
        %v1007 = vadd.f32 %v866, %v993
        %v1008 = vadd.f32 %v946, %v993
        %v1009 = vadd.f32 %v869, %v993
        %v1010 = vadd.f32 %v949, %v993
        %v1011 = vadd.f32 %v872, %v993
        %v1012 = vadd.f32 %v952, %v993
        %v1013 = vadd.f32 %v875, %v993
        %v1014 = vadd.f32 %v955, %v993
        %v1015 = vadd.f32 %v878, %v993
        %v1016 = vadd.f32 %v958, %v993
        %v1017 = vadd.f32 %v881, %v993
        %v1018 = vadd.f32 %v961, %v993
        %v1019 = vadd.f32 %v884, %v993
        %v1020 = vadd.f32 %v964, %v993
        %v1021 = vadd.f32 %v887, %v993
        %v1022 = vadd.f32 %v967, %v993
        %v1023 = vadd.f32 %v890, %v993
        %v1024 = vadd.f32 %v970, %v993
        %v1025 = vadd.f32 %v893, %v993
        %v1026 = vadd.f32 %v973, %v993
        %v1027 = vadd.f32 %v896, %v993
        %v1028 = vadd.f32 %v976, %v993
        %v1029 = vadd.f32 %v899, %v993
        %v1030 = vadd.f32 %v979, %v993
        %v1031 = vadd.f32 %v902, %v993
        %v1032 = vadd.f32 %v982, %v993
        %v1033 = vadd.f32 %v905, %v993
        %v1034 = vadd.f32 %v985, %v993
        %v1035 = vadd.f32 %v908, %v993
        %v1036 = vadd.f32 %v988, %v993
        %1079 = vrot.lane.b32.xlu0 %v768, 32
        %v1080 = vpop.permute.xlu0 %1079
        %1081 = vrot.lane.b32.xlu0 %v848, 32
        %v1082 = vpop.permute.xlu0 %1081
        %1083 = vrot.lane.b32.xlu0 %v771, 32
        %v1084 = vpop.permute.xlu0 %1083
        %1085 = vrot.lane.b32.xlu0 %v851, 32
        %v1086 = vpop.permute.xlu0 %1085
        %1087 = vrot.lane.b32.xlu0 %v774, 32
        %v1088 = vpop.permute.xlu0 %1087
        %1089 = vrot.lane.b32.xlu0 %v854, 32
        %v1090 = vpop.permute.xlu0 %1089
        %1091 = vrot.lane.b32.xlu0 %v777, 32
        %v1092 = vpop.permute.xlu0 %1091
        %1093 = vrot.lane.b32.xlu0 %v857, 32
        %v1094 = vpop.permute.xlu0 %1093
        %1095 = vrot.lane.b32.xlu0 %v780, 32
        %v1096 = vpop.permute.xlu0 %1095
        %1097 = vrot.lane.b32.xlu0 %v860, 32
        %v1098 = vpop.permute.xlu0 %1097
        %1099 = vrot.lane.b32.xlu0 %v783, 32
        %v1100 = vpop.permute.xlu0 %1099
        %1101 = vrot.lane.b32.xlu0 %v863, 32
        %v1102 = vpop.permute.xlu0 %1101
        %1103 = vrot.lane.b32.xlu0 %v786, 32
        %v1104 = vpop.permute.xlu0 %1103
        %1105 = vrot.lane.b32.xlu0 %v866, 32
        %v1106 = vpop.permute.xlu0 %1105
        %1107 = vrot.lane.b32.xlu0 %v789, 32
        %v1108 = vpop.permute.xlu0 %1107
        %1109 = vrot.lane.b32.xlu0 %v869, 32
        %v1110 = vpop.permute.xlu0 %1109
        %1111 = vrot.lane.b32.xlu0 %v792, 32
        %v1112 = vpop.permute.xlu0 %1111
        %1113 = vrot.lane.b32.xlu0 %v872, 32
        %v1114 = vpop.permute.xlu0 %1113
        %1115 = vrot.lane.b32.xlu0 %v795, 32
        %v1116 = vpop.permute.xlu0 %1115
        %1117 = vrot.lane.b32.xlu0 %v875, 32
        %v1118 = vpop.permute.xlu0 %1117
        %1119 = vrot.lane.b32.xlu0 %v798, 32
        %v1120 = vpop.permute.xlu0 %1119
        %1121 = vrot.lane.b32.xlu0 %v878, 32
        %v1122 = vpop.permute.xlu0 %1121
        %1123 = vrot.lane.b32.xlu0 %v801, 32
        %v1124 = vpop.permute.xlu0 %1123
        %1125 = vrot.lane.b32.xlu0 %v881, 32
        %v1126 = vpop.permute.xlu0 %1125
        %1127 = vrot.lane.b32.xlu0 %v804, 32
        %v1128 = vpop.permute.xlu0 %1127
        %1129 = vrot.lane.b32.xlu0 %v884, 32
        %v1130 = vpop.permute.xlu0 %1129
        %1131 = vrot.lane.b32.xlu0 %v807, 32
        %v1132 = vpop.permute.xlu0 %1131
        %1133 = vrot.lane.b32.xlu0 %v887, 32
        %v1134 = vpop.permute.xlu0 %1133
        %1135 = vrot.lane.b32.xlu0 %v810, 32
        %v1136 = vpop.permute.xlu0 %1135
        %1137 = vrot.lane.b32.xlu0 %v890, 32
        %v1138 = vpop.permute.xlu0 %1137
        %1139 = vrot.lane.b32.xlu0 %v813, 32
        %v1140 = vpop.permute.xlu0 %1139
        %1141 = vrot.lane.b32.xlu0 %v893, 32
        %v1142 = vpop.permute.xlu0 %1141
        %1143 = vrot.lane.b32.xlu0 %v816, 32
        %v1144 = vpop.permute.xlu0 %1143
        %1145 = vrot.lane.b32.xlu0 %v896, 32
        %v1146 = vpop.permute.xlu0 %1145
        %1147 = vrot.lane.b32.xlu0 %v819, 32
        %v1148 = vpop.permute.xlu0 %1147
        %1149 = vrot.lane.b32.xlu0 %v899, 32
        %v1150 = vpop.permute.xlu0 %1149
        %1151 = vrot.lane.b32.xlu0 %v822, 32
        %v1152 = vpop.permute.xlu0 %1151
        %1153 = vrot.lane.b32.xlu0 %v902, 32
        %v1154 = vpop.permute.xlu0 %1153
        %1155 = vrot.lane.b32.xlu0 %v825, 32
        %v1156 = vpop.permute.xlu0 %1155
        %1157 = vrot.lane.b32.xlu0 %v905, 32
        %v1158 = vpop.permute.xlu0 %1157
        %1159 = vrot.lane.b32.xlu0 %v828, 32
        %v1160 = vpop.permute.xlu0 %1159
        %1161 = vrot.lane.b32.xlu0 %v908, 32
        %v1162 = vpop.permute.xlu0 %1161
        %v1163 = vsel %vm686, %v1080, %v1082
        %v1164 = vsel %vm686, %v1084, %v1086
        %v1165 = vsel %vm686, %v1088, %v1090
        %v1166 = vsel %vm686, %v1092, %v1094
        %v1167 = vsel %vm686, %v1096, %v1098
        %v1168 = vsel %vm686, %v1100, %v1102
        %v1169 = vsel %vm686, %v1104, %v1106
        %v1170 = vsel %vm686, %v1108, %v1110
        %v1171 = vsel %vm686, %v1112, %v1114
        %v1172 = vsel %vm686, %v1116, %v1118
        %v1173 = vsel %vm686, %v1120, %v1122
        %v1174 = vsel %vm686, %v1124, %v1126
        %v1175 = vsel %vm686, %v1128, %v1130
        %v1176 = vsel %vm686, %v1132, %v1134
        %v1177 = vsel %vm686, %v1136, %v1138
        %v1178 = vsel %vm686, %v1140, %v1142
        %v1179 = vsel %vm686, %v1144, %v1146
        %v1180 = vsel %vm686, %v1148, %v1150
        %v1181 = vsel %vm686, %v1152, %v1154
        %v1182 = vsel %vm686, %v1156, %v1158
        %v1183 = vsel %vm686, %v1160, %v1162
        %v1206 = vsel %vm397, %v355, 0
        %v1209 = vsel %vm397, %v357, 0
        %v1212 = vsel %vm397, %v359, 0
        %v1215 = vsel %vm397, %v361, 0
        %v1218 = vsel %vm397, %v363, 0
        %v1221 = vsel %vm397, %v365, 0
        %v1224 = vsel %vm397, %v367, 0
        %v1227 = vsel %vm397, %v369, 0
        %v1230 = vsel %vm397, %v371, 0
        %v1233 = vsel %vm397, %v373, 0
        %v1236 = vsel %vm397, %v375, 0
        %v1239 = vsel %vm397, %v377, 0
        %v1242 = vsel %vm397, %v379, 0
        %v1245 = vsel %vm397, %v381, 0
        %v1248 = vsel %vm397, %v383, 0
        %v1251 = vsel %vm397, %v385, 0
        %v1254 = vsel %vm397, %v387, 0
        %v1257 = vsel %vm397, %v389, 0
        %v1260 = vsel %vm397, %v391, 0
        %v1263 = vsel %vm397, %v393, 0
        %v1266 = vsel %vm397, %v395, 0
        %1268 = vmatpush.msra.mxu0 %v1178
        %1269 = vmatpush.msra.mxu0 %v1177
        %1270 = vmatpush.msra.mxu0 %v1176
        %1271 = vmatpush.msra.mxu0 %v1175
        %1272 = vmatpush.msra.mxu0 %v1174
        %1273 = vmatpush.msra.mxu0 %v1173
        %1274 = vmatpush.msra.mxu0 %v1172
        %1275 = vmatpush.msra.mxu0 %v1171
        %1276 = vmatpush.msra.mxu0 %v1170
        %1277 = vmatpush.msra.mxu0 %v1169
        %1278 = vmatpush.msra.mxu0 %v1168
        %1279 = vmatpush.msra.mxu0 %v1167
        %1280 = vmatpush.msra.mxu0 %v1166
        %1281 = vmatpush.msra.mxu0 %v1165
        %1282 = vmatpush.msra.mxu0 %v1164
        %1283 = vmatpush.msra.mxu0 %v1163
        %1284 = vmatmul.f32.gmra.mxu0 %v354
        %v1285 = vpop.f32.mrf.mxu0
        %v1286 = vadd.f32 0.0, %v1285
        %1287 = vmatmul.f32.gmra.mxu0 %v356
        %v1288 = vpop.f32.mrf.mxu0
        %v1289 = vadd.f32 0.0, %v1288
        %1290 = vmatmul.f32.gmra.mxu0 %v358
        %v1291 = vpop.f32.mrf.mxu0
        %v1292 = vadd.f32 0.0, %v1291
        %1293 = vmatmul.f32.gmra.mxu0 %v360
        %v1294 = vpop.f32.mrf.mxu0
        %v1295 = vadd.f32 0.0, %v1294
        %1296 = vmatmul.f32.gmra.mxu0 %v362
        %v1297 = vpop.f32.mrf.mxu0
        %v1298 = vadd.f32 0.0, %v1297
        %1299 = vmatmul.f32.gmra.mxu0 %v364
        %v1300 = vpop.f32.mrf.mxu0
        %v1301 = vadd.f32 0.0, %v1300
        %1302 = vmatmul.f32.gmra.mxu0 %v366
        %v1303 = vpop.f32.mrf.mxu0
        %v1304 = vadd.f32 0.0, %v1303
        %1305 = vmatmul.f32.gmra.mxu0 %v368
        %v1306 = vpop.f32.mrf.mxu0
        %v1307 = vadd.f32 0.0, %v1306
        %1308 = vmatmul.f32.gmra.mxu0 %v370
        %v1309 = vpop.f32.mrf.mxu0
        %v1310 = vadd.f32 0.0, %v1309
        %1311 = vmatmul.f32.gmra.mxu0 %v372
        %v1312 = vpop.f32.mrf.mxu0
        %v1313 = vadd.f32 0.0, %v1312
        %1314 = vmatmul.f32.gmra.mxu0 %v374
        %v1315 = vpop.f32.mrf.mxu0
        %v1316 = vadd.f32 0.0, %v1315
        %1317 = vmatmul.f32.gmra.mxu0 %v376
        %v1318 = vpop.f32.mrf.mxu0
        %v1319 = vadd.f32 0.0, %v1318
        %1320 = vmatmul.f32.gmra.mxu0 %v378
        %v1321 = vpop.f32.mrf.mxu0
        %v1322 = vadd.f32 0.0, %v1321
        %1323 = vmatmul.f32.gmra.mxu0 %v380
        %v1324 = vpop.f32.mrf.mxu0
        %v1325 = vadd.f32 0.0, %v1324
        %1326 = vmatmul.f32.gmra.mxu0 %v382
        %v1327 = vpop.f32.mrf.mxu0
        %v1328 = vadd.f32 0.0, %v1327
        %1329 = vmatmul.f32.gmra.mxu0 %v384
        %v1330 = vpop.f32.mrf.mxu0
        %v1331 = vadd.f32 0.0, %v1330
        %1332 = vmatmul.f32.gmra.mxu0 %v386
        %v1333 = vpop.f32.mrf.mxu0
        %v1334 = vadd.f32 0.0, %v1333
        %1335 = vmatmul.f32.gmra.mxu0 %v388
        %v1336 = vpop.f32.mrf.mxu0
        %v1337 = vadd.f32 0.0, %v1336
        %1338 = vmatmul.f32.gmra.mxu0 %v390
        %v1339 = vpop.f32.mrf.mxu0
        %v1340 = vadd.f32 0.0, %v1339
        %1341 = vmatmul.f32.gmra.mxu0 %v392
        %v1342 = vpop.f32.mrf.mxu0
        %v1343 = vadd.f32 0.0, %v1342
        %1344 = vmatmul.f32.gmra.mxu0 %v394
        %v1345 = vpop.f32.mrf.mxu0
        %v1346 = vadd.f32 0.0, %v1345
        %1347 = vdwg.mxu0
        %1348 = vmatpush.msra.mxu0 0.0
        %1349 = vmatpush.msra.mxu0 0.0
        %1350 = vmatpush.msra.mxu0 0.0
        %1351 = vmatpush.msra.mxu0 0.0
        %1352 = vmatpush.msra.mxu0 0.0
        %1353 = vmatpush.msra.mxu0 0.0
        %1354 = vmatpush.msra.mxu0 0.0
        %1355 = vmatpush.msra.mxu0 0.0
        %1356 = vmatpush.msra.mxu0 0.0
        %1357 = vmatpush.msra.mxu0 0.0
        %1358 = vmatpush.msra.mxu0 0.0
        %1359 = vmatpush.msra.mxu0 %v1183
        %1360 = vmatpush.msra.mxu0 %v1182
        %1361 = vmatpush.msra.mxu0 %v1181
        %1362 = vmatpush.msra.mxu0 %v1180
        %1363 = vmatpush.msra.mxu0 %v1179
        %1364 = vmatmul.f32.gmra.mxu0 %v1206
        %v1365 = vpop.f32.mrf.mxu0
        %v1366 = vadd.f32 %v1286, %v1365
        %1367 = vmatmul.f32.gmra.mxu0 %v1209
        %v1368 = vpop.f32.mrf.mxu0
        %v1369 = vadd.f32 %v1289, %v1368
        %1370 = vmatmul.f32.gmra.mxu0 %v1212
        %v1371 = vpop.f32.mrf.mxu0
        %v1372 = vadd.f32 %v1292, %v1371
        %1373 = vmatmul.f32.gmra.mxu0 %v1215
        %v1374 = vpop.f32.mrf.mxu0
        %v1375 = vadd.f32 %v1295, %v1374
        %1376 = vmatmul.f32.gmra.mxu0 %v1218
        %v1377 = vpop.f32.mrf.mxu0
        %v1378 = vadd.f32 %v1298, %v1377
        %1379 = vmatmul.f32.gmra.mxu0 %v1221
        %v1380 = vpop.f32.mrf.mxu0
        %v1381 = vadd.f32 %v1301, %v1380
        %1382 = vmatmul.f32.gmra.mxu0 %v1224
        %v1383 = vpop.f32.mrf.mxu0
        %v1384 = vadd.f32 %v1304, %v1383
        %1385 = vmatmul.f32.gmra.mxu0 %v1227
        %v1386 = vpop.f32.mrf.mxu0
        %v1387 = vadd.f32 %v1307, %v1386
        %1388 = vmatmul.f32.gmra.mxu0 %v1230
        %v1389 = vpop.f32.mrf.mxu0
        %v1390 = vadd.f32 %v1310, %v1389
        %1391 = vmatmul.f32.gmra.mxu0 %v1233
        %v1392 = vpop.f32.mrf.mxu0
        %v1393 = vadd.f32 %v1313, %v1392
        %1394 = vmatmul.f32.gmra.mxu0 %v1236
        %v1395 = vpop.f32.mrf.mxu0
        %v1396 = vadd.f32 %v1316, %v1395
        %1397 = vmatmul.f32.gmra.mxu0 %v1239
        %v1398 = vpop.f32.mrf.mxu0
        %v1399 = vadd.f32 %v1319, %v1398
        %1400 = vmatmul.f32.gmra.mxu0 %v1242
        %v1401 = vpop.f32.mrf.mxu0
        %v1402 = vadd.f32 %v1322, %v1401
        %1403 = vmatmul.f32.gmra.mxu0 %v1245
        %v1404 = vpop.f32.mrf.mxu0
        %v1405 = vadd.f32 %v1325, %v1404
        %1406 = vmatmul.f32.gmra.mxu0 %v1248
        %v1407 = vpop.f32.mrf.mxu0
        %v1408 = vadd.f32 %v1328, %v1407
        %1409 = vmatmul.f32.gmra.mxu0 %v1251
        %v1410 = vpop.f32.mrf.mxu0
        %v1411 = vadd.f32 %v1331, %v1410
        %1412 = vmatmul.f32.gmra.mxu0 %v1254
        %v1413 = vpop.f32.mrf.mxu0
        %v1414 = vadd.f32 %v1334, %v1413
        %1415 = vmatmul.f32.gmra.mxu0 %v1257
        %v1416 = vpop.f32.mrf.mxu0
        %v1417 = vadd.f32 %v1337, %v1416
        %1418 = vmatmul.f32.gmra.mxu0 %v1260
        %v1419 = vpop.f32.mrf.mxu0
        %v1420 = vadd.f32 %v1340, %v1419
        %1421 = vmatmul.f32.gmra.mxu0 %v1263
        %v1422 = vpop.f32.mrf.mxu0
        %v1423 = vadd.f32 %v1343, %v1422
        %1424 = vmatmul.f32.gmra.mxu0 %v1266
        %v1425 = vpop.f32.mrf.mxu0
        %v1426 = vadd.f32 %v1346, %v1425
        %1427 = vdwg.mxu0
        %v1429 = vsel %vm397, %v313, 0
        %v1432 = vsel %vm397, %v315, 0
        %v1435 = vsel %vm397, %v317, 0
        %v1438 = vsel %vm397, %v319, 0
        %v1441 = vsel %vm397, %v321, 0
        %v1444 = vsel %vm397, %v323, 0
        %v1447 = vsel %vm397, %v325, 0
        %v1450 = vsel %vm397, %v327, 0
        %v1453 = vsel %vm397, %v329, 0
        %v1456 = vsel %vm397, %v331, 0
        %v1459 = vsel %vm397, %v333, 0
        %v1462 = vsel %vm397, %v335, 0
        %v1465 = vsel %vm397, %v337, 0
        %v1468 = vsel %vm397, %v339, 0
        %v1471 = vsel %vm397, %v341, 0
        %v1474 = vsel %vm397, %v343, 0
        %v1477 = vsel %vm397, %v345, 0
        %v1480 = vsel %vm397, %v347, 0
        %v1483 = vsel %vm397, %v349, 0
        %v1486 = vsel %vm397, %v351, 0
        %v1489 = vsel %vm397, %v353, 0
        %1491 = vmatpush.msra.mxu0 %v813
        %1492 = vmatpush.msra.mxu0 %v810
        %1493 = vmatpush.msra.mxu0 %v807
        %1494 = vmatpush.msra.mxu0 %v804
        %1495 = vmatpush.msra.mxu0 %v801
        %1496 = vmatpush.msra.mxu0 %v798
        %1497 = vmatpush.msra.mxu0 %v795
        %1498 = vmatpush.msra.mxu0 %v792
        %1499 = vmatpush.msra.mxu0 %v789
        %1500 = vmatpush.msra.mxu0 %v786
        %1501 = vmatpush.msra.mxu0 %v783
        %1502 = vmatpush.msra.mxu0 %v780
        %1503 = vmatpush.msra.mxu0 %v777
        %1504 = vmatpush.msra.mxu0 %v774
        %1505 = vmatpush.msra.mxu0 %v771
        %1506 = vmatpush.msra.mxu0 %v768
        %1507 = vmatmul.f32.gmra.mxu0 %v312
        %v1508 = vpop.f32.mrf.mxu0
        %v1509 = vadd.f32 %v1366, %v1508
        %1510 = vmatmul.f32.gmra.mxu0 %v314
        %v1511 = vpop.f32.mrf.mxu0
        %v1512 = vadd.f32 %v1369, %v1511
        %1513 = vmatmul.f32.gmra.mxu0 %v316
        %v1514 = vpop.f32.mrf.mxu0
        %v1515 = vadd.f32 %v1372, %v1514
        %1516 = vmatmul.f32.gmra.mxu0 %v318
        %v1517 = vpop.f32.mrf.mxu0
        %v1518 = vadd.f32 %v1375, %v1517
        %1519 = vmatmul.f32.gmra.mxu0 %v320
        %v1520 = vpop.f32.mrf.mxu0
        %v1521 = vadd.f32 %v1378, %v1520
        %1522 = vmatmul.f32.gmra.mxu0 %v322
        %v1523 = vpop.f32.mrf.mxu0
        %v1524 = vadd.f32 %v1381, %v1523
        %1525 = vmatmul.f32.gmra.mxu0 %v324
        %v1526 = vpop.f32.mrf.mxu0
        %v1527 = vadd.f32 %v1384, %v1526
        %1528 = vmatmul.f32.gmra.mxu0 %v326
        %v1529 = vpop.f32.mrf.mxu0
        %v1530 = vadd.f32 %v1387, %v1529
        %1531 = vmatmul.f32.gmra.mxu0 %v328
        %v1532 = vpop.f32.mrf.mxu0
        %v1533 = vadd.f32 %v1390, %v1532
        %1534 = vmatmul.f32.gmra.mxu0 %v330
        %v1535 = vpop.f32.mrf.mxu0
        %v1536 = vadd.f32 %v1393, %v1535
        %1537 = vmatmul.f32.gmra.mxu0 %v332
        %v1538 = vpop.f32.mrf.mxu0
        %v1539 = vadd.f32 %v1396, %v1538
        %1540 = vmatmul.f32.gmra.mxu0 %v334
        %v1541 = vpop.f32.mrf.mxu0
        %v1542 = vadd.f32 %v1399, %v1541
        %1543 = vmatmul.f32.gmra.mxu0 %v336
        %v1544 = vpop.f32.mrf.mxu0
        %v1545 = vadd.f32 %v1402, %v1544
        %1546 = vmatmul.f32.gmra.mxu0 %v338
        %v1547 = vpop.f32.mrf.mxu0
        %v1548 = vadd.f32 %v1405, %v1547
        %1549 = vmatmul.f32.gmra.mxu0 %v340
        %v1550 = vpop.f32.mrf.mxu0
        %v1551 = vadd.f32 %v1408, %v1550
        %1552 = vmatmul.f32.gmra.mxu0 %v342
        %v1553 = vpop.f32.mrf.mxu0
        %v1554 = vadd.f32 %v1411, %v1553
        %1555 = vmatmul.f32.gmra.mxu0 %v344
        %v1556 = vpop.f32.mrf.mxu0
        %v1557 = vadd.f32 %v1414, %v1556
        %1558 = vmatmul.f32.gmra.mxu0 %v346
        %v1559 = vpop.f32.mrf.mxu0
        %v1560 = vadd.f32 %v1417, %v1559
        %1561 = vmatmul.f32.gmra.mxu0 %v348
        %v1562 = vpop.f32.mrf.mxu0
        %v1563 = vadd.f32 %v1420, %v1562
        %1564 = vmatmul.f32.gmra.mxu0 %v350
        %v1565 = vpop.f32.mrf.mxu0
        %v1566 = vadd.f32 %v1423, %v1565
        %1567 = vmatmul.f32.gmra.mxu0 %v352
        %v1568 = vpop.f32.mrf.mxu0
        %v1569 = vadd.f32 %v1426, %v1568
        %1570 = vdwg.mxu0
        %1571 = vmatpush.msra.mxu0 0.0
        %1572 = vmatpush.msra.mxu0 0.0
        %1573 = vmatpush.msra.mxu0 0.0
        %1574 = vmatpush.msra.mxu0 0.0
        %1575 = vmatpush.msra.mxu0 0.0
        %1576 = vmatpush.msra.mxu0 0.0
        %1577 = vmatpush.msra.mxu0 0.0
        %1578 = vmatpush.msra.mxu0 0.0
        %1579 = vmatpush.msra.mxu0 0.0
        %1580 = vmatpush.msra.mxu0 0.0
        %1581 = vmatpush.msra.mxu0 0.0
        %1582 = vmatpush.msra.mxu0 %v828
        %1583 = vmatpush.msra.mxu0 %v825
        %1584 = vmatpush.msra.mxu0 %v822
        %1585 = vmatpush.msra.mxu0 %v819
        %1586 = vmatpush.msra.mxu0 %v816
        %1587 = vmatmul.f32.gmra.mxu0 %v1429
        %v1588 = vpop.f32.mrf.mxu0
        %v1589 = vadd.f32 %v1509, %v1588
        %1590 = vmatmul.f32.gmra.mxu0 %v1432
        %v1591 = vpop.f32.mrf.mxu0
        %v1592 = vadd.f32 %v1512, %v1591
        %1593 = vmatmul.f32.gmra.mxu0 %v1435
        %v1594 = vpop.f32.mrf.mxu0
        %v1595 = vadd.f32 %v1515, %v1594
        %1596 = vmatmul.f32.gmra.mxu0 %v1438
        %v1597 = vpop.f32.mrf.mxu0
        %v1598 = vadd.f32 %v1518, %v1597
        %1599 = vmatmul.f32.gmra.mxu0 %v1441
        %v1600 = vpop.f32.mrf.mxu0
        %v1601 = vadd.f32 %v1521, %v1600
        %1602 = vmatmul.f32.gmra.mxu0 %v1444
        %v1603 = vpop.f32.mrf.mxu0
        %v1604 = vadd.f32 %v1524, %v1603
        %1605 = vmatmul.f32.gmra.mxu0 %v1447
        %v1606 = vpop.f32.mrf.mxu0
        %v1607 = vadd.f32 %v1527, %v1606
        %1608 = vmatmul.f32.gmra.mxu0 %v1450
        %v1609 = vpop.f32.mrf.mxu0
        %v1610 = vadd.f32 %v1530, %v1609
        %1611 = vmatmul.f32.gmra.mxu0 %v1453
        %v1612 = vpop.f32.mrf.mxu0
        %v1613 = vadd.f32 %v1533, %v1612
        %1614 = vmatmul.f32.gmra.mxu0 %v1456
        %v1615 = vpop.f32.mrf.mxu0
        %v1616 = vadd.f32 %v1536, %v1615
        %1617 = vmatmul.f32.gmra.mxu0 %v1459
        %v1618 = vpop.f32.mrf.mxu0
        %v1619 = vadd.f32 %v1539, %v1618
        %1620 = vmatmul.f32.gmra.mxu0 %v1462
        %v1621 = vpop.f32.mrf.mxu0
        %v1622 = vadd.f32 %v1542, %v1621
        %1623 = vmatmul.f32.gmra.mxu0 %v1465
        %v1624 = vpop.f32.mrf.mxu0
        %v1625 = vadd.f32 %v1545, %v1624
        %1626 = vmatmul.f32.gmra.mxu0 %v1468
        %v1627 = vpop.f32.mrf.mxu0
        %v1628 = vadd.f32 %v1548, %v1627
        %1629 = vmatmul.f32.gmra.mxu0 %v1471
        %v1630 = vpop.f32.mrf.mxu0
        %v1631 = vadd.f32 %v1551, %v1630
        %1632 = vmatmul.f32.gmra.mxu0 %v1474
        %v1633 = vpop.f32.mrf.mxu0
        %v1634 = vadd.f32 %v1554, %v1633
        %1635 = vmatmul.f32.gmra.mxu0 %v1477
        %v1636 = vpop.f32.mrf.mxu0
        %v1637 = vadd.f32 %v1557, %v1636
        %1638 = vmatmul.f32.gmra.mxu0 %v1480
        %v1639 = vpop.f32.mrf.mxu0
        %v1640 = vadd.f32 %v1560, %v1639
        %1641 = vmatmul.f32.gmra.mxu0 %v1483
        %v1642 = vpop.f32.mrf.mxu0
        %v1643 = vadd.f32 %v1563, %v1642
        %1644 = vmatmul.f32.gmra.mxu0 %v1486
        %v1645 = vpop.f32.mrf.mxu0
        %v1646 = vadd.f32 %v1566, %v1645
        %1647 = vmatmul.f32.gmra.mxu0 %v1489
        %v1648 = vpop.f32.mrf.mxu0
        %v1649 = vadd.f32 %v1569, %v1648
        %1650 = vdwg.mxu0
        %v1651 = vadd.f32 %v1589, %v632
        %v1652 = vadd.f32 %v1592, %v633
        %v1653 = vadd.f32 %v1595, %v634
        %v1654 = vadd.f32 %v1598, %v635
        %v1655 = vadd.f32 %v1601, %v636
        %v1656 = vadd.f32 %v1604, %v637
        %v1657 = vadd.f32 %v1607, %v638
        %v1658 = vadd.f32 %v1610, %v639
        %v1659 = vadd.f32 %v1613, %v640
        %v1660 = vadd.f32 %v1616, %v641
        %v1661 = vadd.f32 %v1619, %v642
        %v1662 = vadd.f32 %v1622, %v643
        %v1663 = vadd.f32 %v1625, %v644
        %v1664 = vadd.f32 %v1628, %v645
        %v1665 = vadd.f32 %v1631, %v646
        %v1666 = vadd.f32 %v1634, %v647
        %v1667 = vadd.f32 %v1637, %v648
        %v1668 = vadd.f32 %v1640, %v649
        %v1669 = vadd.f32 %v1643, %v650
        %v1670 = vadd.f32 %v1646, %v651
        %v1671 = vadd.f32 %v1649, %v652
        %1693 = vrot.lane.b32.xlu0 %v995, 64
        %v1694 = vpop.permute.xlu0 %1693
        %1695 = vrot.lane.b32.xlu0 %v997, 64
        %v1696 = vpop.permute.xlu0 %1695
        %1697 = vrot.lane.b32.xlu0 %v999, 64
        %v1698 = vpop.permute.xlu0 %1697
        %1699 = vrot.lane.b32.xlu0 %v1001, 64
        %v1700 = vpop.permute.xlu0 %1699
        %1701 = vrot.lane.b32.xlu0 %v1003, 64
        %v1702 = vpop.permute.xlu0 %1701
        %1703 = vrot.lane.b32.xlu0 %v1005, 64
        %v1704 = vpop.permute.xlu0 %1703
        %1705 = vrot.lane.b32.xlu0 %v1007, 64
        %v1706 = vpop.permute.xlu0 %1705
        %1707 = vrot.lane.b32.xlu0 %v1009, 64
        %v1708 = vpop.permute.xlu0 %1707
        %1709 = vrot.lane.b32.xlu0 %v1011, 64
        %v1710 = vpop.permute.xlu0 %1709
        %1711 = vrot.lane.b32.xlu0 %v1013, 64
        %v1712 = vpop.permute.xlu0 %1711
        %1713 = vrot.lane.b32.xlu0 %v1015, 64
        %v1714 = vpop.permute.xlu0 %1713
        %1715 = vrot.lane.b32.xlu0 %v1017, 64
        %v1716 = vpop.permute.xlu0 %1715
        %1717 = vrot.lane.b32.xlu0 %v1019, 64
        %v1718 = vpop.permute.xlu0 %1717
        %1719 = vrot.lane.b32.xlu0 %v1021, 64
        %v1720 = vpop.permute.xlu0 %1719
        %1721 = vrot.lane.b32.xlu0 %v1023, 64
        %v1722 = vpop.permute.xlu0 %1721
        %1723 = vrot.lane.b32.xlu0 %v1025, 64
        %v1724 = vpop.permute.xlu0 %1723
        %1725 = vrot.lane.b32.xlu0 %v1027, 64
        %v1726 = vpop.permute.xlu0 %1725
        %1727 = vrot.lane.b32.xlu0 %v1029, 64
        %v1728 = vpop.permute.xlu0 %1727
        %1729 = vrot.lane.b32.xlu0 %v1031, 64
        %v1730 = vpop.permute.xlu0 %1729
        %1731 = vrot.lane.b32.xlu0 %v1033, 64
        %v1732 = vpop.permute.xlu0 %1731
        %1733 = vrot.lane.b32.xlu0 %v1035, 64
        %v1734 = vpop.permute.xlu0 %1733
        %v1756 = vadd.f32 %v1651, %v1694
        %v1757 = vadd.f32 %v1652, %v1696
        %v1758 = vadd.f32 %v1653, %v1698
        %v1759 = vadd.f32 %v1654, %v1700
        %v1760 = vadd.f32 %v1655, %v1702
        %v1761 = vadd.f32 %v1656, %v1704
        %v1762 = vadd.f32 %v1657, %v1706
        %v1763 = vadd.f32 %v1658, %v1708
        %v1764 = vadd.f32 %v1659, %v1710
        %v1765 = vadd.f32 %v1660, %v1712
        %v1766 = vadd.f32 %v1661, %v1714
        %v1767 = vadd.f32 %v1662, %v1716
        %v1768 = vadd.f32 %v1663, %v1718
        %v1769 = vadd.f32 %v1664, %v1720
        %v1770 = vadd.f32 %v1665, %v1722
        %v1771 = vadd.f32 %v1666, %v1724
        %v1772 = vadd.f32 %v1667, %v1726
        %v1773 = vadd.f32 %v1668, %v1728
        %v1774 = vadd.f32 %v1669, %v1730
        %v1775 = vadd.f32 %v1670, %v1732
        %v1776 = vadd.f32 %v1671, %v1734
        %v1777 = vxor.u32 %v1756, 2147483648
        %v1778 = vxor.u32 %v1757, 2147483648
        %v1779 = vxor.u32 %v1758, 2147483648
        %v1780 = vxor.u32 %v1759, 2147483648
        %v1781 = vxor.u32 %v1760, 2147483648
        %v1782 = vxor.u32 %v1761, 2147483648
        %v1783 = vxor.u32 %v1762, 2147483648
        %v1784 = vxor.u32 %v1763, 2147483648
        %v1785 = vxor.u32 %v1764, 2147483648
        %v1786 = vxor.u32 %v1765, 2147483648
        %v1787 = vxor.u32 %v1766, 2147483648
        %v1788 = vxor.u32 %v1767, 2147483648
        %v1789 = vxor.u32 %v1768, 2147483648
        %v1790 = vxor.u32 %v1769, 2147483648
        %v1791 = vxor.u32 %v1770, 2147483648
        %v1792 = vxor.u32 %v1771, 2147483648
        %v1793 = vxor.u32 %v1772, 2147483648
        %v1794 = vxor.u32 %v1773, 2147483648
        %v1795 = vxor.u32 %v1774, 2147483648
        %v1796 = vxor.u32 %v1775, 2147483648
        %v1797 = vxor.u32 %v1776, 2147483648
        %v1798 = vmul.f32 %v1777, 1.442695
        %v1799 = vpow.pop %v1798
        %v1800 = vmul.f32 %v1778, 1.442695
        %v1801 = vpow.pop %v1800
        %v1802 = vmul.f32 %v1779, 1.442695
        %v1803 = vpow.pop %v1802
        %v1804 = vmul.f32 %v1780, 1.442695
        %v1805 = vpow.pop %v1804
        %v1806 = vmul.f32 %v1781, 1.442695
        %v1807 = vpow.pop %v1806
        %v1808 = vmul.f32 %v1782, 1.442695
        %v1809 = vpow.pop %v1808
        %v1810 = vmul.f32 %v1783, 1.442695
        %v1811 = vpow.pop %v1810
        %v1812 = vmul.f32 %v1784, 1.442695
        %v1813 = vpow.pop %v1812
        %v1814 = vmul.f32 %v1785, 1.442695
        %v1815 = vpow.pop %v1814
        %v1816 = vmul.f32 %v1786, 1.442695
        %v1817 = vpow.pop %v1816
        %v1818 = vmul.f32 %v1787, 1.442695
        %v1819 = vpow.pop %v1818
        %v1820 = vmul.f32 %v1788, 1.442695
        %v1821 = vpow.pop %v1820
        %v1822 = vmul.f32 %v1789, 1.442695
        %v1823 = vpow.pop %v1822
        %v1824 = vmul.f32 %v1790, 1.442695
        %v1825 = vpow.pop %v1824
        %v1826 = vmul.f32 %v1791, 1.442695
        %v1827 = vpow.pop %v1826
        %v1828 = vmul.f32 %v1792, 1.442695
        %v1829 = vpow.pop %v1828
        %v1830 = vmul.f32 %v1793, 1.442695
        %v1831 = vpow.pop %v1830
        %v1832 = vmul.f32 %v1794, 1.442695
        %v1833 = vpow.pop %v1832
        %v1834 = vmul.f32 %v1795, 1.442695
        %v1835 = vpow.pop %v1834
        %v1836 = vmul.f32 %v1796, 1.442695
        %v1837 = vpow.pop %v1836
        %v1838 = vmul.f32 %v1797, 1.442695
        %v1839 = vpow.pop %v1838
        %v1840 = vadd.f32 %v1799, 1.0
        %v1841 = vadd.f32 %v1801, 1.0
        %v1842 = vadd.f32 %v1803, 1.0
        %v1843 = vadd.f32 %v1805, 1.0
        %v1844 = vadd.f32 %v1807, 1.0
        %v1845 = vadd.f32 %v1809, 1.0
        %v1846 = vadd.f32 %v1811, 1.0
        %v1847 = vadd.f32 %v1813, 1.0
        %v1848 = vadd.f32 %v1815, 1.0
        %v1849 = vadd.f32 %v1817, 1.0
        %v1850 = vadd.f32 %v1819, 1.0
        %v1851 = vadd.f32 %v1821, 1.0
        %v1852 = vadd.f32 %v1823, 1.0
        %v1853 = vadd.f32 %v1825, 1.0
        %v1854 = vadd.f32 %v1827, 1.0
        %v1855 = vadd.f32 %v1829, 1.0
        %v1856 = vadd.f32 %v1831, 1.0
        %v1857 = vadd.f32 %v1833, 1.0
        %v1858 = vadd.f32 %v1835, 1.0
        %v1859 = vadd.f32 %v1837, 1.0
        %v1860 = vadd.f32 %v1839, 1.0
        %v1861 = vrcp.pop %v1840
        %v1862 = vmul.f32 %v1840, %v1861
        %v1863 = vsub.f32 1.0, %v1862
        %v1864 = vmul.f32 %v1861, %v1863
        %v1865 = vadd.f32 %v1861, %v1864
        %vm1866 = vweird.f32 %v1840
        %vm1867 = vweird.f32 %v1861
        %vm1868 = vmor %vm1866, %vm1867
        %v1869 = vsel %vm1868, %v1861, %v1865
        %v1870 = vand.u32 2147483647, %v1840
        %vm1871 = vcmp.eq.f32.partialorder %v1870, 8.507059e+37
        %v1872 = vand.u32 %v1840, 2147483648
        %v1873 = vor.u32 1.1754944e-38, %v1872
        %v1874 = vsel %vm1871, %v1873, %v1869
        %v1875 = vmul.f32 1.0, %v1874
        %v1876 = vrcp.pop %v1841
        %v1877 = vmul.f32 %v1841, %v1876
        %v1878 = vsub.f32 1.0, %v1877
        %v1879 = vmul.f32 %v1876, %v1878
        %v1880 = vadd.f32 %v1876, %v1879
        %vm1881 = vweird.f32 %v1841
        %vm1882 = vweird.f32 %v1876
        %vm1883 = vmor %vm1881, %vm1882
        %v1884 = vsel %vm1883, %v1876, %v1880
        %v1885 = vand.u32 2147483647, %v1841
        %vm1886 = vcmp.eq.f32.partialorder %v1885, 8.507059e+37
        %v1887 = vand.u32 %v1841, 2147483648
        %v1888 = vor.u32 1.1754944e-38, %v1887
        %v1889 = vsel %vm1886, %v1888, %v1884
        %v1890 = vmul.f32 1.0, %v1889
        %v1891 = vrcp.pop %v1842
        %v1892 = vmul.f32 %v1842, %v1891
        %v1893 = vsub.f32 1.0, %v1892
        %v1894 = vmul.f32 %v1891, %v1893
        %v1895 = vadd.f32 %v1891, %v1894
        %vm1896 = vweird.f32 %v1842
        %vm1897 = vweird.f32 %v1891
        %vm1898 = vmor %vm1896, %vm1897
        %v1899 = vsel %vm1898, %v1891, %v1895
        %v1900 = vand.u32 2147483647, %v1842
        %vm1901 = vcmp.eq.f32.partialorder %v1900, 8.507059e+37
        %v1902 = vand.u32 %v1842, 2147483648
        %v1903 = vor.u32 1.1754944e-38, %v1902
        %v1904 = vsel %vm1901, %v1903, %v1899
        %v1905 = vmul.f32 1.0, %v1904
        %v1906 = vrcp.pop %v1843
        %v1907 = vmul.f32 %v1843, %v1906
        %v1908 = vsub.f32 1.0, %v1907
        %v1909 = vmul.f32 %v1906, %v1908
        %v1910 = vadd.f32 %v1906, %v1909
        %vm1911 = vweird.f32 %v1843
        %vm1912 = vweird.f32 %v1906
        %vm1913 = vmor %vm1911, %vm1912
        %v1914 = vsel %vm1913, %v1906, %v1910
        %v1915 = vand.u32 2147483647, %v1843
        %vm1916 = vcmp.eq.f32.partialorder %v1915, 8.507059e+37
        %v1917 = vand.u32 %v1843, 2147483648
        %v1918 = vor.u32 1.1754944e-38, %v1917
        %v1919 = vsel %vm1916, %v1918, %v1914
        %v1920 = vmul.f32 1.0, %v1919
        %v1921 = vrcp.pop %v1844
        %v1922 = vmul.f32 %v1844, %v1921
        %v1923 = vsub.f32 1.0, %v1922
        %v1924 = vmul.f32 %v1921, %v1923
        %v1925 = vadd.f32 %v1921, %v1924
        %vm1926 = vweird.f32 %v1844
        %vm1927 = vweird.f32 %v1921
        %vm1928 = vmor %vm1926, %vm1927
        %v1929 = vsel %vm1928, %v1921, %v1925
        %v1930 = vand.u32 2147483647, %v1844
        %vm1931 = vcmp.eq.f32.partialorder %v1930, 8.507059e+37
        %v1932 = vand.u32 %v1844, 2147483648
        %v1933 = vor.u32 1.1754944e-38, %v1932
        %v1934 = vsel %vm1931, %v1933, %v1929
        %v1935 = vmul.f32 1.0, %v1934
        %v1936 = vrcp.pop %v1845
        %v1937 = vmul.f32 %v1845, %v1936
        %v1938 = vsub.f32 1.0, %v1937
        %v1939 = vmul.f32 %v1936, %v1938
        %v1940 = vadd.f32 %v1936, %v1939
        %vm1941 = vweird.f32 %v1845
        %vm1942 = vweird.f32 %v1936
        %vm1943 = vmor %vm1941, %vm1942
        %v1944 = vsel %vm1943, %v1936, %v1940
        %v1945 = vand.u32 2147483647, %v1845
        %vm1946 = vcmp.eq.f32.partialorder %v1945, 8.507059e+37
        %v1947 = vand.u32 %v1845, 2147483648
        %v1948 = vor.u32 1.1754944e-38, %v1947
        %v1949 = vsel %vm1946, %v1948, %v1944
        %v1950 = vmul.f32 1.0, %v1949
        %v1951 = vrcp.pop %v1846
        %v1952 = vmul.f32 %v1846, %v1951
        %v1953 = vsub.f32 1.0, %v1952
        %v1954 = vmul.f32 %v1951, %v1953
        %v1955 = vadd.f32 %v1951, %v1954
        %vm1956 = vweird.f32 %v1846
        %vm1957 = vweird.f32 %v1951
        %vm1958 = vmor %vm1956, %vm1957
        %v1959 = vsel %vm1958, %v1951, %v1955
        %v1960 = vand.u32 2147483647, %v1846
        %vm1961 = vcmp.eq.f32.partialorder %v1960, 8.507059e+37
        %v1962 = vand.u32 %v1846, 2147483648
        %v1963 = vor.u32 1.1754944e-38, %v1962
        %v1964 = vsel %vm1961, %v1963, %v1959
        %v1965 = vmul.f32 1.0, %v1964
        %v1966 = vrcp.pop %v1847
        %v1967 = vmul.f32 %v1847, %v1966
        %v1968 = vsub.f32 1.0, %v1967
        %v1969 = vmul.f32 %v1966, %v1968
        %v1970 = vadd.f32 %v1966, %v1969
        %vm1971 = vweird.f32 %v1847
        %vm1972 = vweird.f32 %v1966
        %vm1973 = vmor %vm1971, %vm1972
        %v1974 = vsel %vm1973, %v1966, %v1970
        %v1975 = vand.u32 2147483647, %v1847
        %vm1976 = vcmp.eq.f32.partialorder %v1975, 8.507059e+37
        %v1977 = vand.u32 %v1847, 2147483648
        %v1978 = vor.u32 1.1754944e-38, %v1977
        %v1979 = vsel %vm1976, %v1978, %v1974
        %v1980 = vmul.f32 1.0, %v1979
        %v1981 = vrcp.pop %v1848
        %v1982 = vmul.f32 %v1848, %v1981
        %v1983 = vsub.f32 1.0, %v1982
        %v1984 = vmul.f32 %v1981, %v1983
        %v1985 = vadd.f32 %v1981, %v1984
        %vm1986 = vweird.f32 %v1848
        %vm1987 = vweird.f32 %v1981
        %vm1988 = vmor %vm1986, %vm1987
        %v1989 = vsel %vm1988, %v1981, %v1985
        %v1990 = vand.u32 2147483647, %v1848
        %vm1991 = vcmp.eq.f32.partialorder %v1990, 8.507059e+37
        %v1992 = vand.u32 %v1848, 2147483648
        %v1993 = vor.u32 1.1754944e-38, %v1992
        %v1994 = vsel %vm1991, %v1993, %v1989
        %v1995 = vmul.f32 1.0, %v1994
        %v1996 = vrcp.pop %v1849
        %v1997 = vmul.f32 %v1849, %v1996
        %v1998 = vsub.f32 1.0, %v1997
        %v1999 = vmul.f32 %v1996, %v1998
        %v2000 = vadd.f32 %v1996, %v1999
        %vm2001 = vweird.f32 %v1849
        %vm2002 = vweird.f32 %v1996
        %vm2003 = vmor %vm2001, %vm2002
        %v2004 = vsel %vm2003, %v1996, %v2000
        %v2005 = vand.u32 2147483647, %v1849
        %vm2006 = vcmp.eq.f32.partialorder %v2005, 8.507059e+37
        %v2007 = vand.u32 %v1849, 2147483648
        %v2008 = vor.u32 1.1754944e-38, %v2007
        %v2009 = vsel %vm2006, %v2008, %v2004
        %v2010 = vmul.f32 1.0, %v2009
        %v2011 = vrcp.pop %v1850
        %v2012 = vmul.f32 %v1850, %v2011
        %v2013 = vsub.f32 1.0, %v2012
        %v2014 = vmul.f32 %v2011, %v2013
        %v2015 = vadd.f32 %v2011, %v2014
        %vm2016 = vweird.f32 %v1850
        %vm2017 = vweird.f32 %v2011
        %vm2018 = vmor %vm2016, %vm2017
        %v2019 = vsel %vm2018, %v2011, %v2015
        %v2020 = vand.u32 2147483647, %v1850
        %vm2021 = vcmp.eq.f32.partialorder %v2020, 8.507059e+37
        %v2022 = vand.u32 %v1850, 2147483648
        %v2023 = vor.u32 1.1754944e-38, %v2022
        %v2024 = vsel %vm2021, %v2023, %v2019
        %v2025 = vmul.f32 1.0, %v2024
        %v2026 = vrcp.pop %v1851
        %v2027 = vmul.f32 %v1851, %v2026
        %v2028 = vsub.f32 1.0, %v2027
        %v2029 = vmul.f32 %v2026, %v2028
        %v2030 = vadd.f32 %v2026, %v2029
        %vm2031 = vweird.f32 %v1851
        %vm2032 = vweird.f32 %v2026
        %vm2033 = vmor %vm2031, %vm2032
        %v2034 = vsel %vm2033, %v2026, %v2030
        %v2035 = vand.u32 2147483647, %v1851
        %vm2036 = vcmp.eq.f32.partialorder %v2035, 8.507059e+37
        %v2037 = vand.u32 %v1851, 2147483648
        %v2038 = vor.u32 1.1754944e-38, %v2037
        %v2039 = vsel %vm2036, %v2038, %v2034
        %v2040 = vmul.f32 1.0, %v2039
        %v2041 = vrcp.pop %v1852
        %v2042 = vmul.f32 %v1852, %v2041
        %v2043 = vsub.f32 1.0, %v2042
        %v2044 = vmul.f32 %v2041, %v2043
        %v2045 = vadd.f32 %v2041, %v2044
        %vm2046 = vweird.f32 %v1852
        %vm2047 = vweird.f32 %v2041
        %vm2048 = vmor %vm2046, %vm2047
        %v2049 = vsel %vm2048, %v2041, %v2045
        %v2050 = vand.u32 2147483647, %v1852
        %vm2051 = vcmp.eq.f32.partialorder %v2050, 8.507059e+37
        %v2052 = vand.u32 %v1852, 2147483648
        %v2053 = vor.u32 1.1754944e-38, %v2052
        %v2054 = vsel %vm2051, %v2053, %v2049
        %v2055 = vmul.f32 1.0, %v2054
        %v2056 = vrcp.pop %v1853
        %v2057 = vmul.f32 %v1853, %v2056
        %v2058 = vsub.f32 1.0, %v2057
        %v2059 = vmul.f32 %v2056, %v2058
        %v2060 = vadd.f32 %v2056, %v2059
        %vm2061 = vweird.f32 %v1853
        %vm2062 = vweird.f32 %v2056
        %vm2063 = vmor %vm2061, %vm2062
        %v2064 = vsel %vm2063, %v2056, %v2060
        %v2065 = vand.u32 2147483647, %v1853
        %vm2066 = vcmp.eq.f32.partialorder %v2065, 8.507059e+37
        %v2067 = vand.u32 %v1853, 2147483648
        %v2068 = vor.u32 1.1754944e-38, %v2067
        %v2069 = vsel %vm2066, %v2068, %v2064
        %v2070 = vmul.f32 1.0, %v2069
        %v2071 = vrcp.pop %v1854
        %v2072 = vmul.f32 %v1854, %v2071
        %v2073 = vsub.f32 1.0, %v2072
        %v2074 = vmul.f32 %v2071, %v2073
        %v2075 = vadd.f32 %v2071, %v2074
        %vm2076 = vweird.f32 %v1854
        %vm2077 = vweird.f32 %v2071
        %vm2078 = vmor %vm2076, %vm2077
        %v2079 = vsel %vm2078, %v2071, %v2075
        %v2080 = vand.u32 2147483647, %v1854
        %vm2081 = vcmp.eq.f32.partialorder %v2080, 8.507059e+37
        %v2082 = vand.u32 %v1854, 2147483648
        %v2083 = vor.u32 1.1754944e-38, %v2082
        %v2084 = vsel %vm2081, %v2083, %v2079
        %v2085 = vmul.f32 1.0, %v2084
        %v2086 = vrcp.pop %v1855
        %v2087 = vmul.f32 %v1855, %v2086
        %v2088 = vsub.f32 1.0, %v2087
        %v2089 = vmul.f32 %v2086, %v2088
        %v2090 = vadd.f32 %v2086, %v2089
        %vm2091 = vweird.f32 %v1855
        %vm2092 = vweird.f32 %v2086
        %vm2093 = vmor %vm2091, %vm2092
        %v2094 = vsel %vm2093, %v2086, %v2090
        %v2095 = vand.u32 2147483647, %v1855
        %vm2096 = vcmp.eq.f32.partialorder %v2095, 8.507059e+37
        %v2097 = vand.u32 %v1855, 2147483648
        %v2098 = vor.u32 1.1754944e-38, %v2097
        %v2099 = vsel %vm2096, %v2098, %v2094
        %v2100 = vmul.f32 1.0, %v2099
        %v2101 = vrcp.pop %v1856
        %v2102 = vmul.f32 %v1856, %v2101
        %v2103 = vsub.f32 1.0, %v2102
        %v2104 = vmul.f32 %v2101, %v2103
        %v2105 = vadd.f32 %v2101, %v2104
        %vm2106 = vweird.f32 %v1856
        %vm2107 = vweird.f32 %v2101
        %vm2108 = vmor %vm2106, %vm2107
        %v2109 = vsel %vm2108, %v2101, %v2105
        %v2110 = vand.u32 2147483647, %v1856
        %vm2111 = vcmp.eq.f32.partialorder %v2110, 8.507059e+37
        %v2112 = vand.u32 %v1856, 2147483648
        %v2113 = vor.u32 1.1754944e-38, %v2112
        %v2114 = vsel %vm2111, %v2113, %v2109
        %v2115 = vmul.f32 1.0, %v2114
        %v2116 = vrcp.pop %v1857
        %v2117 = vmul.f32 %v1857, %v2116
        %v2118 = vsub.f32 1.0, %v2117
        %v2119 = vmul.f32 %v2116, %v2118
        %v2120 = vadd.f32 %v2116, %v2119
        %vm2121 = vweird.f32 %v1857
        %vm2122 = vweird.f32 %v2116
        %vm2123 = vmor %vm2121, %vm2122
        %v2124 = vsel %vm2123, %v2116, %v2120
        %v2125 = vand.u32 2147483647, %v1857
        %vm2126 = vcmp.eq.f32.partialorder %v2125, 8.507059e+37
        %v2127 = vand.u32 %v1857, 2147483648
        %v2128 = vor.u32 1.1754944e-38, %v2127
        %v2129 = vsel %vm2126, %v2128, %v2124
        %v2130 = vmul.f32 1.0, %v2129
        %v2131 = vrcp.pop %v1858
        %v2132 = vmul.f32 %v1858, %v2131
        %v2133 = vsub.f32 1.0, %v2132
        %v2134 = vmul.f32 %v2131, %v2133
        %v2135 = vadd.f32 %v2131, %v2134
        %vm2136 = vweird.f32 %v1858
        %vm2137 = vweird.f32 %v2131
        %vm2138 = vmor %vm2136, %vm2137
        %v2139 = vsel %vm2138, %v2131, %v2135
        %v2140 = vand.u32 2147483647, %v1858
        %vm2141 = vcmp.eq.f32.partialorder %v2140, 8.507059e+37
        %v2142 = vand.u32 %v1858, 2147483648
        %v2143 = vor.u32 1.1754944e-38, %v2142
        %v2144 = vsel %vm2141, %v2143, %v2139
        %v2145 = vmul.f32 1.0, %v2144
        %v2146 = vrcp.pop %v1859
        %v2147 = vmul.f32 %v1859, %v2146
        %v2148 = vsub.f32 1.0, %v2147
        %v2149 = vmul.f32 %v2146, %v2148
        %v2150 = vadd.f32 %v2146, %v2149
        %vm2151 = vweird.f32 %v1859
        %vm2152 = vweird.f32 %v2146
        %vm2153 = vmor %vm2151, %vm2152
        %v2154 = vsel %vm2153, %v2146, %v2150
        %v2155 = vand.u32 2147483647, %v1859
        %vm2156 = vcmp.eq.f32.partialorder %v2155, 8.507059e+37
        %v2157 = vand.u32 %v1859, 2147483648
        %v2158 = vor.u32 1.1754944e-38, %v2157
        %v2159 = vsel %vm2156, %v2158, %v2154
        %v2160 = vmul.f32 1.0, %v2159
        %v2161 = vrcp.pop %v1860
        %v2162 = vmul.f32 %v1860, %v2161
        %v2163 = vsub.f32 1.0, %v2162
        %v2164 = vmul.f32 %v2161, %v2163
        %v2165 = vadd.f32 %v2161, %v2164
        %vm2166 = vweird.f32 %v1860
        %vm2167 = vweird.f32 %v2161
        %vm2168 = vmor %vm2166, %vm2167
        %v2169 = vsel %vm2168, %v2161, %v2165
        %v2170 = vand.u32 2147483647, %v1860
        %vm2171 = vcmp.eq.f32.partialorder %v2170, 8.507059e+37
        %v2172 = vand.u32 %v1860, 2147483648
        %v2173 = vor.u32 1.1754944e-38, %v2172
        %v2174 = vsel %vm2171, %v2173, %v2169
        %v2175 = vmul.f32 1.0, %v2174
        %v2176 = vmul.f32 %v1875, %v996
        %v2177 = vmul.f32 %v1890, %v998
        %v2178 = vmul.f32 %v1905, %v1000
        %v2179 = vmul.f32 %v1920, %v1002
        %v2180 = vmul.f32 %v1935, %v1004
        %v2181 = vmul.f32 %v1950, %v1006
        %v2182 = vmul.f32 %v1965, %v1008
        %v2183 = vmul.f32 %v1980, %v1010
        %v2184 = vmul.f32 %v1995, %v1012
        %v2185 = vmul.f32 %v2010, %v1014
        %v2186 = vmul.f32 %v2025, %v1016
        %v2187 = vmul.f32 %v2040, %v1018
        %v2188 = vmul.f32 %v2055, %v1020
        %v2189 = vmul.f32 %v2070, %v1022
        %v2190 = vmul.f32 %v2085, %v1024
        %v2191 = vmul.f32 %v2100, %v1026
        %v2192 = vmul.f32 %v2115, %v1028
        %v2193 = vmul.f32 %v2130, %v1030
        %v2194 = vmul.f32 %v2145, %v1032
        %v2195 = vmul.f32 %v2160, %v1034
        %v2196 = vmul.f32 %v2175, %v1036
        %2218 = vrot.lane.b32.xlu0 %v2176, 64
        %v2219 = vpop.permute.xlu0 %2218
        %2220 = vrot.lane.b32.xlu0 %v2177, 64
        %v2221 = vpop.permute.xlu0 %2220
        %2222 = vrot.lane.b32.xlu0 %v2178, 64
        %v2223 = vpop.permute.xlu0 %2222
        %2224 = vrot.lane.b32.xlu0 %v2179, 64
        %v2225 = vpop.permute.xlu0 %2224
        %2226 = vrot.lane.b32.xlu0 %v2180, 64
        %v2227 = vpop.permute.xlu0 %2226
        %2228 = vrot.lane.b32.xlu0 %v2181, 64
        %v2229 = vpop.permute.xlu0 %2228
        %2230 = vrot.lane.b32.xlu0 %v2182, 64
        %v2231 = vpop.permute.xlu0 %2230
        %2232 = vrot.lane.b32.xlu0 %v2183, 64
        %v2233 = vpop.permute.xlu0 %2232
        %2234 = vrot.lane.b32.xlu0 %v2184, 64
        %v2235 = vpop.permute.xlu0 %2234
        %2236 = vrot.lane.b32.xlu0 %v2185, 64
        %v2237 = vpop.permute.xlu0 %2236
        %2238 = vrot.lane.b32.xlu0 %v2186, 64
        %v2239 = vpop.permute.xlu0 %2238
        %2240 = vrot.lane.b32.xlu0 %v2187, 64
        %v2241 = vpop.permute.xlu0 %2240
        %2242 = vrot.lane.b32.xlu0 %v2188, 64
        %v2243 = vpop.permute.xlu0 %2242
        %2244 = vrot.lane.b32.xlu0 %v2189, 64
        %v2245 = vpop.permute.xlu0 %2244
        %2246 = vrot.lane.b32.xlu0 %v2190, 64
        %v2247 = vpop.permute.xlu0 %2246
        %2248 = vrot.lane.b32.xlu0 %v2191, 64
        %v2249 = vpop.permute.xlu0 %2248
        %2250 = vrot.lane.b32.xlu0 %v2192, 64
        %v2251 = vpop.permute.xlu0 %2250
        %2252 = vrot.lane.b32.xlu0 %v2193, 64
        %v2253 = vpop.permute.xlu0 %2252
        %2254 = vrot.lane.b32.xlu0 %v2194, 64
        %v2255 = vpop.permute.xlu0 %2254
        %2256 = vrot.lane.b32.xlu0 %v2195, 64
        %v2257 = vpop.permute.xlu0 %2256
        %2258 = vrot.lane.b32.xlu0 %v2196, 64
        %v2259 = vpop.permute.xlu0 %2258
        %v2281 = vadd.f32 %v1651, %v2219
        %v2282 = vadd.f32 %v1652, %v2221
        %v2283 = vadd.f32 %v1653, %v2223
        %v2284 = vadd.f32 %v1654, %v2225
        %v2285 = vadd.f32 %v1655, %v2227
        %v2286 = vadd.f32 %v1656, %v2229
        %v2287 = vadd.f32 %v1657, %v2231
        %v2288 = vadd.f32 %v1658, %v2233
        %v2289 = vadd.f32 %v1659, %v2235
        %v2290 = vadd.f32 %v1660, %v2237
        %v2291 = vadd.f32 %v1661, %v2239
        %v2292 = vadd.f32 %v1662, %v2241
        %v2293 = vadd.f32 %v1663, %v2243
        %v2294 = vadd.f32 %v1664, %v2245
        %v2295 = vadd.f32 %v1665, %v2247
        %v2296 = vadd.f32 %v1666, %v2249
        %v2297 = vadd.f32 %v1667, %v2251
        %v2298 = vadd.f32 %v1668, %v2253
        %v2299 = vadd.f32 %v1669, %v2255
        %v2300 = vadd.f32 %v1670, %v2257
        %v2301 = vadd.f32 %v1671, %v2259
        %v2302 = vtanh.pop %v2281
        %v2303 = vtanh.pop %v2282
        %v2304 = vtanh.pop %v2283
        %v2305 = vtanh.pop %v2284
        %v2306 = vtanh.pop %v2285
        %v2307 = vtanh.pop %v2286
        %v2308 = vtanh.pop %v2287
        %v2309 = vtanh.pop %v2288
        %v2310 = vtanh.pop %v2289
        %v2311 = vtanh.pop %v2290
        %v2312 = vtanh.pop %v2291
        %v2313 = vtanh.pop %v2292
        %v2314 = vtanh.pop %v2293
        %v2315 = vtanh.pop %v2294
        %v2316 = vtanh.pop %v2295
        %v2317 = vtanh.pop %v2296
        %v2318 = vtanh.pop %v2297
        %v2319 = vtanh.pop %v2298
        %v2320 = vtanh.pop %v2299
        %v2321 = vtanh.pop %v2300
        %v2322 = vtanh.pop %v2301
        %2344 = vrot.lane.b32.xlu0 %v2302, 64
        %v2345 = vpop.permute.xlu0 %2344
        %2346 = vrot.lane.b32.xlu0 %v2303, 64
        %v2347 = vpop.permute.xlu0 %2346
        %2348 = vrot.lane.b32.xlu0 %v2304, 64
        %v2349 = vpop.permute.xlu0 %2348
        %2350 = vrot.lane.b32.xlu0 %v2305, 64
        %v2351 = vpop.permute.xlu0 %2350
        %2352 = vrot.lane.b32.xlu0 %v2306, 64
        %v2353 = vpop.permute.xlu0 %2352
        %2354 = vrot.lane.b32.xlu0 %v2307, 64
        %v2355 = vpop.permute.xlu0 %2354
        %2356 = vrot.lane.b32.xlu0 %v2308, 64
        %v2357 = vpop.permute.xlu0 %2356
        %2358 = vrot.lane.b32.xlu0 %v2309, 64
        %v2359 = vpop.permute.xlu0 %2358
        %2360 = vrot.lane.b32.xlu0 %v2310, 64
        %v2361 = vpop.permute.xlu0 %2360
        %2362 = vrot.lane.b32.xlu0 %v2311, 64
        %v2363 = vpop.permute.xlu0 %2362
        %2364 = vrot.lane.b32.xlu0 %v2312, 64
        %v2365 = vpop.permute.xlu0 %2364
        %2366 = vrot.lane.b32.xlu0 %v2313, 64
        %v2367 = vpop.permute.xlu0 %2366
        %2368 = vrot.lane.b32.xlu0 %v2314, 64
        %v2369 = vpop.permute.xlu0 %2368
        %2370 = vrot.lane.b32.xlu0 %v2315, 64
        %v2371 = vpop.permute.xlu0 %2370
        %2372 = vrot.lane.b32.xlu0 %v2316, 64
        %v2373 = vpop.permute.xlu0 %2372
        %2374 = vrot.lane.b32.xlu0 %v2317, 64
        %v2375 = vpop.permute.xlu0 %2374
        %2376 = vrot.lane.b32.xlu0 %v2318, 64
        %v2377 = vpop.permute.xlu0 %2376
        %2378 = vrot.lane.b32.xlu0 %v2319, 64
        %v2379 = vpop.permute.xlu0 %2378
        %2380 = vrot.lane.b32.xlu0 %v2320, 64
        %v2381 = vpop.permute.xlu0 %2380
        %2382 = vrot.lane.b32.xlu0 %v2321, 64
        %v2383 = vpop.permute.xlu0 %2382
        %2384 = vrot.lane.b32.xlu0 %v2322, 64
        %v2385 = vpop.permute.xlu0 %2384
        %v2407 = vsub.f32 %v665, %v2345
        %v2408 = vsub.f32 %v666, %v2347
        %v2409 = vsub.f32 %v667, %v2349
        %v2410 = vsub.f32 %v668, %v2351
        %v2411 = vsub.f32 %v669, %v2353
        %v2412 = vsub.f32 %v670, %v2355
        %v2413 = vsub.f32 %v671, %v2357
        %v2414 = vsub.f32 %v672, %v2359
        %v2415 = vsub.f32 %v673, %v2361
        %v2416 = vsub.f32 %v674, %v2363
        %v2417 = vsub.f32 %v675, %v2365
        %v2418 = vsub.f32 %v676, %v2367
        %v2419 = vsub.f32 %v677, %v2369
        %v2420 = vsub.f32 %v678, %v2371
        %v2421 = vsub.f32 %v679, %v2373
        %v2422 = vsub.f32 %v680, %v2375
        %v2423 = vsub.f32 %v681, %v2377
        %v2424 = vsub.f32 %v682, %v2379
        %v2425 = vsub.f32 %v683, %v2381
        %v2426 = vsub.f32 %v684, %v2383
        %v2427 = vsub.f32 %v685, %v2385
        %2449 = vrot.lane.b32.xlu0 %v2407, 32
        %v2450 = vpop.permute.xlu0 %2449
        %2451 = vrot.lane.b32.xlu0 %v2408, 32
        %v2452 = vpop.permute.xlu0 %2451
        %2453 = vrot.lane.b32.xlu0 %v2409, 32
        %v2454 = vpop.permute.xlu0 %2453
        %2455 = vrot.lane.b32.xlu0 %v2410, 32
        %v2456 = vpop.permute.xlu0 %2455
        %2457 = vrot.lane.b32.xlu0 %v2411, 32
        %v2458 = vpop.permute.xlu0 %2457
        %2459 = vrot.lane.b32.xlu0 %v2412, 32
        %v2460 = vpop.permute.xlu0 %2459
        %2461 = vrot.lane.b32.xlu0 %v2413, 32
        %v2462 = vpop.permute.xlu0 %2461
        %2463 = vrot.lane.b32.xlu0 %v2414, 32
        %v2464 = vpop.permute.xlu0 %2463
        %2465 = vrot.lane.b32.xlu0 %v2415, 32
        %v2466 = vpop.permute.xlu0 %2465
        %2467 = vrot.lane.b32.xlu0 %v2416, 32
        %v2468 = vpop.permute.xlu0 %2467
        %2469 = vrot.lane.b32.xlu0 %v2417, 32
        %v2470 = vpop.permute.xlu0 %2469
        %2471 = vrot.lane.b32.xlu0 %v2418, 32
        %v2472 = vpop.permute.xlu0 %2471
        %2473 = vrot.lane.b32.xlu0 %v2419, 32
        %v2474 = vpop.permute.xlu0 %2473
        %2475 = vrot.lane.b32.xlu0 %v2420, 32
        %v2476 = vpop.permute.xlu0 %2475
        %2477 = vrot.lane.b32.xlu0 %v2421, 32
        %v2478 = vpop.permute.xlu0 %2477
        %2479 = vrot.lane.b32.xlu0 %v2422, 32
        %v2480 = vpop.permute.xlu0 %2479
        %2481 = vrot.lane.b32.xlu0 %v2423, 32
        %v2482 = vpop.permute.xlu0 %2481
        %2483 = vrot.lane.b32.xlu0 %v2424, 32
        %v2484 = vpop.permute.xlu0 %2483
        %2485 = vrot.lane.b32.xlu0 %v2425, 32
        %v2486 = vpop.permute.xlu0 %2485
        %2487 = vrot.lane.b32.xlu0 %v2426, 32
        %v2488 = vpop.permute.xlu0 %2487
        %2489 = vrot.lane.b32.xlu0 %v2427, 32
        %v2490 = vpop.permute.xlu0 %2489
        %v2512 = vmul.f32 %v1875, %v2450
        %v2513 = vmul.f32 %v1890, %v2452
        %v2514 = vmul.f32 %v1905, %v2454
        %v2515 = vmul.f32 %v1920, %v2456
        %v2516 = vmul.f32 %v1935, %v2458
        %v2517 = vmul.f32 %v1950, %v2460
        %v2518 = vmul.f32 %v1965, %v2462
        %v2519 = vmul.f32 %v1980, %v2464
        %v2520 = vmul.f32 %v1995, %v2466
        %v2521 = vmul.f32 %v2010, %v2468
        %v2522 = vmul.f32 %v2025, %v2470
        %v2523 = vmul.f32 %v2040, %v2472
        %v2524 = vmul.f32 %v2055, %v2474
        %v2525 = vmul.f32 %v2070, %v2476
        %v2526 = vmul.f32 %v2085, %v2478
        %v2527 = vmul.f32 %v2100, %v2480
        %v2528 = vmul.f32 %v2115, %v2482
        %v2529 = vmul.f32 %v2130, %v2484
        %v2530 = vmul.f32 %v2145, %v2486
        %v2531 = vmul.f32 %v2160, %v2488
        %v2532 = vmul.f32 %v2175, %v2490
        %2554 = vrot.lane.b32.xlu0 %v2512, 32
        %v2555 = vpop.permute.xlu0 %2554
        %2556 = vrot.lane.b32.xlu0 %v2513, 32
        %v2557 = vpop.permute.xlu0 %2556
        %2558 = vrot.lane.b32.xlu0 %v2514, 32
        %v2559 = vpop.permute.xlu0 %2558
        %2560 = vrot.lane.b32.xlu0 %v2515, 32
        %v2561 = vpop.permute.xlu0 %2560
        %2562 = vrot.lane.b32.xlu0 %v2516, 32
        %v2563 = vpop.permute.xlu0 %2562
        %2564 = vrot.lane.b32.xlu0 %v2517, 32
        %v2565 = vpop.permute.xlu0 %2564
        %2566 = vrot.lane.b32.xlu0 %v2518, 32
        %v2567 = vpop.permute.xlu0 %2566
        %2568 = vrot.lane.b32.xlu0 %v2519, 32
        %v2569 = vpop.permute.xlu0 %2568
        %2570 = vrot.lane.b32.xlu0 %v2520, 32
        %v2571 = vpop.permute.xlu0 %2570
        %2572 = vrot.lane.b32.xlu0 %v2521, 32
        %v2573 = vpop.permute.xlu0 %2572
        %2574 = vrot.lane.b32.xlu0 %v2522, 32
        %v2575 = vpop.permute.xlu0 %2574
        %2576 = vrot.lane.b32.xlu0 %v2523, 32
        %v2577 = vpop.permute.xlu0 %2576
        %2578 = vrot.lane.b32.xlu0 %v2524, 32
        %v2579 = vpop.permute.xlu0 %2578
        %2580 = vrot.lane.b32.xlu0 %v2525, 32
        %v2581 = vpop.permute.xlu0 %2580
        %2582 = vrot.lane.b32.xlu0 %v2526, 32
        %v2583 = vpop.permute.xlu0 %2582
        %2584 = vrot.lane.b32.xlu0 %v2527, 32
        %v2585 = vpop.permute.xlu0 %2584
        %2586 = vrot.lane.b32.xlu0 %v2528, 32
        %v2587 = vpop.permute.xlu0 %2586
        %2588 = vrot.lane.b32.xlu0 %v2529, 32
        %v2589 = vpop.permute.xlu0 %2588
        %2590 = vrot.lane.b32.xlu0 %v2530, 32
        %v2591 = vpop.permute.xlu0 %2590
        %2592 = vrot.lane.b32.xlu0 %v2531, 32
        %v2593 = vpop.permute.xlu0 %2592
        %2594 = vrot.lane.b32.xlu0 %v2532, 32
        %v2595 = vpop.permute.xlu0 %2594
        %v2617 = vadd.f32 %v2302, %v2555
        %v2618 = vadd.f32 %v2303, %v2557
        %v2619 = vadd.f32 %v2304, %v2559
        %v2620 = vadd.f32 %v2305, %v2561
        %v2621 = vadd.f32 %v2306, %v2563
        %v2622 = vadd.f32 %v2307, %v2565
        %v2623 = vadd.f32 %v2308, %v2567
        %v2624 = vadd.f32 %v2309, %v2569
        %v2625 = vadd.f32 %v2310, %v2571
        %v2626 = vadd.f32 %v2311, %v2573
        %v2627 = vadd.f32 %v2312, %v2575
        %v2628 = vadd.f32 %v2313, %v2577
        %v2629 = vadd.f32 %v2314, %v2579
        %v2630 = vadd.f32 %v2315, %v2581
        %v2631 = vadd.f32 %v2316, %v2583
        %v2632 = vadd.f32 %v2317, %v2585
        %v2633 = vadd.f32 %v2318, %v2587
        %v2634 = vadd.f32 %v2319, %v2589
        %v2635 = vadd.f32 %v2320, %v2591
        %v2636 = vadd.f32 %v2321, %v2593
        %v2637 = vadd.f32 %v2322, %v2595
        %2659 = vrot.lane.b32.xlu0 %v2617, 64
        %v2660 = vpop.permute.xlu0 %2659
        %2661 = vrot.lane.b32.xlu0 %v2618, 64
        %v2662 = vpop.permute.xlu0 %2661
        %2663 = vrot.lane.b32.xlu0 %v2619, 64
        %v2664 = vpop.permute.xlu0 %2663
        %2665 = vrot.lane.b32.xlu0 %v2620, 64
        %v2666 = vpop.permute.xlu0 %2665
        %2667 = vrot.lane.b32.xlu0 %v2621, 64
        %v2668 = vpop.permute.xlu0 %2667
        %2669 = vrot.lane.b32.xlu0 %v2622, 64
        %v2670 = vpop.permute.xlu0 %2669
        %2671 = vrot.lane.b32.xlu0 %v2623, 64
        %v2672 = vpop.permute.xlu0 %2671
        %2673 = vrot.lane.b32.xlu0 %v2624, 64
        %v2674 = vpop.permute.xlu0 %2673
        %2675 = vrot.lane.b32.xlu0 %v2625, 64
        %v2676 = vpop.permute.xlu0 %2675
        %2677 = vrot.lane.b32.xlu0 %v2626, 64
        %v2678 = vpop.permute.xlu0 %2677
        %2679 = vrot.lane.b32.xlu0 %v2627, 64
        %v2680 = vpop.permute.xlu0 %2679
        %2681 = vrot.lane.b32.xlu0 %v2628, 64
        %v2682 = vpop.permute.xlu0 %2681
        %2683 = vrot.lane.b32.xlu0 %v2629, 64
        %v2684 = vpop.permute.xlu0 %2683
        %2685 = vrot.lane.b32.xlu0 %v2630, 64
        %v2686 = vpop.permute.xlu0 %2685
        %2687 = vrot.lane.b32.xlu0 %v2631, 64
        %v2688 = vpop.permute.xlu0 %2687
        %2689 = vrot.lane.b32.xlu0 %v2632, 64
        %v2690 = vpop.permute.xlu0 %2689
        %2691 = vrot.lane.b32.xlu0 %v2633, 64
        %v2692 = vpop.permute.xlu0 %2691
        %2693 = vrot.lane.b32.xlu0 %v2634, 64
        %v2694 = vpop.permute.xlu0 %2693
        %2695 = vrot.lane.b32.xlu0 %v2635, 64
        %v2696 = vpop.permute.xlu0 %2695
        %2697 = vrot.lane.b32.xlu0 %v2636, 64
        %v2698 = vpop.permute.xlu0 %2697
        %2699 = vrot.lane.b32.xlu0 %v2637, 64
        %v2700 = vpop.permute.xlu0 %2699
        %v2701 = vsel %vm686, %v2660, 0
        %v2703 = vsel %vm686, %v2662, 0
        %v2705 = vsel %vm686, %v2664, 0
        %v2707 = vsel %vm686, %v2666, 0
        %v2709 = vsel %vm686, %v2668, 0
        %v2711 = vsel %vm686, %v2670, 0
        %v2713 = vsel %vm686, %v2672, 0
        %v2715 = vsel %vm686, %v2674, 0
        %v2717 = vsel %vm686, %v2676, 0
        %v2719 = vsel %vm686, %v2678, 0
        %v2721 = vsel %vm686, %v2680, 0
        %v2723 = vsel %vm686, %v2682, 0
        %v2725 = vsel %vm686, %v2684, 0
        %v2727 = vsel %vm686, %v2686, 0
        %v2729 = vsel %vm686, %v2688, 0
        %v2731 = vsel %vm686, %v2690, 0
        %v2733 = vsel %vm686, %v2692, 0
        %v2735 = vsel %vm686, %v2694, 0
        %v2737 = vsel %vm686, %v2696, 0
        %v2739 = vsel %vm686, %v2698, 0
        %v2741 = vsel %vm686, %v2700, 0
        %2743 = vmatpush.msra.mxu0 0.0
        %2744 = vmatpush.msra.mxu0 0.0
        %2745 = vmatpush.msra.mxu0 0.0
        %2746 = vmatpush.msra.mxu0 0.0
        %2747 = vmatpush.msra.mxu0 0.0
        %2748 = vmatpush.msra.mxu0 0.0
        %2749 = vmatpush.msra.mxu0 0.0
        %2750 = vmatpush.msra.mxu0 0.0
        %2751 = vmatpush.msra.mxu0 0.0
        %2752 = vmatpush.msra.mxu0 0.0
        %2753 = vmatpush.msra.mxu0 0.0
        %2754 = vmatpush.msra.mxu0 0.0
        %2755 = vmatpush.msra.mxu0 %v662
        %2756 = vmatpush.msra.mxu0 %v659
        %2757 = vmatpush.msra.mxu0 %v656
        %2758 = vmatpush.msra.mxu0 %v653
        %2759 = vmatmul.f32.gmra.mxu0 %v2701
        %v2760 = vpop.f32.mrf.mxu0
        %v2761 = vadd.f32 0.0, %v2760
        %2762 = vmatmul.f32.gmra.mxu0 %v2703
        %v2763 = vpop.f32.mrf.mxu0
        %v2764 = vadd.f32 0.0, %v2763
        %2765 = vmatmul.f32.gmra.mxu0 %v2705
        %v2766 = vpop.f32.mrf.mxu0
        %v2767 = vadd.f32 0.0, %v2766
        %2768 = vmatmul.f32.gmra.mxu0 %v2707
        %v2769 = vpop.f32.mrf.mxu0
        %v2770 = vadd.f32 0.0, %v2769
        %2771 = vmatmul.f32.gmra.mxu0 %v2709
        %v2772 = vpop.f32.mrf.mxu0
        %v2773 = vadd.f32 0.0, %v2772
        %2774 = vmatmul.f32.gmra.mxu0 %v2711
        %v2775 = vpop.f32.mrf.mxu0
        %v2776 = vadd.f32 0.0, %v2775
        %2777 = vmatmul.f32.gmra.mxu0 %v2713
        %v2778 = vpop.f32.mrf.mxu0
        %v2779 = vadd.f32 0.0, %v2778
        %2780 = vmatmul.f32.gmra.mxu0 %v2715
        %v2781 = vpop.f32.mrf.mxu0
        %v2782 = vadd.f32 0.0, %v2781
        %2783 = vmatmul.f32.gmra.mxu0 %v2717
        %v2784 = vpop.f32.mrf.mxu0
        %v2785 = vadd.f32 0.0, %v2784
        %2786 = vmatmul.f32.gmra.mxu0 %v2719
        %v2787 = vpop.f32.mrf.mxu0
        %v2788 = vadd.f32 0.0, %v2787
        %2789 = vmatmul.f32.gmra.mxu0 %v2721
        %v2790 = vpop.f32.mrf.mxu0
        %v2791 = vadd.f32 0.0, %v2790
        %2792 = vmatmul.f32.gmra.mxu0 %v2723
        %v2793 = vpop.f32.mrf.mxu0
        %v2794 = vadd.f32 0.0, %v2793
        %2795 = vmatmul.f32.gmra.mxu0 %v2725
        %v2796 = vpop.f32.mrf.mxu0
        %v2797 = vadd.f32 0.0, %v2796
        %2798 = vmatmul.f32.gmra.mxu0 %v2727
        %v2799 = vpop.f32.mrf.mxu0
        %v2800 = vadd.f32 0.0, %v2799
        %2801 = vmatmul.f32.gmra.mxu0 %v2729
        %v2802 = vpop.f32.mrf.mxu0
        %v2803 = vadd.f32 0.0, %v2802
        %2804 = vmatmul.f32.gmra.mxu0 %v2731
        %v2805 = vpop.f32.mrf.mxu0
        %v2806 = vadd.f32 0.0, %v2805
        %2807 = vmatmul.f32.gmra.mxu0 %v2733
        %v2808 = vpop.f32.mrf.mxu0
        %v2809 = vadd.f32 0.0, %v2808
        %2810 = vmatmul.f32.gmra.mxu0 %v2735
        %v2811 = vpop.f32.mrf.mxu0
        %v2812 = vadd.f32 0.0, %v2811
        %2813 = vmatmul.f32.gmra.mxu0 %v2737
        %v2814 = vpop.f32.mrf.mxu0
        %v2815 = vadd.f32 0.0, %v2814
        %2816 = vmatmul.f32.gmra.mxu0 %v2739
        %v2817 = vpop.f32.mrf.mxu0
        %v2818 = vadd.f32 0.0, %v2817
        %2819 = vmatmul.f32.gmra.mxu0 %v2741
        %v2820 = vpop.f32.mrf.mxu0
        %v2821 = vadd.f32 0.0, %v2820
        %2822 = vdwg.mxu0
        %2823 = vmatpush.msra.mxu0 0.0
        %2824 = vmatpush.msra.mxu0 0.0
        %2825 = vmatpush.msra.mxu0 0.0
        %2826 = vmatpush.msra.mxu0 0.0
        %2827 = vmatpush.msra.mxu0 0.0
        %2828 = vmatpush.msra.mxu0 0.0
        %2829 = vmatpush.msra.mxu0 0.0
        %2830 = vmatpush.msra.mxu0 0.0
        %2831 = vmatpush.msra.mxu0 0.0
        %2832 = vmatpush.msra.mxu0 0.0
        %2833 = vmatpush.msra.mxu0 0.0
        %2834 = vmatpush.msra.mxu0 0.0
        %2835 = vmatpush.msra.mxu0 %v663
        %2836 = vmatpush.msra.mxu0 %v660
        %2837 = vmatpush.msra.mxu0 %v657
        %2838 = vmatpush.msra.mxu0 %v654
        %2839 = vmatmul.f32.gmra.mxu0 %v2701
        %v2840 = vpop.f32.mrf.mxu0
        %v2841 = vadd.f32 0.0, %v2840
        %2842 = vmatmul.f32.gmra.mxu0 %v2703
        %v2843 = vpop.f32.mrf.mxu0
        %v2844 = vadd.f32 0.0, %v2843
        %2845 = vmatmul.f32.gmra.mxu0 %v2705
        %v2846 = vpop.f32.mrf.mxu0
        %v2847 = vadd.f32 0.0, %v2846
        %2848 = vmatmul.f32.gmra.mxu0 %v2707
        %v2849 = vpop.f32.mrf.mxu0
        %v2850 = vadd.f32 0.0, %v2849
        %2851 = vmatmul.f32.gmra.mxu0 %v2709
        %v2852 = vpop.f32.mrf.mxu0
        %v2853 = vadd.f32 0.0, %v2852
        %2854 = vmatmul.f32.gmra.mxu0 %v2711
        %v2855 = vpop.f32.mrf.mxu0
        %v2856 = vadd.f32 0.0, %v2855
        %2857 = vmatmul.f32.gmra.mxu0 %v2713
        %v2858 = vpop.f32.mrf.mxu0
        %v2859 = vadd.f32 0.0, %v2858
        %2860 = vmatmul.f32.gmra.mxu0 %v2715
        %v2861 = vpop.f32.mrf.mxu0
        %v2862 = vadd.f32 0.0, %v2861
        %2863 = vmatmul.f32.gmra.mxu0 %v2717
        %v2864 = vpop.f32.mrf.mxu0
        %v2865 = vadd.f32 0.0, %v2864
        %2866 = vmatmul.f32.gmra.mxu0 %v2719
        %v2867 = vpop.f32.mrf.mxu0
        %v2868 = vadd.f32 0.0, %v2867
        %2869 = vmatmul.f32.gmra.mxu0 %v2721
        %v2870 = vpop.f32.mrf.mxu0
        %v2871 = vadd.f32 0.0, %v2870
        %2872 = vmatmul.f32.gmra.mxu0 %v2723
        %v2873 = vpop.f32.mrf.mxu0
        %v2874 = vadd.f32 0.0, %v2873
        %2875 = vmatmul.f32.gmra.mxu0 %v2725
        %v2876 = vpop.f32.mrf.mxu0
        %v2877 = vadd.f32 0.0, %v2876
        %2878 = vmatmul.f32.gmra.mxu0 %v2727
        %v2879 = vpop.f32.mrf.mxu0
        %v2880 = vadd.f32 0.0, %v2879
        %2881 = vmatmul.f32.gmra.mxu0 %v2729
        %v2882 = vpop.f32.mrf.mxu0
        %v2883 = vadd.f32 0.0, %v2882
        %2884 = vmatmul.f32.gmra.mxu0 %v2731
        %v2885 = vpop.f32.mrf.mxu0
        %v2886 = vadd.f32 0.0, %v2885
        %2887 = vmatmul.f32.gmra.mxu0 %v2733
        %v2888 = vpop.f32.mrf.mxu0
        %v2889 = vadd.f32 0.0, %v2888
        %2890 = vmatmul.f32.gmra.mxu0 %v2735
        %v2891 = vpop.f32.mrf.mxu0
        %v2892 = vadd.f32 0.0, %v2891
        %2893 = vmatmul.f32.gmra.mxu0 %v2737
        %v2894 = vpop.f32.mrf.mxu0
        %v2895 = vadd.f32 0.0, %v2894
        %2896 = vmatmul.f32.gmra.mxu0 %v2739
        %v2897 = vpop.f32.mrf.mxu0
        %v2898 = vadd.f32 0.0, %v2897
        %2899 = vmatmul.f32.gmra.mxu0 %v2741
        %v2900 = vpop.f32.mrf.mxu0
        %v2901 = vadd.f32 0.0, %v2900
        %2902 = vdwg.mxu0
        %2903 = vmatpush.msra.mxu0 0.0
        %2904 = vmatpush.msra.mxu0 0.0
        %2905 = vmatpush.msra.mxu0 0.0
        %2906 = vmatpush.msra.mxu0 0.0
        %2907 = vmatpush.msra.mxu0 0.0
        %2908 = vmatpush.msra.mxu0 0.0
        %2909 = vmatpush.msra.mxu0 0.0
        %2910 = vmatpush.msra.mxu0 0.0
        %2911 = vmatpush.msra.mxu0 0.0
        %2912 = vmatpush.msra.mxu0 0.0
        %2913 = vmatpush.msra.mxu0 0.0
        %2914 = vmatpush.msra.mxu0 0.0
        %2915 = vmatpush.msra.mxu0 %v664
        %2916 = vmatpush.msra.mxu0 %v661
        %2917 = vmatpush.msra.mxu0 %v658
        %2918 = vmatpush.msra.mxu0 %v655
        %2919 = vmatmul.f32.gmra.mxu0 %v2701
        %v2920 = vpop.f32.mrf.mxu0
        %v2921 = vadd.f32 0.0, %v2920
        %2922 = vmatmul.f32.gmra.mxu0 %v2703
        %v2923 = vpop.f32.mrf.mxu0
        %v2924 = vadd.f32 0.0, %v2923
        %2925 = vmatmul.f32.gmra.mxu0 %v2705
        %v2926 = vpop.f32.mrf.mxu0
        %v2927 = vadd.f32 0.0, %v2926
        %2928 = vmatmul.f32.gmra.mxu0 %v2707
        %v2929 = vpop.f32.mrf.mxu0
        %v2930 = vadd.f32 0.0, %v2929
        %2931 = vmatmul.f32.gmra.mxu0 %v2709
        %v2932 = vpop.f32.mrf.mxu0
        %v2933 = vadd.f32 0.0, %v2932
        %2934 = vmatmul.f32.gmra.mxu0 %v2711
        %v2935 = vpop.f32.mrf.mxu0
        %v2936 = vadd.f32 0.0, %v2935
        %2937 = vmatmul.f32.gmra.mxu0 %v2713
        %v2938 = vpop.f32.mrf.mxu0
        %v2939 = vadd.f32 0.0, %v2938
        %2940 = vmatmul.f32.gmra.mxu0 %v2715
        %v2941 = vpop.f32.mrf.mxu0
        %v2942 = vadd.f32 0.0, %v2941
        %2943 = vmatmul.f32.gmra.mxu0 %v2717
        %v2944 = vpop.f32.mrf.mxu0
        %v2945 = vadd.f32 0.0, %v2944
        %2946 = vmatmul.f32.gmra.mxu0 %v2719
        %v2947 = vpop.f32.mrf.mxu0
        %v2948 = vadd.f32 0.0, %v2947
        %2949 = vmatmul.f32.gmra.mxu0 %v2721
        %v2950 = vpop.f32.mrf.mxu0
        %v2951 = vadd.f32 0.0, %v2950
        %2952 = vmatmul.f32.gmra.mxu0 %v2723
        %v2953 = vpop.f32.mrf.mxu0
        %v2954 = vadd.f32 0.0, %v2953
        %2955 = vmatmul.f32.gmra.mxu0 %v2725
        %v2956 = vpop.f32.mrf.mxu0
        %v2957 = vadd.f32 0.0, %v2956
        %2958 = vmatmul.f32.gmra.mxu0 %v2727
        %v2959 = vpop.f32.mrf.mxu0
        %v2960 = vadd.f32 0.0, %v2959
        %2961 = vmatmul.f32.gmra.mxu0 %v2729
        %v2962 = vpop.f32.mrf.mxu0
        %v2963 = vadd.f32 0.0, %v2962
        %2964 = vmatmul.f32.gmra.mxu0 %v2731
        %v2965 = vpop.f32.mrf.mxu0
        %v2966 = vadd.f32 0.0, %v2965
        %2967 = vmatmul.f32.gmra.mxu0 %v2733
        %v2968 = vpop.f32.mrf.mxu0
        %v2969 = vadd.f32 0.0, %v2968
        %2970 = vmatmul.f32.gmra.mxu0 %v2735
        %v2971 = vpop.f32.mrf.mxu0
        %v2972 = vadd.f32 0.0, %v2971
        %2973 = vmatmul.f32.gmra.mxu0 %v2737
        %v2974 = vpop.f32.mrf.mxu0
        %v2975 = vadd.f32 0.0, %v2974
        %2976 = vmatmul.f32.gmra.mxu0 %v2739
        %v2977 = vpop.f32.mrf.mxu0
        %v2978 = vadd.f32 0.0, %v2977
        %2979 = vmatmul.f32.gmra.mxu0 %v2741
        %v2980 = vpop.f32.mrf.mxu0
        %v2981 = vadd.f32 0.0, %v2980
        %2982 = vdwg.mxu0
        %v2983 = vadd.f32 %v2841, %v993
        %v2984 = vadd.f32 %v2921, %v993
        %v2985 = vadd.f32 %v2844, %v993
        %v2986 = vadd.f32 %v2924, %v993
        %v2987 = vadd.f32 %v2847, %v993
        %v2988 = vadd.f32 %v2927, %v993
        %v2989 = vadd.f32 %v2850, %v993
        %v2990 = vadd.f32 %v2930, %v993
        %v2991 = vadd.f32 %v2853, %v993
        %v2992 = vadd.f32 %v2933, %v993
        %v2993 = vadd.f32 %v2856, %v993
        %v2994 = vadd.f32 %v2936, %v993
        %v2995 = vadd.f32 %v2859, %v993
        %v2996 = vadd.f32 %v2939, %v993
        %v2997 = vadd.f32 %v2862, %v993
        %v2998 = vadd.f32 %v2942, %v993
        %v2999 = vadd.f32 %v2865, %v993
        %v3000 = vadd.f32 %v2945, %v993
        %v3001 = vadd.f32 %v2868, %v993
        %v3002 = vadd.f32 %v2948, %v993
        %v3003 = vadd.f32 %v2871, %v993
        %v3004 = vadd.f32 %v2951, %v993
        %v3005 = vadd.f32 %v2874, %v993
        %v3006 = vadd.f32 %v2954, %v993
        %v3007 = vadd.f32 %v2877, %v993
        %v3008 = vadd.f32 %v2957, %v993
        %v3009 = vadd.f32 %v2880, %v993
        %v3010 = vadd.f32 %v2960, %v993
        %v3011 = vadd.f32 %v2883, %v993
        %v3012 = vadd.f32 %v2963, %v993
        %v3013 = vadd.f32 %v2886, %v993
        %v3014 = vadd.f32 %v2966, %v993
        %v3015 = vadd.f32 %v2889, %v993
        %v3016 = vadd.f32 %v2969, %v993
        %v3017 = vadd.f32 %v2892, %v993
        %v3018 = vadd.f32 %v2972, %v993
        %v3019 = vadd.f32 %v2895, %v993
        %v3020 = vadd.f32 %v2975, %v993
        %v3021 = vadd.f32 %v2898, %v993
        %v3022 = vadd.f32 %v2978, %v993
        %v3023 = vadd.f32 %v2901, %v993
        %v3024 = vadd.f32 %v2981, %v993
        %3067 = vrot.lane.b32.xlu0 %v2761, 32
        %v3068 = vpop.permute.xlu0 %3067
        %3069 = vrot.lane.b32.xlu0 %v2841, 32
        %v3070 = vpop.permute.xlu0 %3069
        %3071 = vrot.lane.b32.xlu0 %v2764, 32
        %v3072 = vpop.permute.xlu0 %3071
        %3073 = vrot.lane.b32.xlu0 %v2844, 32
        %v3074 = vpop.permute.xlu0 %3073
        %3075 = vrot.lane.b32.xlu0 %v2767, 32
        %v3076 = vpop.permute.xlu0 %3075
        %3077 = vrot.lane.b32.xlu0 %v2847, 32
        %v3078 = vpop.permute.xlu0 %3077
        %3079 = vrot.lane.b32.xlu0 %v2770, 32
        %v3080 = vpop.permute.xlu0 %3079
        %3081 = vrot.lane.b32.xlu0 %v2850, 32
        %v3082 = vpop.permute.xlu0 %3081
        %3083 = vrot.lane.b32.xlu0 %v2773, 32
        %v3084 = vpop.permute.xlu0 %3083
        %3085 = vrot.lane.b32.xlu0 %v2853, 32
        %v3086 = vpop.permute.xlu0 %3085
        %3087 = vrot.lane.b32.xlu0 %v2776, 32
        %v3088 = vpop.permute.xlu0 %3087
        %3089 = vrot.lane.b32.xlu0 %v2856, 32
        %v3090 = vpop.permute.xlu0 %3089
        %3091 = vrot.lane.b32.xlu0 %v2779, 32
        %v3092 = vpop.permute.xlu0 %3091
        %3093 = vrot.lane.b32.xlu0 %v2859, 32
        %v3094 = vpop.permute.xlu0 %3093
        %3095 = vrot.lane.b32.xlu0 %v2782, 32
        %v3096 = vpop.permute.xlu0 %3095
        %3097 = vrot.lane.b32.xlu0 %v2862, 32
        %v3098 = vpop.permute.xlu0 %3097
        %3099 = vrot.lane.b32.xlu0 %v2785, 32
        %v3100 = vpop.permute.xlu0 %3099
        %3101 = vrot.lane.b32.xlu0 %v2865, 32
        %v3102 = vpop.permute.xlu0 %3101
        %3103 = vrot.lane.b32.xlu0 %v2788, 32
        %v3104 = vpop.permute.xlu0 %3103
        %3105 = vrot.lane.b32.xlu0 %v2868, 32
        %v3106 = vpop.permute.xlu0 %3105
        %3107 = vrot.lane.b32.xlu0 %v2791, 32
        %v3108 = vpop.permute.xlu0 %3107
        %3109 = vrot.lane.b32.xlu0 %v2871, 32
        %v3110 = vpop.permute.xlu0 %3109
        %3111 = vrot.lane.b32.xlu0 %v2794, 32
        %v3112 = vpop.permute.xlu0 %3111
        %3113 = vrot.lane.b32.xlu0 %v2874, 32
        %v3114 = vpop.permute.xlu0 %3113
        %3115 = vrot.lane.b32.xlu0 %v2797, 32
        %v3116 = vpop.permute.xlu0 %3115
        %3117 = vrot.lane.b32.xlu0 %v2877, 32
        %v3118 = vpop.permute.xlu0 %3117
        %3119 = vrot.lane.b32.xlu0 %v2800, 32
        %v3120 = vpop.permute.xlu0 %3119
        %3121 = vrot.lane.b32.xlu0 %v2880, 32
        %v3122 = vpop.permute.xlu0 %3121
        %3123 = vrot.lane.b32.xlu0 %v2803, 32
        %v3124 = vpop.permute.xlu0 %3123
        %3125 = vrot.lane.b32.xlu0 %v2883, 32
        %v3126 = vpop.permute.xlu0 %3125
        %3127 = vrot.lane.b32.xlu0 %v2806, 32
        %v3128 = vpop.permute.xlu0 %3127
        %3129 = vrot.lane.b32.xlu0 %v2886, 32
        %v3130 = vpop.permute.xlu0 %3129
        %3131 = vrot.lane.b32.xlu0 %v2809, 32
        %v3132 = vpop.permute.xlu0 %3131
        %3133 = vrot.lane.b32.xlu0 %v2889, 32
        %v3134 = vpop.permute.xlu0 %3133
        %3135 = vrot.lane.b32.xlu0 %v2812, 32
        %v3136 = vpop.permute.xlu0 %3135
        %3137 = vrot.lane.b32.xlu0 %v2892, 32
        %v3138 = vpop.permute.xlu0 %3137
        %3139 = vrot.lane.b32.xlu0 %v2815, 32
        %v3140 = vpop.permute.xlu0 %3139
        %3141 = vrot.lane.b32.xlu0 %v2895, 32
        %v3142 = vpop.permute.xlu0 %3141
        %3143 = vrot.lane.b32.xlu0 %v2818, 32
        %v3144 = vpop.permute.xlu0 %3143
        %3145 = vrot.lane.b32.xlu0 %v2898, 32
        %v3146 = vpop.permute.xlu0 %3145
        %3147 = vrot.lane.b32.xlu0 %v2821, 32
        %v3148 = vpop.permute.xlu0 %3147
        %3149 = vrot.lane.b32.xlu0 %v2901, 32
        %v3150 = vpop.permute.xlu0 %3149
        %v3151 = vsel %vm686, %v3068, %v3070
        %v3152 = vsel %vm686, %v3072, %v3074
        %v3153 = vsel %vm686, %v3076, %v3078
        %v3154 = vsel %vm686, %v3080, %v3082
        %v3155 = vsel %vm686, %v3084, %v3086
        %v3156 = vsel %vm686, %v3088, %v3090
        %v3157 = vsel %vm686, %v3092, %v3094
        %v3158 = vsel %vm686, %v3096, %v3098
        %v3159 = vsel %vm686, %v3100, %v3102
        %v3160 = vsel %vm686, %v3104, %v3106
        %v3161 = vsel %vm686, %v3108, %v3110
        %v3162 = vsel %vm686, %v3112, %v3114
        %v3163 = vsel %vm686, %v3116, %v3118
        %v3164 = vsel %vm686, %v3120, %v3122
        %v3165 = vsel %vm686, %v3124, %v3126
        %v3166 = vsel %vm686, %v3128, %v3130
        %v3167 = vsel %vm686, %v3132, %v3134
        %v3168 = vsel %vm686, %v3136, %v3138
        %v3169 = vsel %vm686, %v3140, %v3142
        %v3170 = vsel %vm686, %v3144, %v3146
        %v3171 = vsel %vm686, %v3148, %v3150
        %3193 = vmatpush.msra.mxu0 %v3166
        %3194 = vmatpush.msra.mxu0 %v3165
        %3195 = vmatpush.msra.mxu0 %v3164
        %3196 = vmatpush.msra.mxu0 %v3163
        %3197 = vmatpush.msra.mxu0 %v3162
        %3198 = vmatpush.msra.mxu0 %v3161
        %3199 = vmatpush.msra.mxu0 %v3160
        %3200 = vmatpush.msra.mxu0 %v3159
        %3201 = vmatpush.msra.mxu0 %v3158
        %3202 = vmatpush.msra.mxu0 %v3157
        %3203 = vmatpush.msra.mxu0 %v3156
        %3204 = vmatpush.msra.mxu0 %v3155
        %3205 = vmatpush.msra.mxu0 %v3154
        %3206 = vmatpush.msra.mxu0 %v3153
        %3207 = vmatpush.msra.mxu0 %v3152
        %3208 = vmatpush.msra.mxu0 %v3151
        %3209 = vmatmul.f32.gmra.mxu0 %v354
        %v3210 = vpop.f32.mrf.mxu0
        %v3211 = vadd.f32 0.0, %v3210
        %3212 = vmatmul.f32.gmra.mxu0 %v356
        %v3213 = vpop.f32.mrf.mxu0
        %v3214 = vadd.f32 0.0, %v3213
        %3215 = vmatmul.f32.gmra.mxu0 %v358
        %v3216 = vpop.f32.mrf.mxu0
        %v3217 = vadd.f32 0.0, %v3216
        %3218 = vmatmul.f32.gmra.mxu0 %v360
        %v3219 = vpop.f32.mrf.mxu0
        %v3220 = vadd.f32 0.0, %v3219
        %3221 = vmatmul.f32.gmra.mxu0 %v362
        %v3222 = vpop.f32.mrf.mxu0
        %v3223 = vadd.f32 0.0, %v3222
        %3224 = vmatmul.f32.gmra.mxu0 %v364
        %v3225 = vpop.f32.mrf.mxu0
        %v3226 = vadd.f32 0.0, %v3225
        %3227 = vmatmul.f32.gmra.mxu0 %v366
        %v3228 = vpop.f32.mrf.mxu0
        %v3229 = vadd.f32 0.0, %v3228
        %3230 = vmatmul.f32.gmra.mxu0 %v368
        %v3231 = vpop.f32.mrf.mxu0
        %v3232 = vadd.f32 0.0, %v3231
        %3233 = vmatmul.f32.gmra.mxu0 %v370
        %v3234 = vpop.f32.mrf.mxu0
        %v3235 = vadd.f32 0.0, %v3234
        %3236 = vmatmul.f32.gmra.mxu0 %v372
        %v3237 = vpop.f32.mrf.mxu0
        %v3238 = vadd.f32 0.0, %v3237
        %3239 = vmatmul.f32.gmra.mxu0 %v374
        %v3240 = vpop.f32.mrf.mxu0
        %v3241 = vadd.f32 0.0, %v3240
        %3242 = vmatmul.f32.gmra.mxu0 %v376
        %v3243 = vpop.f32.mrf.mxu0
        %v3244 = vadd.f32 0.0, %v3243
        %3245 = vmatmul.f32.gmra.mxu0 %v378
        %v3246 = vpop.f32.mrf.mxu0
        %v3247 = vadd.f32 0.0, %v3246
        %3248 = vmatmul.f32.gmra.mxu0 %v380
        %v3249 = vpop.f32.mrf.mxu0
        %v3250 = vadd.f32 0.0, %v3249
        %3251 = vmatmul.f32.gmra.mxu0 %v382
        %v3252 = vpop.f32.mrf.mxu0
        %v3253 = vadd.f32 0.0, %v3252
        %3254 = vmatmul.f32.gmra.mxu0 %v384
        %v3255 = vpop.f32.mrf.mxu0
        %v3256 = vadd.f32 0.0, %v3255
        %3257 = vmatmul.f32.gmra.mxu0 %v386
        %v3258 = vpop.f32.mrf.mxu0
        %v3259 = vadd.f32 0.0, %v3258
        %3260 = vmatmul.f32.gmra.mxu0 %v388
        %v3261 = vpop.f32.mrf.mxu0
        %v3262 = vadd.f32 0.0, %v3261
        %3263 = vmatmul.f32.gmra.mxu0 %v390
        %v3264 = vpop.f32.mrf.mxu0
        %v3265 = vadd.f32 0.0, %v3264
        %3266 = vmatmul.f32.gmra.mxu0 %v392
        %v3267 = vpop.f32.mrf.mxu0
        %v3268 = vadd.f32 0.0, %v3267
        %3269 = vmatmul.f32.gmra.mxu0 %v394
        %v3270 = vpop.f32.mrf.mxu0
        %v3271 = vadd.f32 0.0, %v3270
        %3272 = vdwg.mxu0
        %3273 = vmatpush.msra.mxu0 0.0
        %3274 = vmatpush.msra.mxu0 0.0
        %3275 = vmatpush.msra.mxu0 0.0
        %3276 = vmatpush.msra.mxu0 0.0
        %3277 = vmatpush.msra.mxu0 0.0
        %3278 = vmatpush.msra.mxu0 0.0
        %3279 = vmatpush.msra.mxu0 0.0
        %3280 = vmatpush.msra.mxu0 0.0
        %3281 = vmatpush.msra.mxu0 0.0
        %3282 = vmatpush.msra.mxu0 0.0
        %3283 = vmatpush.msra.mxu0 0.0
        %3284 = vmatpush.msra.mxu0 %v3171
        %3285 = vmatpush.msra.mxu0 %v3170
        %3286 = vmatpush.msra.mxu0 %v3169
        %3287 = vmatpush.msra.mxu0 %v3168
        %3288 = vmatpush.msra.mxu0 %v3167
        %3289 = vmatmul.f32.gmra.mxu0 %v1206
        %v3290 = vpop.f32.mrf.mxu0
        %v3291 = vadd.f32 %v3211, %v3290
        %3292 = vmatmul.f32.gmra.mxu0 %v1209
        %v3293 = vpop.f32.mrf.mxu0
        %v3294 = vadd.f32 %v3214, %v3293
        %3295 = vmatmul.f32.gmra.mxu0 %v1212
        %v3296 = vpop.f32.mrf.mxu0
        %v3297 = vadd.f32 %v3217, %v3296
        %3298 = vmatmul.f32.gmra.mxu0 %v1215
        %v3299 = vpop.f32.mrf.mxu0
        %v3300 = vadd.f32 %v3220, %v3299
        %3301 = vmatmul.f32.gmra.mxu0 %v1218
        %v3302 = vpop.f32.mrf.mxu0
        %v3303 = vadd.f32 %v3223, %v3302
        %3304 = vmatmul.f32.gmra.mxu0 %v1221
        %v3305 = vpop.f32.mrf.mxu0
        %v3306 = vadd.f32 %v3226, %v3305
        %3307 = vmatmul.f32.gmra.mxu0 %v1224
        %v3308 = vpop.f32.mrf.mxu0
        %v3309 = vadd.f32 %v3229, %v3308
        %3310 = vmatmul.f32.gmra.mxu0 %v1227
        %v3311 = vpop.f32.mrf.mxu0
        %v3312 = vadd.f32 %v3232, %v3311
        %3313 = vmatmul.f32.gmra.mxu0 %v1230
        %v3314 = vpop.f32.mrf.mxu0
        %v3315 = vadd.f32 %v3235, %v3314
        %3316 = vmatmul.f32.gmra.mxu0 %v1233
        %v3317 = vpop.f32.mrf.mxu0
        %v3318 = vadd.f32 %v3238, %v3317
        %3319 = vmatmul.f32.gmra.mxu0 %v1236
        %v3320 = vpop.f32.mrf.mxu0
        %v3321 = vadd.f32 %v3241, %v3320
        %3322 = vmatmul.f32.gmra.mxu0 %v1239
        %v3323 = vpop.f32.mrf.mxu0
        %v3324 = vadd.f32 %v3244, %v3323
        %3325 = vmatmul.f32.gmra.mxu0 %v1242
        %v3326 = vpop.f32.mrf.mxu0
        %v3327 = vadd.f32 %v3247, %v3326
        %3328 = vmatmul.f32.gmra.mxu0 %v1245
        %v3329 = vpop.f32.mrf.mxu0
        %v3330 = vadd.f32 %v3250, %v3329
        %3331 = vmatmul.f32.gmra.mxu0 %v1248
        %v3332 = vpop.f32.mrf.mxu0
        %v3333 = vadd.f32 %v3253, %v3332
        %3334 = vmatmul.f32.gmra.mxu0 %v1251
        %v3335 = vpop.f32.mrf.mxu0
        %v3336 = vadd.f32 %v3256, %v3335
        %3337 = vmatmul.f32.gmra.mxu0 %v1254
        %v3338 = vpop.f32.mrf.mxu0
        %v3339 = vadd.f32 %v3259, %v3338
        %3340 = vmatmul.f32.gmra.mxu0 %v1257
        %v3341 = vpop.f32.mrf.mxu0
        %v3342 = vadd.f32 %v3262, %v3341
        %3343 = vmatmul.f32.gmra.mxu0 %v1260
        %v3344 = vpop.f32.mrf.mxu0
        %v3345 = vadd.f32 %v3265, %v3344
        %3346 = vmatmul.f32.gmra.mxu0 %v1263
        %v3347 = vpop.f32.mrf.mxu0
        %v3348 = vadd.f32 %v3268, %v3347
        %3349 = vmatmul.f32.gmra.mxu0 %v1266
        %v3350 = vpop.f32.mrf.mxu0
        %v3351 = vadd.f32 %v3271, %v3350
        %3352 = vdwg.mxu0
        %3353 = vmatpush.msra.mxu0 %v2806
        %3354 = vmatpush.msra.mxu0 %v2803
        %3355 = vmatpush.msra.mxu0 %v2800
        %3356 = vmatpush.msra.mxu0 %v2797
        %3357 = vmatpush.msra.mxu0 %v2794
        %3358 = vmatpush.msra.mxu0 %v2791
        %3359 = vmatpush.msra.mxu0 %v2788
        %3360 = vmatpush.msra.mxu0 %v2785
        %3361 = vmatpush.msra.mxu0 %v2782
        %3362 = vmatpush.msra.mxu0 %v2779
        %3363 = vmatpush.msra.mxu0 %v2776
        %3364 = vmatpush.msra.mxu0 %v2773
        %3365 = vmatpush.msra.mxu0 %v2770
        %3366 = vmatpush.msra.mxu0 %v2767
        %3367 = vmatpush.msra.mxu0 %v2764
        %3368 = vmatpush.msra.mxu0 %v2761
        %3369 = vmatmul.f32.gmra.mxu0 %v312
        %v3370 = vpop.f32.mrf.mxu0
        %v3371 = vadd.f32 %v3291, %v3370
        %3372 = vmatmul.f32.gmra.mxu0 %v314
        %v3373 = vpop.f32.mrf.mxu0
        %v3374 = vadd.f32 %v3294, %v3373
        %3375 = vmatmul.f32.gmra.mxu0 %v316
        %v3376 = vpop.f32.mrf.mxu0
        %v3377 = vadd.f32 %v3297, %v3376
        %3378 = vmatmul.f32.gmra.mxu0 %v318
        %v3379 = vpop.f32.mrf.mxu0
        %v3380 = vadd.f32 %v3300, %v3379
        %3381 = vmatmul.f32.gmra.mxu0 %v320
        %v3382 = vpop.f32.mrf.mxu0
        %v3383 = vadd.f32 %v3303, %v3382
        %3384 = vmatmul.f32.gmra.mxu0 %v322
        %v3385 = vpop.f32.mrf.mxu0
        %v3386 = vadd.f32 %v3306, %v3385
        %3387 = vmatmul.f32.gmra.mxu0 %v324
        %v3388 = vpop.f32.mrf.mxu0
        %v3389 = vadd.f32 %v3309, %v3388
        %3390 = vmatmul.f32.gmra.mxu0 %v326
        %v3391 = vpop.f32.mrf.mxu0
        %v3392 = vadd.f32 %v3312, %v3391
        %3393 = vmatmul.f32.gmra.mxu0 %v328
        %v3394 = vpop.f32.mrf.mxu0
        %v3395 = vadd.f32 %v3315, %v3394
        %3396 = vmatmul.f32.gmra.mxu0 %v330
        %v3397 = vpop.f32.mrf.mxu0
        %v3398 = vadd.f32 %v3318, %v3397
        %3399 = vmatmul.f32.gmra.mxu0 %v332
        %v3400 = vpop.f32.mrf.mxu0
        %v3401 = vadd.f32 %v3321, %v3400
        %3402 = vmatmul.f32.gmra.mxu0 %v334
        %v3403 = vpop.f32.mrf.mxu0
        %v3404 = vadd.f32 %v3324, %v3403
        %3405 = vmatmul.f32.gmra.mxu0 %v336
        %v3406 = vpop.f32.mrf.mxu0
        %v3407 = vadd.f32 %v3327, %v3406
        %3408 = vmatmul.f32.gmra.mxu0 %v338
        %v3409 = vpop.f32.mrf.mxu0
        %v3410 = vadd.f32 %v3330, %v3409
        %3411 = vmatmul.f32.gmra.mxu0 %v340
        %v3412 = vpop.f32.mrf.mxu0
        %v3413 = vadd.f32 %v3333, %v3412
        %3414 = vmatmul.f32.gmra.mxu0 %v342
        %v3415 = vpop.f32.mrf.mxu0
        %v3416 = vadd.f32 %v3336, %v3415
        %3417 = vmatmul.f32.gmra.mxu0 %v344
        %v3418 = vpop.f32.mrf.mxu0
        %v3419 = vadd.f32 %v3339, %v3418
        %3420 = vmatmul.f32.gmra.mxu0 %v346
        %v3421 = vpop.f32.mrf.mxu0
        %v3422 = vadd.f32 %v3342, %v3421
        %3423 = vmatmul.f32.gmra.mxu0 %v348
        %v3424 = vpop.f32.mrf.mxu0
        %v3425 = vadd.f32 %v3345, %v3424
        %3426 = vmatmul.f32.gmra.mxu0 %v350
        %v3427 = vpop.f32.mrf.mxu0
        %v3428 = vadd.f32 %v3348, %v3427
        %3429 = vmatmul.f32.gmra.mxu0 %v352
        %v3430 = vpop.f32.mrf.mxu0
        %v3431 = vadd.f32 %v3351, %v3430
        %3432 = vdwg.mxu0
        %3433 = vmatpush.msra.mxu0 0.0
        %3434 = vmatpush.msra.mxu0 0.0
        %3435 = vmatpush.msra.mxu0 0.0
        %3436 = vmatpush.msra.mxu0 0.0
        %3437 = vmatpush.msra.mxu0 0.0
        %3438 = vmatpush.msra.mxu0 0.0
        %3439 = vmatpush.msra.mxu0 0.0
        %3440 = vmatpush.msra.mxu0 0.0
        %3441 = vmatpush.msra.mxu0 0.0
        %3442 = vmatpush.msra.mxu0 0.0
        %3443 = vmatpush.msra.mxu0 0.0
        %3444 = vmatpush.msra.mxu0 %v2821
        %3445 = vmatpush.msra.mxu0 %v2818
        %3446 = vmatpush.msra.mxu0 %v2815
        %3447 = vmatpush.msra.mxu0 %v2812
        %3448 = vmatpush.msra.mxu0 %v2809
        %3449 = vmatmul.f32.gmra.mxu0 %v1429
        %v3450 = vpop.f32.mrf.mxu0
        %v3451 = vadd.f32 %v3371, %v3450
        %3452 = vmatmul.f32.gmra.mxu0 %v1432
        %v3453 = vpop.f32.mrf.mxu0
        %v3454 = vadd.f32 %v3374, %v3453
        %3455 = vmatmul.f32.gmra.mxu0 %v1435
        %v3456 = vpop.f32.mrf.mxu0
        %v3457 = vadd.f32 %v3377, %v3456
        %3458 = vmatmul.f32.gmra.mxu0 %v1438
        %v3459 = vpop.f32.mrf.mxu0
        %v3460 = vadd.f32 %v3380, %v3459
        %3461 = vmatmul.f32.gmra.mxu0 %v1441
        %v3462 = vpop.f32.mrf.mxu0
        %v3463 = vadd.f32 %v3383, %v3462
        %3464 = vmatmul.f32.gmra.mxu0 %v1444
        %v3465 = vpop.f32.mrf.mxu0
        %v3466 = vadd.f32 %v3386, %v3465
        %3467 = vmatmul.f32.gmra.mxu0 %v1447
        %v3468 = vpop.f32.mrf.mxu0
        %v3469 = vadd.f32 %v3389, %v3468
        %3470 = vmatmul.f32.gmra.mxu0 %v1450
        %v3471 = vpop.f32.mrf.mxu0
        %v3472 = vadd.f32 %v3392, %v3471
        %3473 = vmatmul.f32.gmra.mxu0 %v1453
        %v3474 = vpop.f32.mrf.mxu0
        %v3475 = vadd.f32 %v3395, %v3474
        %3476 = vmatmul.f32.gmra.mxu0 %v1456
        %v3477 = vpop.f32.mrf.mxu0
        %v3478 = vadd.f32 %v3398, %v3477
        %3479 = vmatmul.f32.gmra.mxu0 %v1459
        %v3480 = vpop.f32.mrf.mxu0
        %v3481 = vadd.f32 %v3401, %v3480
        %3482 = vmatmul.f32.gmra.mxu0 %v1462
        %v3483 = vpop.f32.mrf.mxu0
        %v3484 = vadd.f32 %v3404, %v3483
        %3485 = vmatmul.f32.gmra.mxu0 %v1465
        %v3486 = vpop.f32.mrf.mxu0
        %v3487 = vadd.f32 %v3407, %v3486
        %3488 = vmatmul.f32.gmra.mxu0 %v1468
        %v3489 = vpop.f32.mrf.mxu0
        %v3490 = vadd.f32 %v3410, %v3489
        %3491 = vmatmul.f32.gmra.mxu0 %v1471
        %v3492 = vpop.f32.mrf.mxu0
        %v3493 = vadd.f32 %v3413, %v3492
        %3494 = vmatmul.f32.gmra.mxu0 %v1474
        %v3495 = vpop.f32.mrf.mxu0
        %v3496 = vadd.f32 %v3416, %v3495
        %3497 = vmatmul.f32.gmra.mxu0 %v1477
        %v3498 = vpop.f32.mrf.mxu0
        %v3499 = vadd.f32 %v3419, %v3498
        %3500 = vmatmul.f32.gmra.mxu0 %v1480
        %v3501 = vpop.f32.mrf.mxu0
        %v3502 = vadd.f32 %v3422, %v3501
        %3503 = vmatmul.f32.gmra.mxu0 %v1483
        %v3504 = vpop.f32.mrf.mxu0
        %v3505 = vadd.f32 %v3425, %v3504
        %3506 = vmatmul.f32.gmra.mxu0 %v1486
        %v3507 = vpop.f32.mrf.mxu0
        %v3508 = vadd.f32 %v3428, %v3507
        %3509 = vmatmul.f32.gmra.mxu0 %v1489
        %v3510 = vpop.f32.mrf.mxu0
        %v3511 = vadd.f32 %v3431, %v3510
        %3512 = vdwg.mxu0
        %v3513 = vadd.f32 %v3451, %v632
        %v3514 = vadd.f32 %v3454, %v633
        %v3515 = vadd.f32 %v3457, %v634
        %v3516 = vadd.f32 %v3460, %v635
        %v3517 = vadd.f32 %v3463, %v636
        %v3518 = vadd.f32 %v3466, %v637
        %v3519 = vadd.f32 %v3469, %v638
        %v3520 = vadd.f32 %v3472, %v639
        %v3521 = vadd.f32 %v3475, %v640
        %v3522 = vadd.f32 %v3478, %v641
        %v3523 = vadd.f32 %v3481, %v642
        %v3524 = vadd.f32 %v3484, %v643
        %v3525 = vadd.f32 %v3487, %v644
        %v3526 = vadd.f32 %v3490, %v645
        %v3527 = vadd.f32 %v3493, %v646
        %v3528 = vadd.f32 %v3496, %v647
        %v3529 = vadd.f32 %v3499, %v648
        %v3530 = vadd.f32 %v3502, %v649
        %v3531 = vadd.f32 %v3505, %v650
        %v3532 = vadd.f32 %v3508, %v651
        %v3533 = vadd.f32 %v3511, %v652
        %3555 = vrot.lane.b32.xlu0 %v2983, 64
        %v3556 = vpop.permute.xlu0 %3555
        %3557 = vrot.lane.b32.xlu0 %v2985, 64
        %v3558 = vpop.permute.xlu0 %3557
        %3559 = vrot.lane.b32.xlu0 %v2987, 64
        %v3560 = vpop.permute.xlu0 %3559
        %3561 = vrot.lane.b32.xlu0 %v2989, 64
        %v3562 = vpop.permute.xlu0 %3561
        %3563 = vrot.lane.b32.xlu0 %v2991, 64
        %v3564 = vpop.permute.xlu0 %3563
        %3565 = vrot.lane.b32.xlu0 %v2993, 64
        %v3566 = vpop.permute.xlu0 %3565
        %3567 = vrot.lane.b32.xlu0 %v2995, 64
        %v3568 = vpop.permute.xlu0 %3567
        %3569 = vrot.lane.b32.xlu0 %v2997, 64
        %v3570 = vpop.permute.xlu0 %3569
        %3571 = vrot.lane.b32.xlu0 %v2999, 64
        %v3572 = vpop.permute.xlu0 %3571
        %3573 = vrot.lane.b32.xlu0 %v3001, 64
        %v3574 = vpop.permute.xlu0 %3573
        %3575 = vrot.lane.b32.xlu0 %v3003, 64
        %v3576 = vpop.permute.xlu0 %3575
        %3577 = vrot.lane.b32.xlu0 %v3005, 64
        %v3578 = vpop.permute.xlu0 %3577
        %3579 = vrot.lane.b32.xlu0 %v3007, 64
        %v3580 = vpop.permute.xlu0 %3579
        %3581 = vrot.lane.b32.xlu0 %v3009, 64
        %v3582 = vpop.permute.xlu0 %3581
        %3583 = vrot.lane.b32.xlu0 %v3011, 64
        %v3584 = vpop.permute.xlu0 %3583
        %3585 = vrot.lane.b32.xlu0 %v3013, 64
        %v3586 = vpop.permute.xlu0 %3585
        %3587 = vrot.lane.b32.xlu0 %v3015, 64
        %v3588 = vpop.permute.xlu0 %3587
        %3589 = vrot.lane.b32.xlu0 %v3017, 64
        %v3590 = vpop.permute.xlu0 %3589
        %3591 = vrot.lane.b32.xlu0 %v3019, 64
        %v3592 = vpop.permute.xlu0 %3591
        %3593 = vrot.lane.b32.xlu0 %v3021, 64
        %v3594 = vpop.permute.xlu0 %3593
        %3595 = vrot.lane.b32.xlu0 %v3023, 64
        %v3596 = vpop.permute.xlu0 %3595
        %v3618 = vadd.f32 %v3513, %v3556
        %v3619 = vadd.f32 %v3514, %v3558
        %v3620 = vadd.f32 %v3515, %v3560
        %v3621 = vadd.f32 %v3516, %v3562
        %v3622 = vadd.f32 %v3517, %v3564
        %v3623 = vadd.f32 %v3518, %v3566
        %v3624 = vadd.f32 %v3519, %v3568
        %v3625 = vadd.f32 %v3520, %v3570
        %v3626 = vadd.f32 %v3521, %v3572
        %v3627 = vadd.f32 %v3522, %v3574
        %v3628 = vadd.f32 %v3523, %v3576
        %v3629 = vadd.f32 %v3524, %v3578
        %v3630 = vadd.f32 %v3525, %v3580
        %v3631 = vadd.f32 %v3526, %v3582
        %v3632 = vadd.f32 %v3527, %v3584
        %v3633 = vadd.f32 %v3528, %v3586
        %v3634 = vadd.f32 %v3529, %v3588
        %v3635 = vadd.f32 %v3530, %v3590
        %v3636 = vadd.f32 %v3531, %v3592
        %v3637 = vadd.f32 %v3532, %v3594
        %v3638 = vadd.f32 %v3533, %v3596
        %v3639 = vxor.u32 %v3618, 2147483648
        %v3640 = vxor.u32 %v3619, 2147483648
        %v3641 = vxor.u32 %v3620, 2147483648
        %v3642 = vxor.u32 %v3621, 2147483648
        %v3643 = vxor.u32 %v3622, 2147483648
        %v3644 = vxor.u32 %v3623, 2147483648
        %v3645 = vxor.u32 %v3624, 2147483648
        %v3646 = vxor.u32 %v3625, 2147483648
        %v3647 = vxor.u32 %v3626, 2147483648
        %v3648 = vxor.u32 %v3627, 2147483648
        %v3649 = vxor.u32 %v3628, 2147483648
        %v3650 = vxor.u32 %v3629, 2147483648
        %v3651 = vxor.u32 %v3630, 2147483648
        %v3652 = vxor.u32 %v3631, 2147483648
        %v3653 = vxor.u32 %v3632, 2147483648
        %v3654 = vxor.u32 %v3633, 2147483648
        %v3655 = vxor.u32 %v3634, 2147483648
        %v3656 = vxor.u32 %v3635, 2147483648
        %v3657 = vxor.u32 %v3636, 2147483648
        %v3658 = vxor.u32 %v3637, 2147483648
        %v3659 = vxor.u32 %v3638, 2147483648
        %v3660 = vmul.f32 %v3639, 1.442695
        %v3661 = vpow.pop %v3660
        %v3662 = vmul.f32 %v3640, 1.442695
        %v3663 = vpow.pop %v3662
        %v3664 = vmul.f32 %v3641, 1.442695
        %v3665 = vpow.pop %v3664
        %v3666 = vmul.f32 %v3642, 1.442695
        %v3667 = vpow.pop %v3666
        %v3668 = vmul.f32 %v3643, 1.442695
        %v3669 = vpow.pop %v3668
        %v3670 = vmul.f32 %v3644, 1.442695
        %v3671 = vpow.pop %v3670
        %v3672 = vmul.f32 %v3645, 1.442695
        %v3673 = vpow.pop %v3672
        %v3674 = vmul.f32 %v3646, 1.442695
        %v3675 = vpow.pop %v3674
        %v3676 = vmul.f32 %v3647, 1.442695
        %v3677 = vpow.pop %v3676
        %v3678 = vmul.f32 %v3648, 1.442695
        %v3679 = vpow.pop %v3678
        %v3680 = vmul.f32 %v3649, 1.442695
        %v3681 = vpow.pop %v3680
        %v3682 = vmul.f32 %v3650, 1.442695
        %v3683 = vpow.pop %v3682
        %v3684 = vmul.f32 %v3651, 1.442695
        %v3685 = vpow.pop %v3684
        %v3686 = vmul.f32 %v3652, 1.442695
        %v3687 = vpow.pop %v3686
        %v3688 = vmul.f32 %v3653, 1.442695
        %v3689 = vpow.pop %v3688
        %v3690 = vmul.f32 %v3654, 1.442695
        %v3691 = vpow.pop %v3690
        %v3692 = vmul.f32 %v3655, 1.442695
        %v3693 = vpow.pop %v3692
        %v3694 = vmul.f32 %v3656, 1.442695
        %v3695 = vpow.pop %v3694
        %v3696 = vmul.f32 %v3657, 1.442695
        %v3697 = vpow.pop %v3696
        %v3698 = vmul.f32 %v3658, 1.442695
        %v3699 = vpow.pop %v3698
        %v3700 = vmul.f32 %v3659, 1.442695
        %v3701 = vpow.pop %v3700
        %v3702 = vadd.f32 %v3661, 1.0
        %v3703 = vadd.f32 %v3663, 1.0
        %v3704 = vadd.f32 %v3665, 1.0
        %v3705 = vadd.f32 %v3667, 1.0
        %v3706 = vadd.f32 %v3669, 1.0
        %v3707 = vadd.f32 %v3671, 1.0
        %v3708 = vadd.f32 %v3673, 1.0
        %v3709 = vadd.f32 %v3675, 1.0
        %v3710 = vadd.f32 %v3677, 1.0
        %v3711 = vadd.f32 %v3679, 1.0
        %v3712 = vadd.f32 %v3681, 1.0
        %v3713 = vadd.f32 %v3683, 1.0
        %v3714 = vadd.f32 %v3685, 1.0
        %v3715 = vadd.f32 %v3687, 1.0
        %v3716 = vadd.f32 %v3689, 1.0
        %v3717 = vadd.f32 %v3691, 1.0
        %v3718 = vadd.f32 %v3693, 1.0
        %v3719 = vadd.f32 %v3695, 1.0
        %v3720 = vadd.f32 %v3697, 1.0
        %v3721 = vadd.f32 %v3699, 1.0
        %v3722 = vadd.f32 %v3701, 1.0
        %v3723 = vrcp.pop %v3702
        %v3724 = vmul.f32 %v3702, %v3723
        %v3725 = vsub.f32 1.0, %v3724
        %v3726 = vmul.f32 %v3723, %v3725
        %v3727 = vadd.f32 %v3723, %v3726
        %vm3728 = vweird.f32 %v3702
        %vm3729 = vweird.f32 %v3723
        %vm3730 = vmor %vm3728, %vm3729
        %v3731 = vsel %vm3730, %v3723, %v3727
        %v3732 = vand.u32 2147483647, %v3702
        %vm3733 = vcmp.eq.f32.partialorder %v3732, 8.507059e+37
        %v3734 = vand.u32 %v3702, 2147483648
        %v3735 = vor.u32 1.1754944e-38, %v3734
        %v3736 = vsel %vm3733, %v3735, %v3731
        %v3737 = vmul.f32 1.0, %v3736
        %v3738 = vrcp.pop %v3703
        %v3739 = vmul.f32 %v3703, %v3738
        %v3740 = vsub.f32 1.0, %v3739
        %v3741 = vmul.f32 %v3738, %v3740
        %v3742 = vadd.f32 %v3738, %v3741
        %vm3743 = vweird.f32 %v3703
        %vm3744 = vweird.f32 %v3738
        %vm3745 = vmor %vm3743, %vm3744
        %v3746 = vsel %vm3745, %v3738, %v3742
        %v3747 = vand.u32 2147483647, %v3703
        %vm3748 = vcmp.eq.f32.partialorder %v3747, 8.507059e+37
        %v3749 = vand.u32 %v3703, 2147483648
        %v3750 = vor.u32 1.1754944e-38, %v3749
        %v3751 = vsel %vm3748, %v3750, %v3746
        %v3752 = vmul.f32 1.0, %v3751
        %v3753 = vrcp.pop %v3704
        %v3754 = vmul.f32 %v3704, %v3753
        %v3755 = vsub.f32 1.0, %v3754
        %v3756 = vmul.f32 %v3753, %v3755
        %v3757 = vadd.f32 %v3753, %v3756
        %vm3758 = vweird.f32 %v3704
        %vm3759 = vweird.f32 %v3753
        %vm3760 = vmor %vm3758, %vm3759
        %v3761 = vsel %vm3760, %v3753, %v3757
        %v3762 = vand.u32 2147483647, %v3704
        %vm3763 = vcmp.eq.f32.partialorder %v3762, 8.507059e+37
        %v3764 = vand.u32 %v3704, 2147483648
        %v3765 = vor.u32 1.1754944e-38, %v3764
        %v3766 = vsel %vm3763, %v3765, %v3761
        %v3767 = vmul.f32 1.0, %v3766
        %v3768 = vrcp.pop %v3705
        %v3769 = vmul.f32 %v3705, %v3768
        %v3770 = vsub.f32 1.0, %v3769
        %v3771 = vmul.f32 %v3768, %v3770
        %v3772 = vadd.f32 %v3768, %v3771
        %vm3773 = vweird.f32 %v3705
        %vm3774 = vweird.f32 %v3768
        %vm3775 = vmor %vm3773, %vm3774
        %v3776 = vsel %vm3775, %v3768, %v3772
        %v3777 = vand.u32 2147483647, %v3705
        %vm3778 = vcmp.eq.f32.partialorder %v3777, 8.507059e+37
        %v3779 = vand.u32 %v3705, 2147483648
        %v3780 = vor.u32 1.1754944e-38, %v3779
        %v3781 = vsel %vm3778, %v3780, %v3776
        %v3782 = vmul.f32 1.0, %v3781
        %v3783 = vrcp.pop %v3706
        %v3784 = vmul.f32 %v3706, %v3783
        %v3785 = vsub.f32 1.0, %v3784
        %v3786 = vmul.f32 %v3783, %v3785
        %v3787 = vadd.f32 %v3783, %v3786
        %vm3788 = vweird.f32 %v3706
        %vm3789 = vweird.f32 %v3783
        %vm3790 = vmor %vm3788, %vm3789
        %v3791 = vsel %vm3790, %v3783, %v3787
        %v3792 = vand.u32 2147483647, %v3706
        %vm3793 = vcmp.eq.f32.partialorder %v3792, 8.507059e+37
        %v3794 = vand.u32 %v3706, 2147483648
        %v3795 = vor.u32 1.1754944e-38, %v3794
        %v3796 = vsel %vm3793, %v3795, %v3791
        %v3797 = vmul.f32 1.0, %v3796
        %v3798 = vrcp.pop %v3707
        %v3799 = vmul.f32 %v3707, %v3798
        %v3800 = vsub.f32 1.0, %v3799
        %v3801 = vmul.f32 %v3798, %v3800
        %v3802 = vadd.f32 %v3798, %v3801
        %vm3803 = vweird.f32 %v3707
        %vm3804 = vweird.f32 %v3798
        %vm3805 = vmor %vm3803, %vm3804
        %v3806 = vsel %vm3805, %v3798, %v3802
        %v3807 = vand.u32 2147483647, %v3707
        %vm3808 = vcmp.eq.f32.partialorder %v3807, 8.507059e+37
        %v3809 = vand.u32 %v3707, 2147483648
        %v3810 = vor.u32 1.1754944e-38, %v3809
        %v3811 = vsel %vm3808, %v3810, %v3806
        %v3812 = vmul.f32 1.0, %v3811
        %v3813 = vrcp.pop %v3708
        %v3814 = vmul.f32 %v3708, %v3813
        %v3815 = vsub.f32 1.0, %v3814
        %v3816 = vmul.f32 %v3813, %v3815
        %v3817 = vadd.f32 %v3813, %v3816
        %vm3818 = vweird.f32 %v3708
        %vm3819 = vweird.f32 %v3813
        %vm3820 = vmor %vm3818, %vm3819
        %v3821 = vsel %vm3820, %v3813, %v3817
        %v3822 = vand.u32 2147483647, %v3708
        %vm3823 = vcmp.eq.f32.partialorder %v3822, 8.507059e+37
        %v3824 = vand.u32 %v3708, 2147483648
        %v3825 = vor.u32 1.1754944e-38, %v3824
        %v3826 = vsel %vm3823, %v3825, %v3821
        %v3827 = vmul.f32 1.0, %v3826
        %v3828 = vrcp.pop %v3709
        %v3829 = vmul.f32 %v3709, %v3828
        %v3830 = vsub.f32 1.0, %v3829
        %v3831 = vmul.f32 %v3828, %v3830
        %v3832 = vadd.f32 %v3828, %v3831
        %vm3833 = vweird.f32 %v3709
        %vm3834 = vweird.f32 %v3828
        %vm3835 = vmor %vm3833, %vm3834
        %v3836 = vsel %vm3835, %v3828, %v3832
        %v3837 = vand.u32 2147483647, %v3709
        %vm3838 = vcmp.eq.f32.partialorder %v3837, 8.507059e+37
        %v3839 = vand.u32 %v3709, 2147483648
        %v3840 = vor.u32 1.1754944e-38, %v3839
        %v3841 = vsel %vm3838, %v3840, %v3836
        %v3842 = vmul.f32 1.0, %v3841
        %v3843 = vrcp.pop %v3710
        %v3844 = vmul.f32 %v3710, %v3843
        %v3845 = vsub.f32 1.0, %v3844
        %v3846 = vmul.f32 %v3843, %v3845
        %v3847 = vadd.f32 %v3843, %v3846
        %vm3848 = vweird.f32 %v3710
        %vm3849 = vweird.f32 %v3843
        %vm3850 = vmor %vm3848, %vm3849
        %v3851 = vsel %vm3850, %v3843, %v3847
        %v3852 = vand.u32 2147483647, %v3710
        %vm3853 = vcmp.eq.f32.partialorder %v3852, 8.507059e+37
        %v3854 = vand.u32 %v3710, 2147483648
        %v3855 = vor.u32 1.1754944e-38, %v3854
        %v3856 = vsel %vm3853, %v3855, %v3851
        %v3857 = vmul.f32 1.0, %v3856
        %v3858 = vrcp.pop %v3711
        %v3859 = vmul.f32 %v3711, %v3858
        %v3860 = vsub.f32 1.0, %v3859
        %v3861 = vmul.f32 %v3858, %v3860
        %v3862 = vadd.f32 %v3858, %v3861
        %vm3863 = vweird.f32 %v3711
        %vm3864 = vweird.f32 %v3858
        %vm3865 = vmor %vm3863, %vm3864
        %v3866 = vsel %vm3865, %v3858, %v3862
        %v3867 = vand.u32 2147483647, %v3711
        %vm3868 = vcmp.eq.f32.partialorder %v3867, 8.507059e+37
        %v3869 = vand.u32 %v3711, 2147483648
        %v3870 = vor.u32 1.1754944e-38, %v3869
        %v3871 = vsel %vm3868, %v3870, %v3866
        %v3872 = vmul.f32 1.0, %v3871
        %v3873 = vrcp.pop %v3712
        %v3874 = vmul.f32 %v3712, %v3873
        %v3875 = vsub.f32 1.0, %v3874
        %v3876 = vmul.f32 %v3873, %v3875
        %v3877 = vadd.f32 %v3873, %v3876
        %vm3878 = vweird.f32 %v3712
        %vm3879 = vweird.f32 %v3873
        %vm3880 = vmor %vm3878, %vm3879
        %v3881 = vsel %vm3880, %v3873, %v3877
        %v3882 = vand.u32 2147483647, %v3712
        %vm3883 = vcmp.eq.f32.partialorder %v3882, 8.507059e+37
        %v3884 = vand.u32 %v3712, 2147483648
        %v3885 = vor.u32 1.1754944e-38, %v3884
        %v3886 = vsel %vm3883, %v3885, %v3881
        %v3887 = vmul.f32 1.0, %v3886
        %v3888 = vrcp.pop %v3713
        %v3889 = vmul.f32 %v3713, %v3888
        %v3890 = vsub.f32 1.0, %v3889
        %v3891 = vmul.f32 %v3888, %v3890
        %v3892 = vadd.f32 %v3888, %v3891
        %vm3893 = vweird.f32 %v3713
        %vm3894 = vweird.f32 %v3888
        %vm3895 = vmor %vm3893, %vm3894
        %v3896 = vsel %vm3895, %v3888, %v3892
        %v3897 = vand.u32 2147483647, %v3713
        %vm3898 = vcmp.eq.f32.partialorder %v3897, 8.507059e+37
        %v3899 = vand.u32 %v3713, 2147483648
        %v3900 = vor.u32 1.1754944e-38, %v3899
        %v3901 = vsel %vm3898, %v3900, %v3896
        %v3902 = vmul.f32 1.0, %v3901
        %v3903 = vrcp.pop %v3714
        %v3904 = vmul.f32 %v3714, %v3903
        %v3905 = vsub.f32 1.0, %v3904
        %v3906 = vmul.f32 %v3903, %v3905
        %v3907 = vadd.f32 %v3903, %v3906
        %vm3908 = vweird.f32 %v3714
        %vm3909 = vweird.f32 %v3903
        %vm3910 = vmor %vm3908, %vm3909
        %v3911 = vsel %vm3910, %v3903, %v3907
        %v3912 = vand.u32 2147483647, %v3714
        %vm3913 = vcmp.eq.f32.partialorder %v3912, 8.507059e+37
        %v3914 = vand.u32 %v3714, 2147483648
        %v3915 = vor.u32 1.1754944e-38, %v3914
        %v3916 = vsel %vm3913, %v3915, %v3911
        %v3917 = vmul.f32 1.0, %v3916
        %v3918 = vrcp.pop %v3715
        %v3919 = vmul.f32 %v3715, %v3918
        %v3920 = vsub.f32 1.0, %v3919
        %v3921 = vmul.f32 %v3918, %v3920
        %v3922 = vadd.f32 %v3918, %v3921
        %vm3923 = vweird.f32 %v3715
        %vm3924 = vweird.f32 %v3918
        %vm3925 = vmor %vm3923, %vm3924
        %v3926 = vsel %vm3925, %v3918, %v3922
        %v3927 = vand.u32 2147483647, %v3715
        %vm3928 = vcmp.eq.f32.partialorder %v3927, 8.507059e+37
        %v3929 = vand.u32 %v3715, 2147483648
        %v3930 = vor.u32 1.1754944e-38, %v3929
        %v3931 = vsel %vm3928, %v3930, %v3926
        %v3932 = vmul.f32 1.0, %v3931
        %v3933 = vrcp.pop %v3716
        %v3934 = vmul.f32 %v3716, %v3933
        %v3935 = vsub.f32 1.0, %v3934
        %v3936 = vmul.f32 %v3933, %v3935
        %v3937 = vadd.f32 %v3933, %v3936
        %vm3938 = vweird.f32 %v3716
        %vm3939 = vweird.f32 %v3933
        %vm3940 = vmor %vm3938, %vm3939
        %v3941 = vsel %vm3940, %v3933, %v3937
        %v3942 = vand.u32 2147483647, %v3716
        %vm3943 = vcmp.eq.f32.partialorder %v3942, 8.507059e+37
        %v3944 = vand.u32 %v3716, 2147483648
        %v3945 = vor.u32 1.1754944e-38, %v3944
        %v3946 = vsel %vm3943, %v3945, %v3941
        %v3947 = vmul.f32 1.0, %v3946
        %v3948 = vrcp.pop %v3717
        %v3949 = vmul.f32 %v3717, %v3948
        %v3950 = vsub.f32 1.0, %v3949
        %v3951 = vmul.f32 %v3948, %v3950
        %v3952 = vadd.f32 %v3948, %v3951
        %vm3953 = vweird.f32 %v3717
        %vm3954 = vweird.f32 %v3948
        %vm3955 = vmor %vm3953, %vm3954
        %v3956 = vsel %vm3955, %v3948, %v3952
        %v3957 = vand.u32 2147483647, %v3717
        %vm3958 = vcmp.eq.f32.partialorder %v3957, 8.507059e+37
        %v3959 = vand.u32 %v3717, 2147483648
        %v3960 = vor.u32 1.1754944e-38, %v3959
        %v3961 = vsel %vm3958, %v3960, %v3956
        %v3962 = vmul.f32 1.0, %v3961
        %v3963 = vrcp.pop %v3718
        %v3964 = vmul.f32 %v3718, %v3963
        %v3965 = vsub.f32 1.0, %v3964
        %v3966 = vmul.f32 %v3963, %v3965
        %v3967 = vadd.f32 %v3963, %v3966
        %vm3968 = vweird.f32 %v3718
        %vm3969 = vweird.f32 %v3963
        %vm3970 = vmor %vm3968, %vm3969
        %v3971 = vsel %vm3970, %v3963, %v3967
        %v3972 = vand.u32 2147483647, %v3718
        %vm3973 = vcmp.eq.f32.partialorder %v3972, 8.507059e+37
        %v3974 = vand.u32 %v3718, 2147483648
        %v3975 = vor.u32 1.1754944e-38, %v3974
        %v3976 = vsel %vm3973, %v3975, %v3971
        %v3977 = vmul.f32 1.0, %v3976
        %v3978 = vrcp.pop %v3719
        %v3979 = vmul.f32 %v3719, %v3978
        %v3980 = vsub.f32 1.0, %v3979
        %v3981 = vmul.f32 %v3978, %v3980
        %v3982 = vadd.f32 %v3978, %v3981
        %vm3983 = vweird.f32 %v3719
        %vm3984 = vweird.f32 %v3978
        %vm3985 = vmor %vm3983, %vm3984
        %v3986 = vsel %vm3985, %v3978, %v3982
        %v3987 = vand.u32 2147483647, %v3719
        %vm3988 = vcmp.eq.f32.partialorder %v3987, 8.507059e+37
        %v3989 = vand.u32 %v3719, 2147483648
        %v3990 = vor.u32 1.1754944e-38, %v3989
        %v3991 = vsel %vm3988, %v3990, %v3986
        %v3992 = vmul.f32 1.0, %v3991
        %v3993 = vrcp.pop %v3720
        %v3994 = vmul.f32 %v3720, %v3993
        %v3995 = vsub.f32 1.0, %v3994
        %v3996 = vmul.f32 %v3993, %v3995
        %v3997 = vadd.f32 %v3993, %v3996
        %vm3998 = vweird.f32 %v3720
        %vm3999 = vweird.f32 %v3993
        %vm4000 = vmor %vm3998, %vm3999
        %v4001 = vsel %vm4000, %v3993, %v3997
        %v4002 = vand.u32 2147483647, %v3720
        %vm4003 = vcmp.eq.f32.partialorder %v4002, 8.507059e+37
        %v4004 = vand.u32 %v3720, 2147483648
        %v4005 = vor.u32 1.1754944e-38, %v4004
        %v4006 = vsel %vm4003, %v4005, %v4001
        %v4007 = vmul.f32 1.0, %v4006
        %v4008 = vrcp.pop %v3721
        %v4009 = vmul.f32 %v3721, %v4008
        %v4010 = vsub.f32 1.0, %v4009
        %v4011 = vmul.f32 %v4008, %v4010
        %v4012 = vadd.f32 %v4008, %v4011
        %vm4013 = vweird.f32 %v3721
        %vm4014 = vweird.f32 %v4008
        %vm4015 = vmor %vm4013, %vm4014
        %v4016 = vsel %vm4015, %v4008, %v4012
        %v4017 = vand.u32 2147483647, %v3721
        %vm4018 = vcmp.eq.f32.partialorder %v4017, 8.507059e+37
        %v4019 = vand.u32 %v3721, 2147483648
        %v4020 = vor.u32 1.1754944e-38, %v4019
        %v4021 = vsel %vm4018, %v4020, %v4016
        %v4022 = vmul.f32 1.0, %v4021
        %v4023 = vrcp.pop %v3722
        %v4024 = vmul.f32 %v3722, %v4023
        %v4025 = vsub.f32 1.0, %v4024
        %v4026 = vmul.f32 %v4023, %v4025
        %v4027 = vadd.f32 %v4023, %v4026
        %vm4028 = vweird.f32 %v3722
        %vm4029 = vweird.f32 %v4023
        %vm4030 = vmor %vm4028, %vm4029
        %v4031 = vsel %vm4030, %v4023, %v4027
        %v4032 = vand.u32 2147483647, %v3722
        %vm4033 = vcmp.eq.f32.partialorder %v4032, 8.507059e+37
        %v4034 = vand.u32 %v3722, 2147483648
        %v4035 = vor.u32 1.1754944e-38, %v4034
        %v4036 = vsel %vm4033, %v4035, %v4031
        %v4037 = vmul.f32 1.0, %v4036
        %v4038 = vmul.f32 %v3737, %v2984
        %v4039 = vmul.f32 %v3752, %v2986
        %v4040 = vmul.f32 %v3767, %v2988
        %v4041 = vmul.f32 %v3782, %v2990
        %v4042 = vmul.f32 %v3797, %v2992
        %v4043 = vmul.f32 %v3812, %v2994
        %v4044 = vmul.f32 %v3827, %v2996
        %v4045 = vmul.f32 %v3842, %v2998
        %v4046 = vmul.f32 %v3857, %v3000
        %v4047 = vmul.f32 %v3872, %v3002
        %v4048 = vmul.f32 %v3887, %v3004
        %v4049 = vmul.f32 %v3902, %v3006
        %v4050 = vmul.f32 %v3917, %v3008
        %v4051 = vmul.f32 %v3932, %v3010
        %v4052 = vmul.f32 %v3947, %v3012
        %v4053 = vmul.f32 %v3962, %v3014
        %v4054 = vmul.f32 %v3977, %v3016
        %v4055 = vmul.f32 %v3992, %v3018
        %v4056 = vmul.f32 %v4007, %v3020
        %v4057 = vmul.f32 %v4022, %v3022
        %v4058 = vmul.f32 %v4037, %v3024
        %4080 = vrot.lane.b32.xlu0 %v4038, 64
        %v4081 = vpop.permute.xlu0 %4080
        %4082 = vrot.lane.b32.xlu0 %v4039, 64
        %v4083 = vpop.permute.xlu0 %4082
        %4084 = vrot.lane.b32.xlu0 %v4040, 64
        %v4085 = vpop.permute.xlu0 %4084
        %4086 = vrot.lane.b32.xlu0 %v4041, 64
        %v4087 = vpop.permute.xlu0 %4086
        %4088 = vrot.lane.b32.xlu0 %v4042, 64
        %v4089 = vpop.permute.xlu0 %4088
        %4090 = vrot.lane.b32.xlu0 %v4043, 64
        %v4091 = vpop.permute.xlu0 %4090
        %4092 = vrot.lane.b32.xlu0 %v4044, 64
        %v4093 = vpop.permute.xlu0 %4092
        %4094 = vrot.lane.b32.xlu0 %v4045, 64
        %v4095 = vpop.permute.xlu0 %4094
        %4096 = vrot.lane.b32.xlu0 %v4046, 64
        %v4097 = vpop.permute.xlu0 %4096
        %4098 = vrot.lane.b32.xlu0 %v4047, 64
        %v4099 = vpop.permute.xlu0 %4098
        %4100 = vrot.lane.b32.xlu0 %v4048, 64
        %v4101 = vpop.permute.xlu0 %4100
        %4102 = vrot.lane.b32.xlu0 %v4049, 64
        %v4103 = vpop.permute.xlu0 %4102
        %4104 = vrot.lane.b32.xlu0 %v4050, 64
        %v4105 = vpop.permute.xlu0 %4104
        %4106 = vrot.lane.b32.xlu0 %v4051, 64
        %v4107 = vpop.permute.xlu0 %4106
        %4108 = vrot.lane.b32.xlu0 %v4052, 64
        %v4109 = vpop.permute.xlu0 %4108
        %4110 = vrot.lane.b32.xlu0 %v4053, 64
        %v4111 = vpop.permute.xlu0 %4110
        %4112 = vrot.lane.b32.xlu0 %v4054, 64
        %v4113 = vpop.permute.xlu0 %4112
        %4114 = vrot.lane.b32.xlu0 %v4055, 64
        %v4115 = vpop.permute.xlu0 %4114
        %4116 = vrot.lane.b32.xlu0 %v4056, 64
        %v4117 = vpop.permute.xlu0 %4116
        %4118 = vrot.lane.b32.xlu0 %v4057, 64
        %v4119 = vpop.permute.xlu0 %4118
        %4120 = vrot.lane.b32.xlu0 %v4058, 64
        %v4121 = vpop.permute.xlu0 %4120
        %v4143 = vadd.f32 %v3513, %v4081
        %v4144 = vadd.f32 %v3514, %v4083
        %v4145 = vadd.f32 %v3515, %v4085
        %v4146 = vadd.f32 %v3516, %v4087
        %v4147 = vadd.f32 %v3517, %v4089
        %v4148 = vadd.f32 %v3518, %v4091
        %v4149 = vadd.f32 %v3519, %v4093
        %v4150 = vadd.f32 %v3520, %v4095
        %v4151 = vadd.f32 %v3521, %v4097
        %v4152 = vadd.f32 %v3522, %v4099
        %v4153 = vadd.f32 %v3523, %v4101
        %v4154 = vadd.f32 %v3524, %v4103
        %v4155 = vadd.f32 %v3525, %v4105
        %v4156 = vadd.f32 %v3526, %v4107
        %v4157 = vadd.f32 %v3527, %v4109
        %v4158 = vadd.f32 %v3528, %v4111
        %v4159 = vadd.f32 %v3529, %v4113
        %v4160 = vadd.f32 %v3530, %v4115
        %v4161 = vadd.f32 %v3531, %v4117
        %v4162 = vadd.f32 %v3532, %v4119
        %v4163 = vadd.f32 %v3533, %v4121
        %v4164 = vtanh.pop %v4143
        %v4165 = vtanh.pop %v4144
        %v4166 = vtanh.pop %v4145
        %v4167 = vtanh.pop %v4146
        %v4168 = vtanh.pop %v4147
        %v4169 = vtanh.pop %v4148
        %v4170 = vtanh.pop %v4149
        %v4171 = vtanh.pop %v4150
        %v4172 = vtanh.pop %v4151
        %v4173 = vtanh.pop %v4152
        %v4174 = vtanh.pop %v4153
        %v4175 = vtanh.pop %v4154
        %v4176 = vtanh.pop %v4155
        %v4177 = vtanh.pop %v4156
        %v4178 = vtanh.pop %v4157
        %v4179 = vtanh.pop %v4158
        %v4180 = vtanh.pop %v4159
        %v4181 = vtanh.pop %v4160
        %v4182 = vtanh.pop %v4161
        %v4183 = vtanh.pop %v4162
        %v4184 = vtanh.pop %v4163
        %v4185 = vsub.f32 %v2617, %v4164
        %v4186 = vsub.f32 %v2618, %v4165
        %v4187 = vsub.f32 %v2619, %v4166
        %v4188 = vsub.f32 %v2620, %v4167
        %v4189 = vsub.f32 %v2621, %v4168
        %v4190 = vsub.f32 %v2622, %v4169
        %v4191 = vsub.f32 %v2623, %v4170
        %v4192 = vsub.f32 %v2624, %v4171
        %v4193 = vsub.f32 %v2625, %v4172
        %v4194 = vsub.f32 %v2626, %v4173
        %v4195 = vsub.f32 %v2627, %v4174
        %v4196 = vsub.f32 %v2628, %v4175
        %v4197 = vsub.f32 %v2629, %v4176
        %v4198 = vsub.f32 %v2630, %v4177
        %v4199 = vsub.f32 %v2631, %v4178
        %v4200 = vsub.f32 %v2632, %v4179
        %v4201 = vsub.f32 %v2633, %v4180
        %v4202 = vsub.f32 %v2634, %v4181
        %v4203 = vsub.f32 %v2635, %v4182
        %v4204 = vsub.f32 %v2636, %v4183
        %v4205 = vsub.f32 %v2637, %v4184
        %4227 = vrot.lane.b32.xlu0 %v4185, 96
        %v4228 = vpop.permute.xlu0 %4227
        %4229 = vrot.lane.b32.xlu0 %v4186, 96
        %v4230 = vpop.permute.xlu0 %4229
        %4231 = vrot.lane.b32.xlu0 %v4187, 96
        %v4232 = vpop.permute.xlu0 %4231
        %4233 = vrot.lane.b32.xlu0 %v4188, 96
        %v4234 = vpop.permute.xlu0 %4233
        %4235 = vrot.lane.b32.xlu0 %v4189, 96
        %v4236 = vpop.permute.xlu0 %4235
        %4237 = vrot.lane.b32.xlu0 %v4190, 96
        %v4238 = vpop.permute.xlu0 %4237
        %4239 = vrot.lane.b32.xlu0 %v4191, 96
        %v4240 = vpop.permute.xlu0 %4239
        %4241 = vrot.lane.b32.xlu0 %v4192, 96
        %v4242 = vpop.permute.xlu0 %4241
        %4243 = vrot.lane.b32.xlu0 %v4193, 96
        %v4244 = vpop.permute.xlu0 %4243
        %4245 = vrot.lane.b32.xlu0 %v4194, 96
        %v4246 = vpop.permute.xlu0 %4245
        %4247 = vrot.lane.b32.xlu0 %v4195, 96
        %v4248 = vpop.permute.xlu0 %4247
        %4249 = vrot.lane.b32.xlu0 %v4196, 96
        %v4250 = vpop.permute.xlu0 %4249
        %4251 = vrot.lane.b32.xlu0 %v4197, 96
        %v4252 = vpop.permute.xlu0 %4251
        %4253 = vrot.lane.b32.xlu0 %v4198, 96
        %v4254 = vpop.permute.xlu0 %4253
        %4255 = vrot.lane.b32.xlu0 %v4199, 96
        %v4256 = vpop.permute.xlu0 %4255
        %4257 = vrot.lane.b32.xlu0 %v4200, 96
        %v4258 = vpop.permute.xlu0 %4257
        %4259 = vrot.lane.b32.xlu0 %v4201, 96
        %v4260 = vpop.permute.xlu0 %4259
        %4261 = vrot.lane.b32.xlu0 %v4202, 96
        %v4262 = vpop.permute.xlu0 %4261
        %4263 = vrot.lane.b32.xlu0 %v4203, 96
        %v4264 = vpop.permute.xlu0 %4263
        %4265 = vrot.lane.b32.xlu0 %v4204, 96
        %v4266 = vpop.permute.xlu0 %4265
        %4267 = vrot.lane.b32.xlu0 %v4205, 96
        %v4268 = vpop.permute.xlu0 %4267
        %v4290 = vmul.f32 %v3737, %v4228
        %v4291 = vmul.f32 %v3752, %v4230
        %v4292 = vmul.f32 %v3767, %v4232
        %v4293 = vmul.f32 %v3782, %v4234
        %v4294 = vmul.f32 %v3797, %v4236
        %v4295 = vmul.f32 %v3812, %v4238
        %v4296 = vmul.f32 %v3827, %v4240
        %v4297 = vmul.f32 %v3842, %v4242
        %v4298 = vmul.f32 %v3857, %v4244
        %v4299 = vmul.f32 %v3872, %v4246
        %v4300 = vmul.f32 %v3887, %v4248
        %v4301 = vmul.f32 %v3902, %v4250
        %v4302 = vmul.f32 %v3917, %v4252
        %v4303 = vmul.f32 %v3932, %v4254
        %v4304 = vmul.f32 %v3947, %v4256
        %v4305 = vmul.f32 %v3962, %v4258
        %v4306 = vmul.f32 %v3977, %v4260
        %v4307 = vmul.f32 %v3992, %v4262
        %v4308 = vmul.f32 %v4007, %v4264
        %v4309 = vmul.f32 %v4022, %v4266
        %v4310 = vmul.f32 %v4037, %v4268
        %4332 = vrot.lane.b32.xlu0 %v4290, 32
        %v4333 = vpop.permute.xlu0 %4332
        %4334 = vrot.lane.b32.xlu0 %v4291, 32
        %v4335 = vpop.permute.xlu0 %4334
        %4336 = vrot.lane.b32.xlu0 %v4292, 32
        %v4337 = vpop.permute.xlu0 %4336
        %4338 = vrot.lane.b32.xlu0 %v4293, 32
        %v4339 = vpop.permute.xlu0 %4338
        %4340 = vrot.lane.b32.xlu0 %v4294, 32
        %v4341 = vpop.permute.xlu0 %4340
        %4342 = vrot.lane.b32.xlu0 %v4295, 32
        %v4343 = vpop.permute.xlu0 %4342
        %4344 = vrot.lane.b32.xlu0 %v4296, 32
        %v4345 = vpop.permute.xlu0 %4344
        %4346 = vrot.lane.b32.xlu0 %v4297, 32
        %v4347 = vpop.permute.xlu0 %4346
        %4348 = vrot.lane.b32.xlu0 %v4298, 32
        %v4349 = vpop.permute.xlu0 %4348
        %4350 = vrot.lane.b32.xlu0 %v4299, 32
        %v4351 = vpop.permute.xlu0 %4350
        %4352 = vrot.lane.b32.xlu0 %v4300, 32
        %v4353 = vpop.permute.xlu0 %4352
        %4354 = vrot.lane.b32.xlu0 %v4301, 32
        %v4355 = vpop.permute.xlu0 %4354
        %4356 = vrot.lane.b32.xlu0 %v4302, 32
        %v4357 = vpop.permute.xlu0 %4356
        %4358 = vrot.lane.b32.xlu0 %v4303, 32
        %v4359 = vpop.permute.xlu0 %4358
        %4360 = vrot.lane.b32.xlu0 %v4304, 32
        %v4361 = vpop.permute.xlu0 %4360
        %4362 = vrot.lane.b32.xlu0 %v4305, 32
        %v4363 = vpop.permute.xlu0 %4362
        %4364 = vrot.lane.b32.xlu0 %v4306, 32
        %v4365 = vpop.permute.xlu0 %4364
        %4366 = vrot.lane.b32.xlu0 %v4307, 32
        %v4367 = vpop.permute.xlu0 %4366
        %4368 = vrot.lane.b32.xlu0 %v4308, 32
        %v4369 = vpop.permute.xlu0 %4368
        %4370 = vrot.lane.b32.xlu0 %v4309, 32
        %v4371 = vpop.permute.xlu0 %4370
        %4372 = vrot.lane.b32.xlu0 %v4310, 32
        %v4373 = vpop.permute.xlu0 %4372
        %v4395 = vadd.f32 %v4164, %v4333
        %v4396 = vadd.f32 %v4165, %v4335
        %v4397 = vadd.f32 %v4166, %v4337
        %v4398 = vadd.f32 %v4167, %v4339
        %v4399 = vadd.f32 %v4168, %v4341
        %v4400 = vadd.f32 %v4169, %v4343
        %v4401 = vadd.f32 %v4170, %v4345
        %v4402 = vadd.f32 %v4171, %v4347
        %v4403 = vadd.f32 %v4172, %v4349
        %v4404 = vadd.f32 %v4173, %v4351
        %v4405 = vadd.f32 %v4174, %v4353
        %v4406 = vadd.f32 %v4175, %v4355
        %v4407 = vadd.f32 %v4176, %v4357
        %v4408 = vadd.f32 %v4177, %v4359
        %v4409 = vadd.f32 %v4178, %v4361
        %v4410 = vadd.f32 %v4179, %v4363
        %v4411 = vadd.f32 %v4180, %v4365
        %v4412 = vadd.f32 %v4181, %v4367
        %v4413 = vadd.f32 %v4182, %v4369
        %v4414 = vadd.f32 %v4183, %v4371
        %v4415 = vadd.f32 %v4184, %v4373
        %4437 = vrot.lane.b32.xlu0 %v4395, 64
        %v4438 = vpop.permute.xlu0 %4437
        %4439 = vrot.lane.b32.xlu0 %v4396, 64
        %v4440 = vpop.permute.xlu0 %4439
        %4441 = vrot.lane.b32.xlu0 %v4397, 64
        %v4442 = vpop.permute.xlu0 %4441
        %4443 = vrot.lane.b32.xlu0 %v4398, 64
        %v4444 = vpop.permute.xlu0 %4443
        %4445 = vrot.lane.b32.xlu0 %v4399, 64
        %v4446 = vpop.permute.xlu0 %4445
        %4447 = vrot.lane.b32.xlu0 %v4400, 64
        %v4448 = vpop.permute.xlu0 %4447
        %4449 = vrot.lane.b32.xlu0 %v4401, 64
        %v4450 = vpop.permute.xlu0 %4449
        %4451 = vrot.lane.b32.xlu0 %v4402, 64
        %v4452 = vpop.permute.xlu0 %4451
        %4453 = vrot.lane.b32.xlu0 %v4403, 64
        %v4454 = vpop.permute.xlu0 %4453
        %4455 = vrot.lane.b32.xlu0 %v4404, 64
        %v4456 = vpop.permute.xlu0 %4455
        %4457 = vrot.lane.b32.xlu0 %v4405, 64
        %v4458 = vpop.permute.xlu0 %4457
        %4459 = vrot.lane.b32.xlu0 %v4406, 64
        %v4460 = vpop.permute.xlu0 %4459
        %4461 = vrot.lane.b32.xlu0 %v4407, 64
        %v4462 = vpop.permute.xlu0 %4461
        %4463 = vrot.lane.b32.xlu0 %v4408, 64
        %v4464 = vpop.permute.xlu0 %4463
        %4465 = vrot.lane.b32.xlu0 %v4409, 64
        %v4466 = vpop.permute.xlu0 %4465
        %4467 = vrot.lane.b32.xlu0 %v4410, 64
        %v4468 = vpop.permute.xlu0 %4467
        %4469 = vrot.lane.b32.xlu0 %v4411, 64
        %v4470 = vpop.permute.xlu0 %4469
        %4471 = vrot.lane.b32.xlu0 %v4412, 64
        %v4472 = vpop.permute.xlu0 %4471
        %4473 = vrot.lane.b32.xlu0 %v4413, 64
        %v4474 = vpop.permute.xlu0 %4473
        %4475 = vrot.lane.b32.xlu0 %v4414, 64
        %v4476 = vpop.permute.xlu0 %4475
        %4477 = vrot.lane.b32.xlu0 %v4415, 64
        %v4478 = vpop.permute.xlu0 %4477
        %4500 = vst.msk [vmem:[%s310] sm:$0xff] %vm686, %v4438
        %4501 = vst.msk [vmem:[%s310 + $0x8] sm:$0xff] %vm686, %v4440
        %4502 = vst.msk [vmem:[%s310 + $0x10] sm:$0xff] %vm686, %v4442
        %4503 = vst.msk [vmem:[%s310 + $0x18] sm:$0xff] %vm686, %v4444
        %4504 = vst.msk [vmem:[%s310 + $0x20] sm:$0xff] %vm686, %v4446
        %4505 = vst.msk [vmem:[%s310 + $0x28] sm:$0xff] %vm686, %v4448
        %4506 = vst.msk [vmem:[%s310 + $0x30] sm:$0xff] %vm686, %v4450
        %4507 = vst.msk [vmem:[%s310 + $0x38] sm:$0xff] %vm686, %v4452
        %4508 = vst.msk [vmem:[%s310 + $0x40] sm:$0xff] %vm686, %v4454
        %4509 = vst.msk [vmem:[%s310 + $0x48] sm:$0xff] %vm686, %v4456
        %4510 = vst.msk [vmem:[%s310 + $0x50] sm:$0xff] %vm686, %v4458
        %4511 = vst.msk [vmem:[%s310 + $0x58] sm:$0xff] %vm686, %v4460
        %4512 = vst.msk [vmem:[%s310 + $0x60] sm:$0xff] %vm686, %v4462
        %4513 = vst.msk [vmem:[%s310 + $0x68] sm:$0xff] %vm686, %v4464
        %4514 = vst.msk [vmem:[%s310 + $0x70] sm:$0xff] %vm686, %v4466
        %4515 = vst.msk [vmem:[%s310 + $0x78] sm:$0xff] %vm686, %v4468
        %4516 = vst.msk [vmem:[%s310 + $0x80] sm:$0xff] %vm686, %v4470
        %4517 = vst.msk [vmem:[%s310 + $0x88] sm:$0xff] %vm686, %v4472
        %4518 = vst.msk [vmem:[%s310 + $0x90] sm:$0xff] %vm686, %v4474
        %4519 = vst.msk [vmem:[%s310 + $0x98] sm:$0xff] %vm686, %v4476
        %4520 = vst.msk [vmem:[%s310 + $0xa0] sm:$0xff] %vm686, %v4478
        %s4521 = smul.u32 21, %s22
        %p4522 = scmp.lt.s32.totalorder %s4521, 41
        %s4523 = scalar_select %p4522, %s4521, 41
        %s4524 = smul.addr %s4523, 8
        %s4525 = scalar_lea.vmem %s5, %s4524
        // Predicated region
        $region49: #{tpu_custom_call.1} parent=39 // pred_check
          %p4526 = pneg %p160
        $region50: #{tpu_custom_call.1} parent=39 // pred_check_branch
          %4528 = sbr.rel (%p4526) target = $region52
        $region51: #{tpu_custom_call.1} parent=39 // pred_region
          %s4529 = smul.u32 21, %s22
        $region52: #{tpu_custom_call.1} parent=39 // pred_fallthru
          _
      $region40: #{tpu_custom_call.1} parent=5 // pred_fallthru
        _
      %p4530 = scmp.le.s32.totalorder 2, %s17
      // Predicated region
      $region53: #{tpu_custom_call.1} parent=5 // pred_check
        %p4531 = pneg %p4530
      $region54: #{tpu_custom_call.1} parent=5 // pred_check_branch
        %4533 = sbr.rel (%p4531) target = $region56
      $region55: #{tpu_custom_call.1} parent=5 // pred_region
        %s4534 = ssub.s32 %s17, 2
        // Predicated region
        $region57: #{tpu_custom_call.1} parent=55 // pred_check
          %p4535 = pneg %p166
        $region58: #{tpu_custom_call.1} parent=55 // pred_check_branch
          %4537 = sbr.rel (%p4535) target = $region60
        $region59: #{tpu_custom_call.1} parent=55 // pred_region
          %s4538 = smul.u32 21, %s23
          %p4539 = scmp.lt.s32.totalorder %s4538, 41
          %s4540 = scalar_select %p4539, %s4538, 41
          %s4541 = smul.addr %s4540, 8
          %s4542 = scalar_lea.vmem %s5, %s4541
        $region60: #{tpu_custom_call.1} parent=55 // pred_fallthru
          _
      $region56: #{tpu_custom_call.1} parent=5 // pred_fallthru
        _
    $region6: #{tpu_custom_call.1} parent=1 // loop_footer
      %s21 = sadd.s32 1, %s17
    $region7: #{tpu_custom_call.1} parent=1 // loop_footer_branch
      %16 = sbr.rel target = $region3
    $region8: #{tpu_custom_call.1} parent=1 // loop_exit
      _
    %4543 = vsyncpa [#allocation3], 1
    %s4544 = scalar_lea.sflag [#allocation3], 1
    %4545 = vsyncpa %s4544, 1
    %4546 = vsyncpa [#allocation5], 1
    %s4547 = scalar_lea.sflag [#allocation5], 1
    %4548 = vsyncpa %s4547, 1

</llo_original>
